<compile_context>
chip_gen: v7x
topology: tpu7x:2x2x1
jax: 0.10.0
libtpu: 0.0.40
codegen_flags: <defaults>
</compile_context>

<pallas_src>
import functools

import jax
import jax.numpy as jnp
from jax import lax
from jax.experimental import pallas as pl
from jax.experimental.pallas import tpu as pltpu

_LANE = 128  # TPU lane width; channel dims are padded to a multiple of this.


def _round_up(x, m):
    return (x + m - 1) // m * m


def _vmem_limit_bytes():
    # v5e/v6e: 128 MiB VMEM per core, v7x: 64 MiB.  Use ~3/4 of the physical
    # capacity, capped at 112 MiB (review: do not hard-cap at 64 MiB on v6e).
    limit = 112 * 1024 * 1024
    try:
        cap = pltpu.get_tpu_info().vmem_capacity_bytes
        limit = min(limit, (3 * cap) // 4)
    except Exception:
        limit = 64 * 1024 * 1024
    return int(limit)


def _pick_images_per_step(n, ho, wo):
    # Keep >= 2 grid steps (feeds both v7x TensorCores / lets the pipeline
    # overlap), and prefer the smallest Nb giving >= 512 matmul rows per step.
    divs = [d for d in range(1, n + 1) if n % d == 0]
    good = [d for d in divs if n // d >= 2 and d * ho * wo >= 512]
    if good:
        return min(good)
    ok = [d for d in divs if n // d >= 2]
    return max(ok) if ok else n


def _pick_h_chunk(h_total, rows_per_h, max_rows=4096):
    # Largest divisor of h_total keeping a chunk's matmul rows <= max_rows,
    # which bounds the per-chunk f32 temporaries.
    best = 1
    for c in range(1, h_total + 1):
        if h_total % c == 0 and c * rows_per_h <= max_rows:
            best = c
    return best


def _bottleneck_kernel(x_ref, w1_ref, b1_ref, w2_ref, b2_ref, w3_ref, b3_ref,
                       wsc_ref, bsc_ref, o_ref, shifted_ref,
                       *, H, W, stride, has_proj, hc_in, hc_out):
    """One Bottleneck block for a block of Nb images (lane-padded NHWC bf16)."""
    f32, bf16 = jnp.float32, jnp.bfloat16
    Nb = x_ref.shape[0]
    Cin = w1_ref.shape[0]            # lane-padded in-channels (per pixel)
    Pp = w1_ref.shape[1]             # lane-padded bottleneck width
    C4 = w3_ref.shape[1]             # lane-padded out-channels
    Ho = (H - 1) // stride + 1
    Wo = (W - 1) // stride + 1

    # Zero halo rows and the two shift-invalid columns every grid step (not
    # guarded on program_id == 0: with dimension_semantics=("parallel",) the
    # second TensorCore starts mid-grid with its own uninitialized scratch).
    shifted_ref[:, 0:1, :, :] = jnp.zeros((Nb, 1, Wo, 3 * Pp), bf16)
    shifted_ref[:, H + 1:H + 2, :, :] = jnp.zeros((Nb, 1, Wo, 3 * Pp), bf16)
    shifted_ref[:, :, 0:1, 0:Pp] = jnp.zeros((Nb, H + 2, 1, Pp), bf16)
    if stride == 1:
        shifted_ref[:, :, Wo - 1:Wo, 2 * Pp:3 * Pp] = (
            jnp.zeros((Nb, H + 2, 1, Pp), bf16))

    # ---- phase 1: conv1 (1x1) + bias + relu, scattered into the 3 kw lane
    # blocks of the scratch (the kw shift is pre-applied on the lane axis).
    def conv1_chunk(h0):
        dst = h0 + 1                                   # +1: top row halo

        def c1(xpart, rows):
            t = jnp.dot(xpart.reshape(rows, Cin), w1_ref[...],
                        preferred_element_type=f32)
            return jnp.maximum(t + b1_ref[...], 0.0)

        if stride == 1:
            xc = x_ref[:, pl.ds(h0, hc_in), :, :]                 # (Nb,hc,W,Cin)
            t1 = c1(xc, Nb * hc_in * W).reshape(Nb, hc_in, W, Pp).astype(bf16)
            shifted_ref[:, pl.ds(dst, hc_in), :, Pp:2 * Pp] = t1              # kw=1
            shifted_ref[:, pl.ds(dst, hc_in), 1:W, 0:Pp] = t1[:, :, :W - 1, :]  # kw=0
            shifted_ref[:, pl.ds(dst, hc_in), :W - 1, 2 * Pp:3 * Pp] = (
                t1[:, :, 1:, :])                                              # kw=2
        else:
            # stride 2: wrapper folded W parity into the lane axis, x_ref is
            # (Nb, H, W/2, 2*Cin) with even-w channels first; lane slices are
            # free so no sublane-strided gathers are needed.
            xc = x_ref[:, pl.ds(h0, hc_in), :, :]                 # (Nb,hc,Wo,2Cin)
            rows = Nb * hc_in * Wo
            t1e = c1(xc[..., 0:Cin], rows).reshape(Nb, hc_in, Wo, Pp).astype(bf16)
            t1o = c1(xc[..., Cin:2 * Cin], rows).reshape(
                Nb, hc_in, Wo, Pp).astype(bf16)
            shifted_ref[:, pl.ds(dst, hc_in), :, Pp:2 * Pp] = t1e             # kw=1
            shifted_ref[:, pl.ds(dst, hc_in), :, 2 * Pp:3 * Pp] = t1o         # kw=2
            shifted_ref[:, pl.ds(dst, hc_in), 1:Wo, 0:Pp] = (
                t1o[:, :, :Wo - 1, :])                                        # kw=0

    n_in = H // hc_in
    if n_in == 1:
        conv1_chunk(0)
    else:
        def in_body(i, carry):
            conv1_chunk(pl.multiple_of(i * hc_in, hc_in))
            return carry
        lax.fori_loop(0, n_in, in_body, 0)

    # ---- phase 2: conv2 (3 matmuls, K=3*Pp, register accumulation), conv3,
    # shortcut, residual add + relu; chunked over output rows so the f32
    # temporaries stay chunk-sized.
    def out_chunk(h0):
        m = Nb * hc_out * Wo
        acc = None
        for kh in range(3):
            if stride == 1:
                win = shifted_ref[:, pl.ds(h0 + kh, hc_out), :, :]
            else:
                win = shifted_ref[:, pl.ds(2 * h0 + kh, 2 * hc_out), :, :]
                # drop odd rows: a major-dim (non-sublane) selection, cheap.
                win = win.reshape(Nb, hc_out, 2, Wo, 3 * Pp)[:, :, 0]
            part = jnp.dot(win.reshape(m, 3 * Pp), w2_ref[kh],
                           preferred_element_type=f32)
            acc = part if acc is None else acc + part
        t2 = jnp.maximum(acc + b2_ref[...], 0.0)

        t3 = jnp.dot(t2.astype(bf16), w3_ref[...], preferred_element_type=f32)
        t3 = t3 + b3_ref[...]

        if has_proj:
            if stride == 1:
                xs = x_ref[:, pl.ds(h0, hc_out), :, :]
            else:
                xs = x_ref[:, pl.ds(2 * h0, 2 * hc_out), :, :]
                xs = xs.reshape(Nb, hc_out, 2, Wo, 2 * Cin)[:, :, 0, :, 0:Cin]
            sc = jnp.dot(xs.reshape(m, Cin), wsc_ref[...],
                         preferred_element_type=f32) + bsc_ref[...]
            res = t3 + sc
        else:
            # identity shortcut: add the bf16 input view directly (implicit
            # f32 promote) -- no f32 copy of x is materialized.
            res = t3 + x_ref[:, pl.ds(h0, hc_out), :, :].reshape(m, Cin)

        out = jnp.maximum(res, 0.0)
        o_ref[:, pl.ds(h0, hc_out), :, :] = out.reshape(
            Nb, hc_out, Wo, C4).astype(o_ref.dtype)

    n_out = Ho // hc_out
    if n_out == 1:
        out_chunk(0)
    else:
        def out_body(i, carry):
            out_chunk(pl.multiple_of(i * hc_out, hc_out))
            return carry
        lax.fori_loop(0, n_out, out_body, 0)


def prepare_bottleneck_params(raw):
    """Fold eval-mode BN into conv weights (f32), lane-pad, cast to bf16."""
    f32, bf16 = jnp.float32, jnp.bfloat16
    cin, planes = raw["w1"].shape
    c4 = raw["w3"].shape[1]
    cp = _round_up(cin, _LANE)
    pp = _round_up(planes, _LANE)
    c4p = _round_up(c4, _LANE)

    def pad_mat(a, r, c):
        return jnp.pad(a, ((0, r - a.shape[0]), (0, c - a.shape[1])))

    def pad_bias(a, c):
        return jnp.pad(a.astype(f32), ((0, 0), (0, c - a.shape[1])))

    s1, s2, s3 = raw["s1"].astype(f32), raw["s2"].astype(f32), raw["s3"].astype(f32)
    w1 = pad_mat(raw["w1"].astype(f32) * s1, cp, pp).astype(bf16)
    w2 = raw["w2"].astype(f32) * s2.reshape(1, 1, 1, -1)          # (3,3,P,P) HWIO
    w2 = jnp.pad(w2, ((0, 0), (0, 0), (0, pp - planes), (0, pp - planes)))
    w2 = w2.reshape(3, 3 * pp, pp).astype(bf16)   # rows ordered (kw, cin): matches lane blocks
    w3 = pad_mat(raw["w3"].astype(f32) * s3, pp, c4p).astype(bf16)

    wsc_raw = raw.get("wsc", jnp.zeros((cin, c4), f32))
    ssc_raw = raw.get("ssc", jnp.ones((1, c4), f32))
    bsc_raw = raw.get("bsc", jnp.zeros((1, c4), f32))
    wsc = pad_mat(wsc_raw.astype(f32) * ssc_raw.astype(f32), cp, c4p).astype(bf16)

    return dict(
        w1=w1, b1=pad_bias(raw["b1"], pp),
        w2=w2, b2=pad_bias(raw["b2"], pp),
        w3=w3, b3=pad_bias(raw["b3"], c4p),
        wsc=wsc, bsc=pad_bias(bsc_raw, c4p),
        cin=cin, planes=planes, c4=c4)


def to_padded_nhwc(x_nchw):
    """NCHW f32 -> lane-padded NHWC bf16 (once at network/stage entry)."""
    n, c, h, w = x_nchw.shape
    cp = _round_up(c, _LANE)
    x = jnp.transpose(x_nchw, (0, 2, 3, 1))
    x = jnp.pad(x, ((0, 0), (0, 0), (0, 0), (0, cp - c)))
    return x.astype(jnp.bfloat16)


def from_padded_nhwc(x_nhwc, channels):
    """Lane-padded NHWC bf16 -> NCHW f32 (once at network/stage exit)."""
    return jnp.transpose(x_nhwc[..., :channels].astype(jnp.float32), (0, 3, 1, 2))


def bottleneck_block(x_padded, prep, *, stride=1, images_per_step=None,
                     h_chunk_in=None, h_chunk_out=None):
    """One Bottleneck block on lane-padded NHWC bf16; returns same layout."""
    assert x_padded.ndim == 4 and x_padded.dtype == jnp.bfloat16
    N, H, W, Cp = x_padded.shape
    assert Cp % _LANE == 0 and Cp == prep["w1"].shape[0]
    Pp = prep["w1"].shape[1]
    C4p = prep["w3"].shape[1]
    cin, c4 = prep["cin"], prep["c4"]
    assert stride in (1, 2)
    has_proj = (stride != 1) or (cin != c4)
    if not has_proj:
        assert Cp == C4p, "identity shortcut requires matching padded channels"
    if stride == 2:
        assert H % 2 == 0 and W % 2 == 0
    Ho = (H - 1) // stride + 1
    Wo = (W - 1) // stride + 1

    Nb = (images_per_step if images_per_step is not None
          else _pick_images_per_step(N, Ho, Wo))
    assert N % Nb == 0
    hc_in = h_chunk_in if h_chunk_in is not None else _pick_h_chunk(H, Nb * W)
    hc_out = h_chunk_out if h_chunk_out is not None else _pick_h_chunk(Ho, Nb * Wo)
    assert H % hc_in == 0 and Ho % hc_out == 0

    # stride-2: fold the W parity into the lane axis (free row-major reshape).
    x_call = x_padded if stride == 1 else x_padded.reshape(N, H, Wo, 2 * Cp)

    weights = [prep["w1"], prep["b1"], prep["w2"], prep["b2"],
               prep["w3"], prep["b3"], prep["wsc"], prep["bsc"]]

    def full_spec(a):
        nd = a.ndim
        return pl.BlockSpec(a.shape, lambda n, _nd=nd: (0,) * _nd)

    kernel = functools.partial(
        _bottleneck_kernel, H=H, W=W, stride=stride, has_proj=has_proj,
        hc_in=hc_in, hc_out=hc_out)

    out = pl.pallas_call(
        kernel,
        out_shape=jax.ShapeDtypeStruct((N, Ho, Wo, C4p), jnp.bfloat16),
        grid_spec=pltpu.PrefetchScalarGridSpec(
            num_scalar_prefetch=0,
            grid=(N // Nb,),
            in_specs=[pl.BlockSpec((Nb,) + x_call.shape[1:],
                                   lambda n: (n, 0, 0, 0))]
                     + [full_spec(a) for a in weights],
            out_specs=pl.BlockSpec((Nb, Ho, Wo, C4p), lambda n: (n, 0, 0, 0)),
            scratch_shapes=[
                pltpu.VMEM((Nb, H + 2, Wo, 3 * Pp), jnp.bfloat16),  # kw-scatter
            ],
        ),
        compiler_params=pltpu.CompilerParams(
            dimension_semantics=("parallel",),   # batch grid -> both TCs (v7x)
            vmem_limit_bytes=_vmem_limit_bytes(),
        ),
    )(x_call, *weights)
    return out


def bottleneck_forward(x_nchw, raw_params, *, stride=1, images_per_step=None,
                       h_chunk_in=None, h_chunk_out=None):
    """Convenience single-block wrapper (layout conversion at the boundary)."""
    prep = prepare_bottleneck_params(raw_params)
    x = to_padded_nhwc(x_nchw)
    y = bottleneck_block(x, prep, stride=stride, images_per_step=images_per_step,
                         h_chunk_in=h_chunk_in, h_chunk_out=h_chunk_out)
    return from_padded_nhwc(y, prep["c4"])


def bottleneck_ref(x_nchw, p, *, stride=1):
    """Pure-JAX reference with matching bf16-operand / f32-accumulate math."""
    bf16, f32 = jnp.bfloat16, jnp.float32
    x = jnp.transpose(x_nchw, (0, 2, 3, 1)).astype(bf16)
    cin = x.shape[-1]
    c4 = p["w3"].shape[1]
    has_proj = (stride != 1) or (cin != c4)
    bn = lambda y, s, b: y * s.reshape(1, 1, 1, -1) + b.reshape(1, 1, 1, -1)
    y = jnp.einsum("nhwc,cd->nhwd", x, p["w1"].astype(bf16),
                   preferred_element_type=f32)
    y = jax.nn.relu(bn(y, p["s1"], p["b1"]))
    y = lax.conv_general_dilated(y.astype(bf16), p["w2"].astype(bf16),
                                 (stride, stride), ((1, 1), (1, 1)),
                                 dimension_numbers=("NHWC", "HWIO", "NHWC"),
                                 preferred_element_type=f32)
    y = jax.nn.relu(bn(y, p["s2"], p["b2"]))
    y = jnp.einsum("nhwc,cd->nhwd", y.astype(bf16), p["w3"].astype(bf16),
                   preferred_element_type=f32)
    y = bn(y, p["s3"], p["b3"])
    if has_proj:
        sc = jnp.einsum("nhwc,cd->nhwd", x[:, ::stride, ::stride, :],
                        p["wsc"].astype(bf16), preferred_element_type=f32)
        sc = bn(sc, p["ssc"], p["bsc"])
    else:
        sc = x.astype(f32)
    out = jax.nn.relu(y + sc)
    return jnp.transpose(out, (0, 3, 1, 2))


def init_params(key, in_planes, planes, expansion=4):
    c4 = expansion * planes
    keys = jax.random.split(key, 8)

    def bn_fold(k, c):
        k1, k2, k3, k4 = jax.random.split(k, 4)
        gamma = 1.0 + 0.1 * jax.random.normal(k1, (c,), jnp.float32)
        beta = 0.1 * jax.random.normal(k2, (c,), jnp.float32)
        mean = 0.1 * jax.random.normal(k3, (c,), jnp.float32)
        var = 0.5 + jax.random.uniform(k4, (c,), jnp.float32)
        scale = gamma / jnp.sqrt(var + 1e-5)
        bias = beta - mean * scale
        return scale.reshape(1, c), bias.reshape(1, c)

    p = {}
    # 1x1 conv weights stored pre-transposed as (Cin, Cout); 3x3 as HWIO.
    p["w1"] = 0.1 * jax.random.normal(keys[0], (in_planes, planes), jnp.float32)
    p["w2"] = 0.1 * jax.random.normal(keys[1], (3, 3, planes, planes), jnp.float32)
    p["w3"] = 0.1 * jax.random.normal(keys[2], (planes, c4), jnp.float32)
    p["wsc"] = 0.1 * jax.random.normal(keys[3], (in_planes, c4), jnp.float32)
    p["s1"], p["b1"] = bn_fold(keys[4], planes)
    p["s2"], p["b2"] = bn_fold(keys[5], planes)
    p["s3"], p["b3"] = bn_fold(keys[6], c4)
    p["ssc"], p["bsc"] = bn_fold(keys[7], c4)
    return p


if __name__ == "__main__":
    key = jax.random.PRNGKey(0)

    def check(name, out, ref, rel_tol):
        assert out.shape == ref.shape, (name, out.shape, ref.shape)
        err = float(jnp.max(jnp.abs(out - ref)))
        scale = max(1.0, float(jnp.max(jnp.abs(ref))))
        assert err <= rel_tol * scale, (
            f"{name}: max err {err:.4f} > tol {rel_tol * scale:.4f}")

    # ---- single Bottleneck blocks (projection / identity / stride-2) -------
    configs = [
        # name,          N, in_pl, planes, H,  W,  s, Nb, hc_in, hc_out
        ("proj stride1", 8, 16,    8,      16, 16, 1, 2,  8,     8),
        ("identity",     4, 32,    8,      16, 16, 1, 2,  16,    16),
        ("proj stride2", 4, 32,    16,     16, 16, 2, 2,  8,     4),
    ]
    for name, n, cin, planes, h, w, s, nb, hin, hout in configs:
        key, kx, kp = jax.random.split(key, 3)
        x = jax.random.normal(kx, (n, cin, h, w), jnp.float32)     # NCHW
        p = init_params(kp, cin, planes)
        out = jax.block_until_ready(
            bottleneck_forward(x, p, stride=s, images_per_step=nb,
                               h_chunk_in=hin, h_chunk_out=hout))
        ref = bottleneck_ref(x, p, stride=s)
        assert out.shape == (n, 4 * planes, h // s, w // s), (name, out.shape)
        check(name, out, ref, 2.5e-2)

    # ---- a 2-block stage kept in lane-padded NHWC bf16 between blocks ------
    key, kx, kp1, kp2 = jax.random.split(key, 4)
    n, cin, planes, h, w = 4, 32, 16, 16, 16
    x = jax.random.normal(kx, (n, cin, h, w), jnp.float32)
    p1 = init_params(kp1, cin, planes)              # 32 -> 64, stride 2, projection
    p2 = init_params(kp2, 4 * planes, planes)       # 64 -> 64, identity
    prep1 = prepare_bottleneck_params(p1)
    prep2 = prepare_bottleneck_params(p2)
    xp = to_padded_nhwc(x)                          # layout change once at entry
    y = bottleneck_block(xp, prep1, stride=2, images_per_step=2)
    y = bottleneck_block(y, prep2, stride=1, images_per_step=2)
    out = jax.block_until_ready(from_padded_nhwc(y, 4 * planes))   # once at exit
    ref = bottleneck_ref(bottleneck_ref(x, p1, stride=2), p2, stride=1)
    check("2-block stage", out, ref, 5e-2)

    print("KERNEL_OK")
</pallas_src>

<mosaic_0001>
module attributes {stable_mosaic.version = 11 : i64} {
  func.func @_bottleneck_kernel(%arg0: i32, %arg1: memref<2x16x16x128xbf16, #tpu.memory_space<vmem>>, %arg2: memref<128x128xbf16, #tpu.memory_space<vmem>>, %arg3: memref<1x128xf32, #tpu.memory_space<vmem>>, %arg4: memref<3x384x128xbf16, #tpu.memory_space<vmem>>, %arg5: memref<1x128xf32, #tpu.memory_space<vmem>>, %arg6: memref<128x128xbf16, #tpu.memory_space<vmem>>, %arg7: memref<1x128xf32, #tpu.memory_space<vmem>>, %arg8: memref<128x128xbf16, #tpu.memory_space<vmem>>, %arg9: memref<1x128xf32, #tpu.memory_space<vmem>>, %arg10: memref<2x16x16x128xbf16, #tpu.memory_space<vmem>>, %arg11: memref<2x18x16x384xbf16, #tpu.memory_space<vmem>>) attributes {dimension_semantics = [#tpu.dimension_semantics<parallel>], iteration_bounds = array<i64: 4>, scalar_prefetch = 0 : i64, scratch_operands = 1 : i64, tpu.core_type = #tpu.core_type<tc>, window_params = [{transform_indices = @transform_0, window_bounds = array<i64: 2, 16, 16, 128>}, {pipeline_mode = #tpu.pipeline_mode<synchronous>, transform_indices = @transform_1, window_bounds = array<i64: 128, 128>}, {pipeline_mode = #tpu.pipeline_mode<synchronous>, transform_indices = @transform_2, window_bounds = array<i64: 1, 128>}, {pipeline_mode = #tpu.pipeline_mode<synchronous>, transform_indices = @transform_3, window_bounds = array<i64: 3, 384, 128>}, {pipeline_mode = #tpu.pipeline_mode<synchronous>, transform_indices = @transform_4, window_bounds = array<i64: 1, 128>}, {pipeline_mode = #tpu.pipeline_mode<synchronous>, transform_indices = @transform_5, window_bounds = array<i64: 128, 128>}, {pipeline_mode = #tpu.pipeline_mode<synchronous>, transform_indices = @transform_6, window_bounds = array<i64: 1, 128>}, {pipeline_mode = #tpu.pipeline_mode<synchronous>, transform_indices = @transform_7, window_bounds = array<i64: 128, 128>}, {pipeline_mode = #tpu.pipeline_mode<synchronous>, transform_indices = @transform_8, window_bounds = array<i64: 1, 128>}, {transform_indices = @transform_9, window_bounds = array<i64: 2, 16, 16, 128>}]} {
    %cst = arith.constant 0.000000e+00 : bf16
    %0 = vector.broadcast %cst : bf16 to vector<2x1x16x384xbf16>
    %c0 = arith.constant 0 : index
    %c0_0 = arith.constant 0 : index
    %c0_1 = arith.constant 0 : index
    %c0_2 = arith.constant 0 : index
    %1 = vector.load %arg11[%c0, %c0_0, %c0_1, %c0_2] : memref<2x18x16x384xbf16, #tpu.memory_space<vmem>>, vector<2x1x16x384xbf16>
    tpu.vector_store %arg11[%c0, %c0_0, %c0_1, %c0_2], %0 {strides = array<i32>} : memref<2x18x16x384xbf16, #tpu.memory_space<vmem>>, vector<2x1x16x384xbf16>,
    %cst_3 = arith.constant 0.000000e+00 : bf16
    %2 = vector.broadcast %cst_3 : bf16 to vector<2x1x16x384xbf16>
    %c0_4 = arith.constant 0 : index
    %c17 = arith.constant 17 : index
    %c0_5 = arith.constant 0 : index
    %c0_6 = arith.constant 0 : index
    %3 = vector.load %arg11[%c0_4, %c17, %c0_5, %c0_6] : memref<2x18x16x384xbf16, #tpu.memory_space<vmem>>, vector<2x1x16x384xbf16>
    tpu.vector_store %arg11[%c0_4, %c17, %c0_5, %c0_6], %2 {strides = array<i32>} : memref<2x18x16x384xbf16, #tpu.memory_space<vmem>>, vector<2x1x16x384xbf16>,
    %cst_7 = arith.constant 0.000000e+00 : bf16
    %4 = vector.broadcast %cst_7 : bf16 to vector<2x18x1x128xbf16>
    %c0_8 = arith.constant 0 : index
    %c0_9 = arith.constant 0 : index
    %c0_10 = arith.constant 0 : index
    %c0_11 = arith.constant 0 : index
    %5 = vector.load %arg11[%c0_8, %c0_9, %c0_10, %c0_11] : memref<2x18x16x384xbf16, #tpu.memory_space<vmem>>, vector<2x18x1x128xbf16>
    tpu.vector_store %arg11[%c0_8, %c0_9, %c0_10, %c0_11], %4 {strides = array<i32>} : memref<2x18x16x384xbf16, #tpu.memory_space<vmem>>, vector<2x18x1x128xbf16>,
    %cst_12 = arith.constant 0.000000e+00 : bf16
    %6 = vector.broadcast %cst_12 : bf16 to vector<2x18x1x128xbf16>
    %c0_13 = arith.constant 0 : index
    %c0_14 = arith.constant 0 : index
    %c15 = arith.constant 15 : index
    %c256 = arith.constant 256 : index
    %7 = vector.load %arg11[%c0_13, %c0_14, %c15, %c256] : memref<2x18x16x384xbf16, #tpu.memory_space<vmem>>, vector<2x18x1x128xbf16>
    tpu.vector_store %arg11[%c0_13, %c0_14, %c15, %c256], %6 {strides = array<i32>} : memref<2x18x16x384xbf16, #tpu.memory_space<vmem>>, vector<2x18x1x128xbf16>,
    %c0_i32 = arith.constant 0 : i32
    %c2_i32 = arith.constant 2 : i32
    %8 = arith.addi %c0_i32, %c2_i32 : i32
    %c1_i32 = arith.constant 1 : i32
    scf.for %arg12 = %c0_i32 to %8 step %c1_i32  : i32 {
      %c8_i32 = arith.constant 8 : i32
      %10 = arith.muli %arg12, %c8_i32 : i32
      %11 = tpu.assume_multiple %10, 8 : i32
      %c1_i32_20 = arith.constant 1 : i32
      %12 = arith.addi %11, %c1_i32_20 : i32
      %c0_21 = arith.constant 0 : index
      %13 = arith.index_cast %11 : i32 to index
      %c0_22 = arith.constant 0 : index
      %c0_23 = arith.constant 0 : index
      %14 = vector.load %arg1[%c0_21, %13, %c0_22, %c0_23] : memref<2x16x16x128xbf16, #tpu.memory_space<vmem>>, vector<2x8x16x128xbf16>
      %15 = vector.shape_cast %14 : vector<2x8x16x128xbf16> to vector<256x128xbf16>
      %c0_24 = arith.constant 0 : index
      %c0_25 = arith.constant 0 : index
      %16 = vector.load %arg2[%c0_24, %c0_25] : memref<128x128xbf16, #tpu.memory_space<vmem>>, vector<128x128xbf16>
      %cst_26 = arith.constant dense<0.000000e+00> : vector<256x128xf32>
      %17 = tpu.matmul %15, %16, %cst_26 {dimension_numbers = #tpu.dot_dimension_numbers<[1], [0], [0], [1], [0, 0, 1, 1], [], []>} : vector<256x128xbf16>, vector<128x128xbf16>, vector<256x128xf32> -> vector<256x128xf32>
      %c0_27 = arith.constant 0 : index
      %c0_28 = arith.constant 0 : index
      %18 = vector.load %arg3[%c0_27, %c0_28] : memref<1x128xf32, #tpu.memory_space<vmem>>, vector<1x128xf32>
      %19 = vector.broadcast %18 : vector<1x128xf32> to vector<256x128xf32>
      %20 = arith.addf %17, %19 : vector<256x128xf32>
      %cst_29 = arith.constant 0.000000e+00 : f32
      %21 = vector.broadcast %cst_29 : f32 to vector<256x128xf32>
      %22 = arith.maximumf %20, %21 : vector<256x128xf32>
      %23 = vector.shape_cast %22 : vector<256x128xf32> to vector<2x8x16x128xf32>
      %24 = arith.truncf %23 : vector<2x8x16x128xf32> to vector<2x8x16x128xbf16>
      %c0_30 = arith.constant 0 : index
      %25 = arith.index_cast %12 : i32 to index
      %c0_31 = arith.constant 0 : index
      %c128 = arith.constant 128 : index
      %26 = vector.load %arg11[%c0_30, %25, %c0_31, %c128] : memref<2x18x16x384xbf16, #tpu.memory_space<vmem>>, vector<2x8x16x128xbf16>
      tpu.vector_store %arg11[%c0_30, %25, %c0_31, %c128], %24 {strides = array<i32>} : memref<2x18x16x384xbf16, #tpu.memory_space<vmem>>, vector<2x8x16x128xbf16>,
      %27 = vector.extract_strided_slice %24 {offsets = [0, 0, 0, 0], sizes = [2, 8, 15, 128], strides = [1, 1, 1, 1]} : vector<2x8x16x128xbf16> to vector<2x8x15x128xbf16>
      %c0_32 = arith.constant 0 : index
      %28 = arith.index_cast %12 : i32 to index
      %c1 = arith.constant 1 : index
      %c0_33 = arith.constant 0 : index
      %29 = vector.load %arg11[%c0_32, %28, %c1, %c0_33] : memref<2x18x16x384xbf16, #tpu.memory_space<vmem>>, vector<2x8x15x128xbf16>
      tpu.vector_store %arg11[%c0_32, %28, %c1, %c0_33], %27 {strides = array<i32>} : memref<2x18x16x384xbf16, #tpu.memory_space<vmem>>, vector<2x8x15x128xbf16>,
      %30 = vector.extract_strided_slice %24 {offsets = [0, 0, 1, 0], sizes = [2, 8, 15, 128], strides = [1, 1, 1, 1]} : vector<2x8x16x128xbf16> to vector<2x8x15x128xbf16>
      %c0_34 = arith.constant 0 : index
      %31 = arith.index_cast %12 : i32 to index
      %c0_35 = arith.constant 0 : index
      %c256_36 = arith.constant 256 : index
      %32 = vector.load %arg11[%c0_34, %31, %c0_35, %c256_36] : memref<2x18x16x384xbf16, #tpu.memory_space<vmem>>, vector<2x8x15x128xbf16>
      tpu.vector_store %arg11[%c0_34, %31, %c0_35, %c256_36], %30 {strides = array<i32>} : memref<2x18x16x384xbf16, #tpu.memory_space<vmem>>, vector<2x8x15x128xbf16>,
    }
    %c2_i32_15 = arith.constant 2 : i32
    %c0_i32_16 = arith.constant 0 : i32
    %c2_i32_17 = arith.constant 2 : i32
    %9 = arith.addi %c0_i32_16, %c2_i32_17 : i32
    %c1_i32_18 = arith.constant 1 : i32
    scf.for %arg12 = %c0_i32_16 to %9 step %c1_i32_18  : i32 {
      %c8_i32 = arith.constant 8 : i32
      %10 = arith.muli %arg12, %c8_i32 : i32
      %11 = tpu.assume_multiple %10, 8 : i32
      %c0_i32_20 = arith.constant 0 : i32
      %12 = arith.addi %11, %c0_i32_20 : i32
      %c0_21 = arith.constant 0 : index
      %13 = arith.index_cast %12 : i32 to index
      %c0_22 = arith.constant 0 : index
      %c0_23 = arith.constant 0 : index
      %14 = vector.load %arg11[%c0_21, %13, %c0_22, %c0_23] : memref<2x18x16x384xbf16, #tpu.memory_space<vmem>>, vector<2x8x16x384xbf16>
      %15 = vector.shape_cast %14 : vector<2x8x16x384xbf16> to vector<256x384xbf16>
      %c0_24 = arith.constant 0 : index
      %c0_25 = arith.constant 0 : index
      %c0_26 = arith.constant 0 : index
      %16 = vector.load %arg4[%c0_24, %c0_25, %c0_26] : memref<3x384x128xbf16, #tpu.memory_space<vmem>>, vector<1x384x128xbf16>
      %17 = vector.shape_cast %16 : vector<1x384x128xbf16> to vector<384x128xbf16>
      %cst_27 = arith.constant dense<0.000000e+00> : vector<256x128xf32>
      %18 = tpu.matmul %15, %17, %cst_27 {dimension_numbers = #tpu.dot_dimension_numbers<[1], [0], [0], [1], [0, 0, 1, 1], [], []>} : vector<256x384xbf16>, vector<384x128xbf16>, vector<256x128xf32> -> vector<256x128xf32>
      %c1_i32_28 = arith.constant 1 : i32
      %19 = arith.addi %11, %c1_i32_28 : i32
      %c0_29 = arith.constant 0 : index
      %20 = arith.index_cast %19 : i32 to index
      %c0_30 = arith.constant 0 : index
      %c0_31 = arith.constant 0 : index
      %21 = vector.load %arg11[%c0_29, %20, %c0_30, %c0_31] : memref<2x18x16x384xbf16, #tpu.memory_space<vmem>>, vector<2x8x16x384xbf16>
      %22 = vector.shape_cast %21 : vector<2x8x16x384xbf16> to vector<256x384xbf16>
      %c1 = arith.constant 1 : index
      %c0_32 = arith.constant 0 : index
      %c0_33 = arith.constant 0 : index
      %23 = vector.load %arg4[%c1, %c0_32, %c0_33] : memref<3x384x128xbf16, #tpu.memory_space<vmem>>, vector<1x384x128xbf16>
      %24 = vector.shape_cast %23 : vector<1x384x128xbf16> to vector<384x128xbf16>
      %cst_34 = arith.constant dense<0.000000e+00> : vector<256x128xf32>
      %25 = tpu.matmul %22, %24, %cst_34 {dimension_numbers = #tpu.dot_dimension_numbers<[1], [0], [0], [1], [0, 0, 1, 1], [], []>} : vector<256x384xbf16>, vector<384x128xbf16>, vector<256x128xf32> -> vector<256x128xf32>
      %26 = arith.addf %18, %25 : vector<256x128xf32>
      %c2_i32_35 = arith.constant 2 : i32
      %27 = arith.addi %11, %c2_i32_35 : i32
      %c0_36 = arith.constant 0 : index
      %28 = arith.index_cast %27 : i32 to index
      %c0_37 = arith.constant 0 : index
      %c0_38 = arith.constant 0 : index
      %29 = vector.load %arg11[%c0_36, %28, %c0_37, %c0_38] : memref<2x18x16x384xbf16, #tpu.memory_space<vmem>>, vector<2x8x16x384xbf16>
      %30 = vector.shape_cast %29 : vector<2x8x16x384xbf16> to vector<256x384xbf16>
      %c2 = arith.constant 2 : index
      %c0_39 = arith.constant 0 : index
      %c0_40 = arith.constant 0 : index
      %31 = vector.load %arg4[%c2, %c0_39, %c0_40] : memref<3x384x128xbf16, #tpu.memory_space<vmem>>, vector<1x384x128xbf16>
      %32 = vector.shape_cast %31 : vector<1x384x128xbf16> to vector<384x128xbf16>
      %cst_41 = arith.constant dense<0.000000e+00> : vector<256x128xf32>
      %33 = tpu.matmul %30, %32, %cst_41 {dimension_numbers = #tpu.dot_dimension_numbers<[1], [0], [0], [1], [0, 0, 1, 1], [], []>} : vector<256x384xbf16>, vector<384x128xbf16>, vector<256x128xf32> -> vector<256x128xf32>
      %34 = arith.addf %26, %33 : vector<256x128xf32>
      %c0_42 = arith.constant 0 : index
      %c0_43 = arith.constant 0 : index
      %35 = vector.load %arg5[%c0_42, %c0_43] : memref<1x128xf32, #tpu.memory_space<vmem>>, vector<1x128xf32>
      %36 = vector.broadcast %35 : vector<1x128xf32> to vector<256x128xf32>
      %37 = arith.addf %34, %36 : vector<256x128xf32>
      %cst_44 = arith.constant 0.000000e+00 : f32
      %38 = vector.broadcast %cst_44 : f32 to vector<256x128xf32>
      %39 = arith.maximumf %37, %38 : vector<256x128xf32>
      %40 = arith.truncf %39 : vector<256x128xf32> to vector<256x128xbf16>
      %c0_45 = arith.constant 0 : index
      %c0_46 = arith.constant 0 : index
      %41 = vector.load %arg6[%c0_45, %c0_46] : memref<128x128xbf16, #tpu.memory_space<vmem>>, vector<128x128xbf16>
      %cst_47 = arith.constant dense<0.000000e+00> : vector<256x128xf32>
      %42 = tpu.matmul %40, %41, %cst_47 {dimension_numbers = #tpu.dot_dimension_numbers<[1], [0], [0], [1], [0, 0, 1, 1], [], []>} : vector<256x128xbf16>, vector<128x128xbf16>, vector<256x128xf32> -> vector<256x128xf32>
      %c0_48 = arith.constant 0 : index
      %c0_49 = arith.constant 0 : index
      %43 = vector.load %arg7[%c0_48, %c0_49] : memref<1x128xf32, #tpu.memory_space<vmem>>, vector<1x128xf32>
      %44 = vector.broadcast %43 : vector<1x128xf32> to vector<256x128xf32>
      %45 = arith.addf %42, %44 : vector<256x128xf32>
      %c0_50 = arith.constant 0 : index
      %46 = arith.index_cast %11 : i32 to index
      %c0_51 = arith.constant 0 : index
      %c0_52 = arith.constant 0 : index
      %47 = vector.load %arg1[%c0_50, %46, %c0_51, %c0_52] : memref<2x16x16x128xbf16, #tpu.memory_space<vmem>>, vector<2x8x16x128xbf16>
      %48 = vector.shape_cast %47 : vector<2x8x16x128xbf16> to vector<256x128xbf16>
      %c0_53 = arith.constant 0 : index
      %c0_54 = arith.constant 0 : index
      %49 = vector.load %arg8[%c0_53, %c0_54] : memref<128x128xbf16, #tpu.memory_space<vmem>>, vector<128x128xbf16>
      %cst_55 = arith.constant dense<0.000000e+00> : vector<256x128xf32>
      %50 = tpu.matmul %48, %49, %cst_55 {dimension_numbers = #tpu.dot_dimension_numbers<[1], [0], [0], [1], [0, 0, 1, 1], [], []>} : vector<256x128xbf16>, vector<128x128xbf16>, vector<256x128xf32> -> vector<256x128xf32>
      %c0_56 = arith.constant 0 : index
      %c0_57 = arith.constant 0 : index
      %51 = vector.load %arg9[%c0_56, %c0_57] : memref<1x128xf32, #tpu.memory_space<vmem>>, vector<1x128xf32>
      %52 = vector.broadcast %51 : vector<1x128xf32> to vector<256x128xf32>
      %53 = arith.addf %50, %52 : vector<256x128xf32>
      %54 = arith.addf %45, %53 : vector<256x128xf32>
      %cst_58 = arith.constant 0.000000e+00 : f32
      %55 = vector.broadcast %cst_58 : f32 to vector<256x128xf32>
      %56 = arith.maximumf %54, %55 : vector<256x128xf32>
      %57 = vector.shape_cast %56 : vector<256x128xf32> to vector<2x8x16x128xf32>
      %58 = arith.truncf %57 : vector<2x8x16x128xf32> to vector<2x8x16x128xbf16>
      %c0_59 = arith.constant 0 : index
      %59 = arith.index_cast %11 : i32 to index
      %c0_60 = arith.constant 0 : index
      %c0_61 = arith.constant 0 : index
      %60 = vector.load %arg10[%c0_59, %59, %c0_60, %c0_61] : memref<2x16x16x128xbf16, #tpu.memory_space<vmem>>, vector<2x8x16x128xbf16>
      tpu.vector_store %arg10[%c0_59, %59, %c0_60, %c0_61], %58 {strides = array<i32>} : memref<2x16x16x128xbf16, #tpu.memory_space<vmem>>, vector<2x8x16x128xbf16>,
    }
    %c2_i32_19 = arith.constant 2 : i32
    return
  }
  func.func @transform_0(%arg0: i32) -> (i32, i32, i32, i32) {
    %c0_i32 = arith.constant 0 : i32
    %c0_i32_0 = arith.constant 0 : i32
    %c0_i32_1 = arith.constant 0 : i32
    %c0_i32_2 = arith.constant 0 : i32
    return %arg0, %c0_i32, %c0_i32_0, %c0_i32_1 : i32, i32, i32, i32
  }
  func.func @transform_1(%arg0: i32) -> (i32, i32) {
    %c0_i32 = arith.constant 0 : i32
    %c0_i32_0 = arith.constant 0 : i32
    %c0_i32_1 = arith.constant 0 : i32
    return %c0_i32, %c0_i32_0 : i32, i32
  }
  func.func @transform_2(%arg0: i32) -> (i32, i32) {
    %c0_i32 = arith.constant 0 : i32
    %c0_i32_0 = arith.constant 0 : i32
    %c0_i32_1 = arith.constant 0 : i32
    return %c0_i32, %c0_i32_0 : i32, i32
  }
  func.func @transform_3(%arg0: i32) -> (i32, i32, i32) {
    %c0_i32 = arith.constant 0 : i32
    %c0_i32_0 = arith.constant 0 : i32
    %c0_i32_1 = arith.constant 0 : i32
    %c0_i32_2 = arith.constant 0 : i32
    return %c0_i32, %c0_i32_0, %c0_i32_1 : i32, i32, i32
  }
  func.func @transform_4(%arg0: i32) -> (i32, i32) {
    %c0_i32 = arith.constant 0 : i32
    %c0_i32_0 = arith.constant 0 : i32
    %c0_i32_1 = arith.constant 0 : i32
    return %c0_i32, %c0_i32_0 : i32, i32
  }
  func.func @transform_5(%arg0: i32) -> (i32, i32) {
    %c0_i32 = arith.constant 0 : i32
    %c0_i32_0 = arith.constant 0 : i32
    %c0_i32_1 = arith.constant 0 : i32
    return %c0_i32, %c0_i32_0 : i32, i32
  }
  func.func @transform_6(%arg0: i32) -> (i32, i32) {
    %c0_i32 = arith.constant 0 : i32
    %c0_i32_0 = arith.constant 0 : i32
    %c0_i32_1 = arith.constant 0 : i32
    return %c0_i32, %c0_i32_0 : i32, i32
  }
  func.func @transform_7(%arg0: i32) -> (i32, i32) {
    %c0_i32 = arith.constant 0 : i32
    %c0_i32_0 = arith.constant 0 : i32
    %c0_i32_1 = arith.constant 0 : i32
    return %c0_i32, %c0_i32_0 : i32, i32
  }
  func.func @transform_8(%arg0: i32) -> (i32, i32) {
    %c0_i32 = arith.constant 0 : i32
    %c0_i32_0 = arith.constant 0 : i32
    %c0_i32_1 = arith.constant 0 : i32
    return %c0_i32, %c0_i32_0 : i32, i32
  }
  func.func @transform_9(%arg0: i32) -> (i32, i32, i32, i32) {
    %c0_i32 = arith.constant 0 : i32
    %c0_i32_0 = arith.constant 0 : i32
    %c0_i32_1 = arith.constant 0 : i32
    %c0_i32_2 = arith.constant 0 : i32
    return %arg0, %c0_i32, %c0_i32_0, %c0_i32_1 : i32, i32, i32, i32
  }
}

</mosaic_0001>

<llo_original>
// kernel: tpu_custom_call.1
$region0: #{tpu_custom_call.1}
  #allocation0 [shape = 'u32[]', space=smem, size = 0x4, offset = 0x4, fixed_abs, tag = 'smem constant byte address 0x4 - core index']
  #allocation1 [shape = 'u32[144,128]{1,0:T(1,128)}', space=vmem, size = 0x12000, scoped, tag = 'internal scratch']
  #allocation2 [shape = 'bf16[2,18,16,384]{3,2,1,0:T(16,128)(2,1)}', space=vmem, size = 0x6c000, scoped, tag = 'scratch operand']
  %s0 = inlined_call_operand.hbm [shape: bf16[8,16,16,128], index: 0, kind: input, shape index: {}]
  %s1 = inlined_call_operand.hbm [shape: bf16[128,128], index: 1, kind: input, shape index: {}]
  %s2 = inlined_call_operand.hbm [shape: f32[1,128], index: 2, kind: input, shape index: {}]
  %s3 = inlined_call_operand.hbm [shape: bf16[3,384,128], index: 3, kind: input, shape index: {}]
  %s4 = inlined_call_operand.hbm [shape: f32[1,128], index: 4, kind: input, shape index: {}]
  %s5 = inlined_call_operand.hbm [shape: bf16[128,128], index: 5, kind: input, shape index: {}]
  %s6 = inlined_call_operand.hbm [shape: f32[1,128], index: 6, kind: input, shape index: {}]
  %s7 = inlined_call_operand.hbm [shape: bf16[128,128], index: 7, kind: input, shape index: {}]
  %s8 = inlined_call_operand.hbm [shape: f32[1,128], index: 8, kind: input, shape index: {}]
  %s9 = inlined_call_operand.hbm [shape: bf16[8,16,16,128], index: 9, kind: output, shape index: {}]
  %s10 = sld [smem:[#allocation0]]
  $region119: #{tpu_custom_call.1} parent=0
    _
  %s12 = ssub.s32 1, %s10
  %s13 = scalar_select 0, %s12, %s10
  $region1: #{tpu_custom_call.1} parent=0
    #allocation3 [shape = 'u8[262144]{0}', space=vmem, size = 0x40000, scoped, tag = 'input window, operand 0']
    #allocation4 [shape = 's32[2]{0}', space=sflag, size = 0x8, scoped, tag = 'scoped memory for tpu_custom_call.1']
    #allocation5 [shape = 's32[2]{0}', space=sflag, size = 0x8, scoped, tag = 'scoped memory for tpu_custom_call.1']
    #allocation6 [shape = 'u8[32768]{0}', space=vmem, size = 0x8000, scoped, tag = 'input window, operand 1, single buffered']
    #allocation7 [shape = 's32[1]{0}', space=sflag, size = 0x4, scoped, tag = 'scoped memory for tpu_custom_call.1']
    #allocation8 [shape = 'u8[512]{0}', space=vmem, size = 0x400, scoped, tag = 'input window, operand 2, single buffered']
    #allocation9 [shape = 'u8[294912]{0}', space=vmem, size = 0x48000, scoped, tag = 'input window, operand 3, single buffered']
    #allocation10 [shape = 's32[1]{0}', space=sflag, size = 0x4, scoped, tag = 'scoped memory for tpu_custom_call.1']
    #allocation11 [shape = 'u8[512]{0}', space=vmem, size = 0x400, scoped, tag = 'input window, operand 4, single buffered']
    #allocation12 [shape = 'u8[32768]{0}', space=vmem, size = 0x8000, scoped, tag = 'input window, operand 5, single buffered']
    #allocation13 [shape = 's32[1]{0}', space=sflag, size = 0x4, scoped, tag = 'scoped memory for tpu_custom_call.1']
    #allocation14 [shape = 'u8[512]{0}', space=vmem, size = 0x400, scoped, tag = 'input window, operand 6, single buffered']
    #allocation15 [shape = 'u8[32768]{0}', space=vmem, size = 0x8000, scoped, tag = 'input window, operand 7, single buffered']
    #allocation16 [shape = 's32[1]{0}', space=sflag, size = 0x4, scoped, tag = 'scoped memory for tpu_custom_call.1']
    #allocation17 [shape = 'u8[512]{0}', space=vmem, size = 0x400, scoped, tag = 'input window, operand 8, single buffered']
    #allocation18 [shape = 'u8[262144]{0}', space=vmem, size = 0x40000, scoped, tag = 'output window, operand 0']
    %14 = vsyncpa [#allocation4], 0
    %s15 = scalar_lea.sflag [#allocation4], 1
    %16 = vsyncpa %s15, 0
    %17 = vsyncpa [#allocation7], 0
    %18 = vsyncpa [#allocation10], 0
    %19 = vsyncpa [#allocation13], 0
    %20 = vsyncpa [#allocation16], 0
    %21 = vsyncpa [#allocation5], 0
    %s22 = scalar_lea.sflag [#allocation5], 1
    %23 = vsyncpa %s22, 0
    loop: start=0, step=1, limit=6
    $region2: #{tpu_custom_call.1} parent=1 // loop_pre_header
      _
    $region3: #{tpu_custom_call.1} parent=1 // loop_header
      %s25 = sphi 0, %s29
      %p26 = scmp.ge.s32.totalorder %s25, 6
      %s35 = sphi 0, %s37
      %s38 = sphi 0, %s35
      %s39 = sphi 0, %s38
      %s55 = sphi 0, %s39
      %s59 = sphi 0, %s59
      %s61 = sphi 0, %s59
      %s62 = sphi 0, %s61
      %s76 = sphi 0, %s62
      %s80 = sphi 0, %s80
      %s82 = sphi 0, %s80
      %s83 = sphi 0, %s82
      %s97 = sphi 0, %s83
      %s101 = sphi 0, %s101
      %s103 = sphi 0, %s101
      %s104 = sphi 0, %s103
      %s118 = sphi 0, %s104
      %s122 = sphi 0, %s122
      %s124 = sphi 0, %s122
      %s125 = sphi 0, %s124
      %s139 = sphi 0, %s125
      %s143 = sphi 0, %s143
      %s145 = sphi 0, %s143
      %s146 = sphi 0, %s145
      %s160 = sphi 0, %s146
      %s164 = sphi 0, %s164
      %s166 = sphi 0, %s164
      %s167 = sphi 0, %s166
      %s181 = sphi 0, %s167
      %s185 = sphi 0, %s185
      %s187 = sphi 0, %s185
      %s188 = sphi 0, %s187
      %s202 = sphi 0, %s188
      %s206 = sphi 0, %s206
      %s208 = sphi 0, %s206
      %s209 = sphi 0, %s208
      %s223 = sphi 0, %s209
      %s229 = sphi 0, %s231
      %s232 = sphi 0, %s229
      %s233 = sphi 0, %s232
      %s249 = sphi 0, %s233
    $region4: #{tpu_custom_call.1} parent=1 // loop_header_branch
      %28 = sbr.rel (%p26) target = $region8
    $region5: #{tpu_custom_call.1} parent=1 // loop_body
      %s30 = ssub.s32 %s25, 1
      %s31 = ssub.s32 %s25, 2
      %s32 = sadd.s32 %s25, 1
      %s33 = ssub.s32 %s25, %s32
      %p34 = scmp.eq.s32.totalorder %s33, 0
      %s36 = sadd.s32 %s35, 1
      %s37 = scalar_select %p34, %s35, %s36
      %p40 = pneg %p34
      %p41 = scmp.eq.s32.totalorder %s25, 3
      %p42 = por %p40, %p41
      %p43 = scmp.ne.s32.totalorder %s35, %s38
      %p44 = scmp.eq.s32.totalorder %s25, 0
      %p45 = por %p43, %p44
      %p46 = scmp.ne.s32.totalorder %s35, %s38
      %p47 = scmp.eq.s32.totalorder %s30, 3
      %p48 = por %p46, %p47
      %p49 = scmp.ne.s32.totalorder %s38, %s39
      %p50 = scmp.eq.s32.totalorder %s30, 0
      %p51 = por %p49, %p50
      %p52 = scmp.ne.s32.totalorder %s38, %s39
      %p53 = scmp.eq.s32.totalorder %s31, 3
      %p54 = por %p52, %p53
      %p56 = scmp.ne.s32.totalorder %s39, %s55
      %p57 = scmp.eq.s32.totalorder %s31, 0
      %p58 = por %p56, %p57
      %s60 = sadd.s32 %s59, 1
      %p63 = scmp.eq.s32.totalorder %s25, 3
      %p64 = scmp.ne.s32.totalorder %s59, %s61
      %p65 = scmp.eq.s32.totalorder %s25, 0
      %p66 = por %p64, %p65
      %p67 = scmp.ne.s32.totalorder %s59, %s61
      %p68 = scmp.eq.s32.totalorder %s30, 3
      %p69 = por %p67, %p68
      %p70 = scmp.ne.s32.totalorder %s61, %s62
      %p71 = scmp.eq.s32.totalorder %s30, 0
      %p72 = por %p70, %p71
      %p73 = scmp.ne.s32.totalorder %s61, %s62
      %p74 = scmp.eq.s32.totalorder %s31, 3
      %p75 = por %p73, %p74
      %p77 = scmp.ne.s32.totalorder %s62, %s76
      %p78 = scmp.eq.s32.totalorder %s31, 0
      %p79 = por %p77, %p78
      %s81 = sadd.s32 %s80, 1
      %p84 = scmp.eq.s32.totalorder %s25, 3
      %p85 = scmp.ne.s32.totalorder %s80, %s82
      %p86 = scmp.eq.s32.totalorder %s25, 0
      %p87 = por %p85, %p86
      %p88 = scmp.ne.s32.totalorder %s80, %s82
      %p89 = scmp.eq.s32.totalorder %s30, 3
      %p90 = por %p88, %p89
      %p91 = scmp.ne.s32.totalorder %s82, %s83
      %p92 = scmp.eq.s32.totalorder %s30, 0
      %p93 = por %p91, %p92
      %p94 = scmp.ne.s32.totalorder %s82, %s83
      %p95 = scmp.eq.s32.totalorder %s31, 3
      %p96 = por %p94, %p95
      %p98 = scmp.ne.s32.totalorder %s83, %s97
      %p99 = scmp.eq.s32.totalorder %s31, 0
      %p100 = por %p98, %p99
      %s102 = sadd.s32 %s101, 1
      %p105 = scmp.eq.s32.totalorder %s25, 3
      %p106 = scmp.ne.s32.totalorder %s101, %s103
      %p107 = scmp.eq.s32.totalorder %s25, 0
      %p108 = por %p106, %p107
      %p109 = scmp.ne.s32.totalorder %s101, %s103
      %p110 = scmp.eq.s32.totalorder %s30, 3
      %p111 = por %p109, %p110
      %p112 = scmp.ne.s32.totalorder %s103, %s104
      %p113 = scmp.eq.s32.totalorder %s30, 0
      %p114 = por %p112, %p113
      %p115 = scmp.ne.s32.totalorder %s103, %s104
      %p116 = scmp.eq.s32.totalorder %s31, 3
      %p117 = por %p115, %p116
      %p119 = scmp.ne.s32.totalorder %s104, %s118
      %p120 = scmp.eq.s32.totalorder %s31, 0
      %p121 = por %p119, %p120
      %s123 = sadd.s32 %s122, 1
      %p126 = scmp.eq.s32.totalorder %s25, 3
      %p127 = scmp.ne.s32.totalorder %s122, %s124
      %p128 = scmp.eq.s32.totalorder %s25, 0
      %p129 = por %p127, %p128
      %p130 = scmp.ne.s32.totalorder %s122, %s124
      %p131 = scmp.eq.s32.totalorder %s30, 3
      %p132 = por %p130, %p131
      %p133 = scmp.ne.s32.totalorder %s124, %s125
      %p134 = scmp.eq.s32.totalorder %s30, 0
      %p135 = por %p133, %p134
      %p136 = scmp.ne.s32.totalorder %s124, %s125
      %p137 = scmp.eq.s32.totalorder %s31, 3
      %p138 = por %p136, %p137
      %p140 = scmp.ne.s32.totalorder %s125, %s139
      %p141 = scmp.eq.s32.totalorder %s31, 0
      %p142 = por %p140, %p141
      %s144 = sadd.s32 %s143, 1
      %p147 = scmp.eq.s32.totalorder %s25, 3
      %p148 = scmp.ne.s32.totalorder %s143, %s145
      %p149 = scmp.eq.s32.totalorder %s25, 0
      %p150 = por %p148, %p149
      %p151 = scmp.ne.s32.totalorder %s143, %s145
      %p152 = scmp.eq.s32.totalorder %s30, 3
      %p153 = por %p151, %p152
      %p154 = scmp.ne.s32.totalorder %s145, %s146
      %p155 = scmp.eq.s32.totalorder %s30, 0
      %p156 = por %p154, %p155
      %p157 = scmp.ne.s32.totalorder %s145, %s146
      %p158 = scmp.eq.s32.totalorder %s31, 3
      %p159 = por %p157, %p158
      %p161 = scmp.ne.s32.totalorder %s146, %s160
      %p162 = scmp.eq.s32.totalorder %s31, 0
      %p163 = por %p161, %p162
      %s165 = sadd.s32 %s164, 1
      %p168 = scmp.eq.s32.totalorder %s25, 3
      %p169 = scmp.ne.s32.totalorder %s164, %s166
      %p170 = scmp.eq.s32.totalorder %s25, 0
      %p171 = por %p169, %p170
      %p172 = scmp.ne.s32.totalorder %s164, %s166
      %p173 = scmp.eq.s32.totalorder %s30, 3
      %p174 = por %p172, %p173
      %p175 = scmp.ne.s32.totalorder %s166, %s167
      %p176 = scmp.eq.s32.totalorder %s30, 0
      %p177 = por %p175, %p176
      %p178 = scmp.ne.s32.totalorder %s166, %s167
      %p179 = scmp.eq.s32.totalorder %s31, 3
      %p180 = por %p178, %p179
      %p182 = scmp.ne.s32.totalorder %s167, %s181
      %p183 = scmp.eq.s32.totalorder %s31, 0
      %p184 = por %p182, %p183
      %s186 = sadd.s32 %s185, 1
      %p189 = scmp.eq.s32.totalorder %s25, 3
      %p190 = scmp.ne.s32.totalorder %s185, %s187
      %p191 = scmp.eq.s32.totalorder %s25, 0
      %p192 = por %p190, %p191
      %p193 = scmp.ne.s32.totalorder %s185, %s187
      %p194 = scmp.eq.s32.totalorder %s30, 3
      %p195 = por %p193, %p194
      %p196 = scmp.ne.s32.totalorder %s187, %s188
      %p197 = scmp.eq.s32.totalorder %s30, 0
      %p198 = por %p196, %p197
      %p199 = scmp.ne.s32.totalorder %s187, %s188
      %p200 = scmp.eq.s32.totalorder %s31, 3
      %p201 = por %p199, %p200
      %p203 = scmp.ne.s32.totalorder %s188, %s202
      %p204 = scmp.eq.s32.totalorder %s31, 0
      %p205 = por %p203, %p204
      %s207 = sadd.s32 %s206, 1
      %p210 = scmp.eq.s32.totalorder %s25, 3
      %p211 = scmp.ne.s32.totalorder %s206, %s208
      %p212 = scmp.eq.s32.totalorder %s25, 0
      %p213 = por %p211, %p212
      %p214 = scmp.ne.s32.totalorder %s206, %s208
      %p215 = scmp.eq.s32.totalorder %s30, 3
      %p216 = por %p214, %p215
      %p217 = scmp.ne.s32.totalorder %s208, %s209
      %p218 = scmp.eq.s32.totalorder %s30, 0
      %p219 = por %p217, %p218
      %p220 = scmp.ne.s32.totalorder %s208, %s209
      %p221 = scmp.eq.s32.totalorder %s31, 3
      %p222 = por %p220, %p221
      %p224 = scmp.ne.s32.totalorder %s209, %s223
      %p225 = scmp.eq.s32.totalorder %s31, 0
      %p226 = por %p224, %p225
      %s227 = ssub.s32 %s25, %s32
      %p228 = scmp.eq.s32.totalorder %s227, 0
      %s230 = sadd.s32 %s229, 1
      %s231 = scalar_select %p228, %s229, %s230
      %p234 = pneg %p228
      %p235 = scmp.eq.s32.totalorder %s25, 3
      %p236 = por %p234, %p235
      %p237 = scmp.ne.s32.totalorder %s229, %s232
      %p238 = scmp.eq.s32.totalorder %s25, 0
      %p239 = por %p237, %p238
      %p240 = scmp.ne.s32.totalorder %s229, %s232
      %p241 = scmp.eq.s32.totalorder %s30, 3
      %p242 = por %p240, %p241
      %p243 = scmp.ne.s32.totalorder %s232, %s233
      %p244 = scmp.eq.s32.totalorder %s30, 0
      %p245 = por %p243, %p244
      %p246 = scmp.ne.s32.totalorder %s232, %s233
      %p247 = scmp.eq.s32.totalorder %s31, 3
      %p248 = por %p246, %p247
      %p250 = scmp.ne.s32.totalorder %s233, %s249
      %p251 = scmp.eq.s32.totalorder %s31, 0
      %p252 = por %p250, %p251
      %p253 = scmp.le.s32.totalorder 1, %s25
      %p254 = scmp.lt.s32.totalorder %s25, 5
      %p255 = pnand %p253, %p254
      %p256 = pneg %p255
      // Predicated region
      $region9: #{tpu_custom_call.1} parent=5 // pred_check
        _
      $region10: #{tpu_custom_call.1} parent=5 // pred_check_branch
        %258 = sbr.rel (%p255) target = $region12
      $region11: #{tpu_custom_call.1} parent=5 // pred_region
        %s259 = ssub.s32 %s25, 1
        // Predicated region
        $region13: #{tpu_custom_call.1} parent=11 // pred_check
          %p260 = pneg %p72
        $region14: #{tpu_custom_call.1} parent=11 // pred_check_branch
          %262 = sbr.rel (%p260) target = $region16
        $region15: #{tpu_custom_call.1} parent=11 // pred_region
          %s264 = ssub.s32 1024, 1024
          %265 = vsyncadd [#allocation7], %s264
          %s266 = sshll.u32 [#allocation6], 4
          %s267 = int_to_ptr.vmem [resolvable:$true] %s266
          %272 = dma.hbm_to_vmem [thread:$0]  %s1, 1024, %s267, [#allocation7], 64, 64, 4
        $region16: #{tpu_custom_call.1} parent=11 // pred_fallthru
          _
        // Predicated region
        $region17: #{tpu_custom_call.1} parent=11 // pred_check
          %p273 = pneg %p93
        $region18: #{tpu_custom_call.1} parent=11 // pred_check_branch
          %275 = sbr.rel (%p273) target = $region20
        $region19: #{tpu_custom_call.1} parent=11 // pred_region
          %s277 = ssub.s32 16, 16
          %278 = vsyncadd [#allocation7], %s277
          %s280 = sshll.u32 [#allocation8], 4
          %s281 = int_to_ptr.vmem [resolvable:$true] %s280
          %283 = dma.hbm_to_vmem [thread:$0]  %s2, 16, %s281, [#allocation7]
        $region20: #{tpu_custom_call.1} parent=11 // pred_fallthru
          _
        // Predicated region
        $region21: #{tpu_custom_call.1} parent=11 // pred_check
          %p284 = pneg %p114
        $region22: #{tpu_custom_call.1} parent=11 // pred_check_branch
          %286 = sbr.rel (%p284) target = $region24
        $region23: #{tpu_custom_call.1} parent=11 // pred_region
          %s288 = ssub.s32 9216, 9216
          %289 = vsyncadd [#allocation10], %s288
          %s290 = sshll.u32 [#allocation9], 4
          %s291 = int_to_ptr.vmem [resolvable:$true] %s290
          %296 = dma.hbm_to_vmem [thread:$0]  %s3, 9216, %s291, [#allocation10], 64, 64, 4
        $region24: #{tpu_custom_call.1} parent=11 // pred_fallthru
          _
        // Predicated region
        $region25: #{tpu_custom_call.1} parent=11 // pred_check
          %p297 = pneg %p135
        $region26: #{tpu_custom_call.1} parent=11 // pred_check_branch
          %299 = sbr.rel (%p297) target = $region28
        $region27: #{tpu_custom_call.1} parent=11 // pred_region
          %s301 = ssub.s32 16, 16
          %302 = vsyncadd [#allocation10], %s301
          %s304 = sshll.u32 [#allocation11], 4
          %s305 = int_to_ptr.vmem [resolvable:$true] %s304
          %307 = dma.hbm_to_vmem [thread:$0]  %s4, 16, %s305, [#allocation10]
        $region28: #{tpu_custom_call.1} parent=11 // pred_fallthru
          _
        // Predicated region
        $region29: #{tpu_custom_call.1} parent=11 // pred_check
          %p308 = pneg %p156
        $region30: #{tpu_custom_call.1} parent=11 // pred_check_branch
          %310 = sbr.rel (%p308) target = $region32
        $region31: #{tpu_custom_call.1} parent=11 // pred_region
          %s312 = ssub.s32 1024, 1024
          %313 = vsyncadd [#allocation13], %s312
          %s314 = sshll.u32 [#allocation12], 4
          %s315 = int_to_ptr.vmem [resolvable:$true] %s314
          %320 = dma.hbm_to_vmem [thread:$0]  %s5, 1024, %s315, [#allocation13], 64, 64, 4
        $region32: #{tpu_custom_call.1} parent=11 // pred_fallthru
          _
        // Predicated region
        $region33: #{tpu_custom_call.1} parent=11 // pred_check
          %p321 = pneg %p177
        $region34: #{tpu_custom_call.1} parent=11 // pred_check_branch
          %323 = sbr.rel (%p321) target = $region36
        $region35: #{tpu_custom_call.1} parent=11 // pred_region
          %s325 = ssub.s32 16, 16
          %326 = vsyncadd [#allocation13], %s325
          %s328 = sshll.u32 [#allocation14], 4
          %s329 = int_to_ptr.vmem [resolvable:$true] %s328
          %331 = dma.hbm_to_vmem [thread:$0]  %s6, 16, %s329, [#allocation13]
        $region36: #{tpu_custom_call.1} parent=11 // pred_fallthru
          _
        // Predicated region
        $region37: #{tpu_custom_call.1} parent=11 // pred_check
          %p332 = pneg %p198
        $region38: #{tpu_custom_call.1} parent=11 // pred_check_branch
          %334 = sbr.rel (%p332) target = $region40
        $region39: #{tpu_custom_call.1} parent=11 // pred_region
          %s336 = ssub.s32 1024, 1024
          %337 = vsyncadd [#allocation16], %s336
          %s338 = sshll.u32 [#allocation15], 4
          %s339 = int_to_ptr.vmem [resolvable:$true] %s338
          %344 = dma.hbm_to_vmem [thread:$0]  %s7, 1024, %s339, [#allocation16], 64, 64, 4
        $region40: #{tpu_custom_call.1} parent=11 // pred_fallthru
          _
        // Predicated region
        $region41: #{tpu_custom_call.1} parent=11 // pred_check
          %p345 = pneg %p219
        $region42: #{tpu_custom_call.1} parent=11 // pred_check_branch
          %347 = sbr.rel (%p345) target = $region44
        $region43: #{tpu_custom_call.1} parent=11 // pred_region
          %s349 = ssub.s32 16, 16
          %350 = vsyncadd [#allocation16], %s349
          %s352 = sshll.u32 [#allocation17], 4
          %s353 = int_to_ptr.vmem [resolvable:$true] %s352
          %355 = dma.hbm_to_vmem [thread:$0]  %s8, 16, %s353, [#allocation16]
        $region44: #{tpu_custom_call.1} parent=11 // pred_fallthru
          _
      $region12: #{tpu_custom_call.1} parent=5 // pred_fallthru
        _
      %p356 = scmp.lt.s32.totalorder %s25, 4
      // Predicated region
      $region45: #{tpu_custom_call.1} parent=5 // pred_check
        %p357 = pneg %p356
      $region46: #{tpu_custom_call.1} parent=5 // pred_check_branch
        %359 = sbr.rel (%p357) target = $region48
      $region47: #{tpu_custom_call.1} parent=5 // pred_region
        // Predicated region
        $region49: #{tpu_custom_call.1} parent=47 // pred_check
          %p360 = pneg %p45
        $region50: #{tpu_custom_call.1} parent=47 // pred_check_branch
          %362 = sbr.rel (%p360) target = $region52
        $region51: #{tpu_custom_call.1} parent=47 // pred_region
          %s363 = sand.u32 %s35, 1
          %s364 = scalar_lea.sflag [#allocation4], %s363
          %s365 = sand.u32 %s35, 1
          %s366 = smul.addr %s365, 256
          %s367 = scalar_lea.vmem [#allocation3], %s366
          %s368 = smul.u32 2, %s25
          %s370 = ssub.s32 4096, 4096
          %371 = vsyncadd %s364, %s370
          %s372 = smul.addr %s368, 32
          %s373 = smul.addr %s372, 64
          %s374 = scalar_lea.hbm %s0, %s373
          %s375 = sshll.u32 %s367, 4
          %s376 = int_to_ptr.vmem [resolvable:$true] %s375
          %381 = dma.hbm_to_vmem [thread:$0]  %s374, 4096, %s376, %s364, 64, 64, 4
        $region52: #{tpu_custom_call.1} parent=47 // pred_fallthru
          _
      $region48: #{tpu_custom_call.1} parent=5 // pred_fallthru
        _
      %p382 = scmp.le.s32.totalorder 1, %s25
      %p383 = scmp.lt.s32.totalorder %s25, 5
      %p384 = pnand %p382, %p383
      %p385 = pneg %p384
      // Predicated region
      $region53: #{tpu_custom_call.1} parent=5 // pred_check
        _
      $region54: #{tpu_custom_call.1} parent=5 // pred_check_branch
        %387 = sbr.rel (%p384) target = $region56
      $region55: #{tpu_custom_call.1} parent=5 // pred_region
        %s388 = ssub.s32 %s25, 1
        %s389 = sand.u32 %s38, 1
        %s390 = scalar_lea.sflag [#allocation4], %s389
        %s391 = sand.u32 %s38, 1
        %s392 = smul.addr %s391, 256
        %s393 = scalar_lea.vmem [#allocation3], %s392
        // Predicated region
        $region57: #{tpu_custom_call.1} parent=55 // pred_check
          %p394 = pneg %p51
        $region58: #{tpu_custom_call.1} parent=55 // pred_check_branch
          %396 = sbr.rel (%p394) target = $region60
        $region59: #{tpu_custom_call.1} parent=55 // pred_region
          %397 = dma.done %s390, 4096
        $region60: #{tpu_custom_call.1} parent=55 // pred_fallthru
          _
        // Predicated region
        $region61: #{tpu_custom_call.1} parent=55 // pred_check
          %p398 = pneg %p72
        $region62: #{tpu_custom_call.1} parent=55 // pred_check_branch
          %400 = sbr.rel (%p398) target = $region64
        $region63: #{tpu_custom_call.1} parent=55 // pred_region
          %401 = dma.done [#allocation7], 1024
        $region64: #{tpu_custom_call.1} parent=55 // pred_fallthru
          _
        // Predicated region
        $region65: #{tpu_custom_call.1} parent=55 // pred_check
          %p402 = pneg %p93
        $region66: #{tpu_custom_call.1} parent=55 // pred_check_branch
          %404 = sbr.rel (%p402) target = $region68
        $region67: #{tpu_custom_call.1} parent=55 // pred_region
          %405 = dma.done [#allocation7], 16
        $region68: #{tpu_custom_call.1} parent=55 // pred_fallthru
          _
        // Predicated region
        $region69: #{tpu_custom_call.1} parent=55 // pred_check
          %p406 = pneg %p114
        $region70: #{tpu_custom_call.1} parent=55 // pred_check_branch
          %408 = sbr.rel (%p406) target = $region72
        $region71: #{tpu_custom_call.1} parent=55 // pred_region
          %409 = dma.done [#allocation10], 9216
        $region72: #{tpu_custom_call.1} parent=55 // pred_fallthru
          _
        // Predicated region
        $region73: #{tpu_custom_call.1} parent=55 // pred_check
          %p410 = pneg %p135
        $region74: #{tpu_custom_call.1} parent=55 // pred_check_branch
          %412 = sbr.rel (%p410) target = $region76
        $region75: #{tpu_custom_call.1} parent=55 // pred_region
          %413 = dma.done [#allocation10], 16
        $region76: #{tpu_custom_call.1} parent=55 // pred_fallthru
          _
        // Predicated region
        $region77: #{tpu_custom_call.1} parent=55 // pred_check
          %p414 = pneg %p156
        $region78: #{tpu_custom_call.1} parent=55 // pred_check_branch
          %416 = sbr.rel (%p414) target = $region80
        $region79: #{tpu_custom_call.1} parent=55 // pred_region
          %417 = dma.done [#allocation13], 1024
        $region80: #{tpu_custom_call.1} parent=55 // pred_fallthru
          _
        // Predicated region
        $region81: #{tpu_custom_call.1} parent=55 // pred_check
          %p418 = pneg %p177
        $region82: #{tpu_custom_call.1} parent=55 // pred_check_branch
          %420 = sbr.rel (%p418) target = $region84
        $region83: #{tpu_custom_call.1} parent=55 // pred_region
          %421 = dma.done [#allocation13], 16
        $region84: #{tpu_custom_call.1} parent=55 // pred_fallthru
          _
        // Predicated region
        $region85: #{tpu_custom_call.1} parent=55 // pred_check
          %p422 = pneg %p198
        $region86: #{tpu_custom_call.1} parent=55 // pred_check_branch
          %424 = sbr.rel (%p422) target = $region88
        $region87: #{tpu_custom_call.1} parent=55 // pred_region
          %425 = dma.done [#allocation16], 1024
        $region88: #{tpu_custom_call.1} parent=55 // pred_fallthru
          _
        // Predicated region
        $region89: #{tpu_custom_call.1} parent=55 // pred_check
          %p426 = pneg %p219
        $region90: #{tpu_custom_call.1} parent=55 // pred_check_branch
          %428 = sbr.rel (%p426) target = $region92
        $region91: #{tpu_custom_call.1} parent=55 // pred_region
          %429 = dma.done [#allocation16], 16
        $region92: #{tpu_custom_call.1} parent=55 // pred_fallthru
          _
        %s430 = sand.u32 %s38, 1
        %s431 = scalar_lea.sflag [#allocation4], %s430
        %s432 = sand.u32 %s38, 1
        %s433 = smul.addr %s432, 256
        %s434 = scalar_lea.vmem [#allocation3], %s433
        %p435 = pneg %p51
        %p436 = pneg %p48
        %p437 = pneg %p72
        %p438 = pneg %p69
        %p439 = pneg %p93
        %p440 = pneg %p90
        %p441 = pneg %p114
        %p442 = pneg %p111
        %p443 = pneg %p135
        %p444 = pneg %p132
        %p445 = pneg %p156
        %p446 = pneg %p153
        %p447 = pneg %p177
        %p448 = pneg %p174
        %p449 = pneg %p198
        %p450 = pneg %p195
        %p451 = pneg %p219
        %p452 = pneg %p216
        %p453 = pneg %p245
        %p454 = pneg %p242
        %s455 = sand.u32 %s232, 1
        %s456 = scalar_lea.sflag [#allocation5], %s455
        %s457 = sand.u32 %s232, 1
        %s458 = smul.addr %s457, 256
        %s459 = scalar_lea.vmem [#allocation18], %s458
        %s460 = smul.u32 2, %s30
        %s461 = smul.u32 2, %s30
        %463 = vst [vmem:[#allocation2] sm:$0xff] 0
        %464 = vst [vmem:[#allocation2 + $0x8] sm:$0xff] 0
        %465 = vst [vmem:[#allocation2 + $0x10] sm:$0xff] 0
        %466 = vst [vmem:[#allocation2 + $0x1b0] sm:$0xff] 0
        %467 = vst [vmem:[#allocation2 + $0x1b8] sm:$0xff] 0
        %468 = vst [vmem:[#allocation2 + $0x1c0] sm:$0xff] 0
        %s469 = scalar_lea.vmem [#allocation2], 408
        %470 = vst [vmem:[%s469] sm:$0xff] 0
        %471 = vst [vmem:[%s469 + $0x8] sm:$0xff] 0
        %472 = vst [vmem:[%s469 + $0x10] sm:$0xff] 0
        %473 = vst [vmem:[%s469 + $0x1b0] sm:$0xff] 0
        %474 = vst [vmem:[%s469 + $0x1b8] sm:$0xff] 0
        %475 = vst [vmem:[%s469 + $0x1c0] sm:$0xff] 0
        %vm476 = vcmask 1040384
        %vm477 = vsmask.f32 256
        %vm478 = vmand %vm476, %vm477
        %v479 = vld [vmem:[#allocation2] sm:$0x1]
        %v480 = vsel %vm478, 0, %v479
        %481 = vst [vmem:[#allocation2] sm:$0x1] %v480
        %v482 = vld [vmem:[#allocation2 + $0x18] sm:$0x1]
        %v483 = vsel %vm478, 0, %v482
        %484 = vst [vmem:[#allocation2 + $0x18] sm:$0x1] %v483
        %v485 = vld [vmem:[#allocation2 + $0x30] sm:$0x1]
        %v486 = vsel %vm478, 0, %v485
        %487 = vst [vmem:[#allocation2 + $0x30] sm:$0x1] %v486
        %v488 = vld [vmem:[#allocation2 + $0x48] sm:$0x1]
        %v489 = vsel %vm478, 0, %v488
        %490 = vst [vmem:[#allocation2 + $0x48] sm:$0x1] %v489
        %v491 = vld [vmem:[#allocation2 + $0x60] sm:$0x1]
        %v492 = vsel %vm478, 0, %v491
        %493 = vst [vmem:[#allocation2 + $0x60] sm:$0x1] %v492
        %v494 = vld [vmem:[#allocation2 + $0x78] sm:$0x1]
        %v495 = vsel %vm478, 0, %v494
        %496 = vst [vmem:[#allocation2 + $0x78] sm:$0x1] %v495
        %v497 = vld [vmem:[#allocation2 + $0x90] sm:$0x1]
        %v498 = vsel %vm478, 0, %v497
        %499 = vst [vmem:[#allocation2 + $0x90] sm:$0x1] %v498
        %v500 = vld [vmem:[#allocation2 + $0xa8] sm:$0x1]
        %v501 = vsel %vm478, 0, %v500
        %502 = vst [vmem:[#allocation2 + $0xa8] sm:$0x1] %v501
        %v503 = vld [vmem:[#allocation2 + $0xc0] sm:$0x1]
        %v504 = vsel %vm478, 0, %v503
        %505 = vst [vmem:[#allocation2 + $0xc0] sm:$0x1] %v504
        %v506 = vld [vmem:[#allocation2 + $0xd8] sm:$0x1]
        %v507 = vsel %vm478, 0, %v506
        %508 = vst [vmem:[#allocation2 + $0xd8] sm:$0x1] %v507
        %v509 = vld [vmem:[#allocation2 + $0xf0] sm:$0x1]
        %v510 = vsel %vm478, 0, %v509
        %511 = vst [vmem:[#allocation2 + $0xf0] sm:$0x1] %v510
        %v512 = vld [vmem:[#allocation2 + $0x108] sm:$0x1]
        %v513 = vsel %vm478, 0, %v512
        %514 = vst [vmem:[#allocation2 + $0x108] sm:$0x1] %v513
        %v515 = vld [vmem:[#allocation2 + $0x120] sm:$0x1]
        %v516 = vsel %vm478, 0, %v515
        %517 = vst [vmem:[#allocation2 + $0x120] sm:$0x1] %v516
        %v518 = vld [vmem:[#allocation2 + $0x138] sm:$0x1]
        %v519 = vsel %vm478, 0, %v518
        %520 = vst [vmem:[#allocation2 + $0x138] sm:$0x1] %v519
        %v521 = vld [vmem:[#allocation2 + $0x150] sm:$0x1]
        %v522 = vsel %vm478, 0, %v521
        %523 = vst [vmem:[#allocation2 + $0x150] sm:$0x1] %v522
        %v524 = vld [vmem:[#allocation2 + $0x168] sm:$0x1]
        %v525 = vsel %vm478, 0, %v524
        %526 = vst [vmem:[#allocation2 + $0x168] sm:$0x1] %v525
        %v527 = vld [vmem:[#allocation2 + $0x180] sm:$0x1]
        %v528 = vsel %vm478, 0, %v527
        %529 = vst [vmem:[#allocation2 + $0x180] sm:$0x1] %v528
        %v530 = vld [vmem:[#allocation2 + $0x198] sm:$0x1]
        %v531 = vsel %vm478, 0, %v530
        %532 = vst [vmem:[#allocation2 + $0x198] sm:$0x1] %v531
        %v533 = vld [vmem:[#allocation2 + $0x1b0] sm:$0x1]
        %v534 = vsel %vm478, 0, %v533
        %535 = vst [vmem:[#allocation2 + $0x1b0] sm:$0x1] %v534
        %v536 = vld [vmem:[#allocation2 + $0x1c8] sm:$0x1]
        %v537 = vsel %vm478, 0, %v536
        %538 = vst [vmem:[#allocation2 + $0x1c8] sm:$0x1] %v537
        %v539 = vld [vmem:[#allocation2 + $0x1e0] sm:$0x1]
        %v540 = vsel %vm478, 0, %v539
        %541 = vst [vmem:[#allocation2 + $0x1e0] sm:$0x1] %v540
        %v542 = vld [vmem:[#allocation2 + $0x1f8] sm:$0x1]
        %v543 = vsel %vm478, 0, %v542
        %544 = vst [vmem:[#allocation2 + $0x1f8] sm:$0x1] %v543
        %v545 = vld [vmem:[#allocation2 + $0x210] sm:$0x1]
        %v546 = vsel %vm478, 0, %v545
        %547 = vst [vmem:[#allocation2 + $0x210] sm:$0x1] %v546
        %v548 = vld [vmem:[#allocation2 + $0x228] sm:$0x1]
        %v549 = vsel %vm478, 0, %v548
        %550 = vst [vmem:[#allocation2 + $0x228] sm:$0x1] %v549
        %v551 = vld [vmem:[#allocation2 + $0x240] sm:$0x1]
        %v552 = vsel %vm478, 0, %v551
        %553 = vst [vmem:[#allocation2 + $0x240] sm:$0x1] %v552
        %v554 = vld [vmem:[#allocation2 + $0x258] sm:$0x1]
        %v555 = vsel %vm478, 0, %v554
        %556 = vst [vmem:[#allocation2 + $0x258] sm:$0x1] %v555
        %v557 = vld [vmem:[#allocation2 + $0x270] sm:$0x1]
        %v558 = vsel %vm478, 0, %v557
        %559 = vst [vmem:[#allocation2 + $0x270] sm:$0x1] %v558
        %v560 = vld [vmem:[#allocation2 + $0x288] sm:$0x1]
        %v561 = vsel %vm478, 0, %v560
        %562 = vst [vmem:[#allocation2 + $0x288] sm:$0x1] %v561
        %v563 = vld [vmem:[#allocation2 + $0x2a0] sm:$0x1]
        %v564 = vsel %vm478, 0, %v563
        %565 = vst [vmem:[#allocation2 + $0x2a0] sm:$0x1] %v564
        %v566 = vld [vmem:[#allocation2 + $0x2b8] sm:$0x1]
        %v567 = vsel %vm478, 0, %v566
        %568 = vst [vmem:[#allocation2 + $0x2b8] sm:$0x1] %v567
        %v569 = vld [vmem:[#allocation2 + $0x2d0] sm:$0x1]
        %v570 = vsel %vm478, 0, %v569
        %571 = vst [vmem:[#allocation2 + $0x2d0] sm:$0x1] %v570
        %v572 = vld [vmem:[#allocation2 + $0x2e8] sm:$0x1]
        %v573 = vsel %vm478, 0, %v572
        %574 = vst [vmem:[#allocation2 + $0x2e8] sm:$0x1] %v573
        %v575 = vld [vmem:[#allocation2 + $0x300] sm:$0x1]
        %v576 = vsel %vm478, 0, %v575
        %577 = vst [vmem:[#allocation2 + $0x300] sm:$0x1] %v576
        %v578 = vld [vmem:[#allocation2 + $0x318] sm:$0x1]
        %v579 = vsel %vm478, 0, %v578
        %580 = vst [vmem:[#allocation2 + $0x318] sm:$0x1] %v579
        %v581 = vld [vmem:[#allocation2 + $0x330] sm:$0x1]
        %v582 = vsel %vm478, 0, %v581
        %583 = vst [vmem:[#allocation2 + $0x330] sm:$0x1] %v582
        %v584 = vld [vmem:[#allocation2 + $0x348] sm:$0x1]
        %v585 = vsel %vm478, 0, %v584
        %586 = vst [vmem:[#allocation2 + $0x348] sm:$0x1] %v585
        %vm587 = vcmask 1047559
        %vm588 = vsmask.f32 7966
        %vm589 = vmand %vm587, %vm588
        %v590 = vld [vmem:[#allocation2 + $0x10] sm:$0x80]
        %v591 = vsel %vm589, 0, %v590
        %592 = vst [vmem:[#allocation2 + $0x10] sm:$0x80] %v591
        %v593 = vld [vmem:[#allocation2 + $0x28] sm:$0x80]
        %v594 = vsel %vm589, 0, %v593
        %595 = vst [vmem:[#allocation2 + $0x28] sm:$0x80] %v594
        %v596 = vld [vmem:[#allocation2 + $0x40] sm:$0x80]
        %v597 = vsel %vm589, 0, %v596
        %598 = vst [vmem:[#allocation2 + $0x40] sm:$0x80] %v597
        %v599 = vld [vmem:[#allocation2 + $0x58] sm:$0x80]
        %v600 = vsel %vm589, 0, %v599
        %601 = vst [vmem:[#allocation2 + $0x58] sm:$0x80] %v600
        %v602 = vld [vmem:[#allocation2 + $0x70] sm:$0x80]
        %v603 = vsel %vm589, 0, %v602
        %604 = vst [vmem:[#allocation2 + $0x70] sm:$0x80] %v603
        %v605 = vld [vmem:[#allocation2 + $0x88] sm:$0x80]
        %v606 = vsel %vm589, 0, %v605
        %607 = vst [vmem:[#allocation2 + $0x88] sm:$0x80] %v606
        %v608 = vld [vmem:[#allocation2 + $0xa0] sm:$0x80]
        %v609 = vsel %vm589, 0, %v608
        %610 = vst [vmem:[#allocation2 + $0xa0] sm:$0x80] %v609
        %v611 = vld [vmem:[#allocation2 + $0xb8] sm:$0x80]
        %v612 = vsel %vm589, 0, %v611
        %613 = vst [vmem:[#allocation2 + $0xb8] sm:$0x80] %v612
        %v614 = vld [vmem:[#allocation2 + $0xd0] sm:$0x80]
        %v615 = vsel %vm589, 0, %v614
        %616 = vst [vmem:[#allocation2 + $0xd0] sm:$0x80] %v615
        %v617 = vld [vmem:[#allocation2 + $0xe8] sm:$0x80]
        %v618 = vsel %vm589, 0, %v617
        %619 = vst [vmem:[#allocation2 + $0xe8] sm:$0x80] %v618
        %v620 = vld [vmem:[#allocation2 + $0x100] sm:$0x80]
        %v621 = vsel %vm589, 0, %v620
        %622 = vst [vmem:[#allocation2 + $0x100] sm:$0x80] %v621
        %v623 = vld [vmem:[#allocation2 + $0x118] sm:$0x80]
        %v624 = vsel %vm589, 0, %v623
        %625 = vst [vmem:[#allocation2 + $0x118] sm:$0x80] %v624
        %v626 = vld [vmem:[#allocation2 + $0x130] sm:$0x80]
        %v627 = vsel %vm589, 0, %v626
        %628 = vst [vmem:[#allocation2 + $0x130] sm:$0x80] %v627
        %v629 = vld [vmem:[#allocation2 + $0x148] sm:$0x80]
        %v630 = vsel %vm589, 0, %v629
        %631 = vst [vmem:[#allocation2 + $0x148] sm:$0x80] %v630
        %v632 = vld [vmem:[#allocation2 + $0x160] sm:$0x80]
        %v633 = vsel %vm589, 0, %v632
        %634 = vst [vmem:[#allocation2 + $0x160] sm:$0x80] %v633
        %v635 = vld [vmem:[#allocation2 + $0x178] sm:$0x80]
        %v636 = vsel %vm589, 0, %v635
        %637 = vst [vmem:[#allocation2 + $0x178] sm:$0x80] %v636
        %v638 = vld [vmem:[#allocation2 + $0x190] sm:$0x80]
        %v639 = vsel %vm589, 0, %v638
        %640 = vst [vmem:[#allocation2 + $0x190] sm:$0x80] %v639
        %v641 = vld [vmem:[#allocation2 + $0x1a8] sm:$0x80]
        %v642 = vsel %vm589, 0, %v641
        %643 = vst [vmem:[#allocation2 + $0x1a8] sm:$0x80] %v642
        %v644 = vld [vmem:[#allocation2 + $0x1c0] sm:$0x80]
        %v645 = vsel %vm589, 0, %v644
        %646 = vst [vmem:[#allocation2 + $0x1c0] sm:$0x80] %v645
        %v647 = vld [vmem:[#allocation2 + $0x1d8] sm:$0x80]
        %v648 = vsel %vm589, 0, %v647
        %649 = vst [vmem:[#allocation2 + $0x1d8] sm:$0x80] %v648
        %v650 = vld [vmem:[#allocation2 + $0x1f0] sm:$0x80]
        %v651 = vsel %vm589, 0, %v650
        %652 = vst [vmem:[#allocation2 + $0x1f0] sm:$0x80] %v651
        %v653 = vld [vmem:[#allocation2 + $0x208] sm:$0x80]
        %v654 = vsel %vm589, 0, %v653
        %655 = vst [vmem:[#allocation2 + $0x208] sm:$0x80] %v654
        %v656 = vld [vmem:[#allocation2 + $0x220] sm:$0x80]
        %v657 = vsel %vm589, 0, %v656
        %658 = vst [vmem:[#allocation2 + $0x220] sm:$0x80] %v657
        %v659 = vld [vmem:[#allocation2 + $0x238] sm:$0x80]
        %v660 = vsel %vm589, 0, %v659
        %661 = vst [vmem:[#allocation2 + $0x238] sm:$0x80] %v660
        %v662 = vld [vmem:[#allocation2 + $0x250] sm:$0x80]
        %v663 = vsel %vm589, 0, %v662
        %664 = vst [vmem:[#allocation2 + $0x250] sm:$0x80] %v663
        %v665 = vld [vmem:[#allocation2 + $0x268] sm:$0x80]
        %v666 = vsel %vm589, 0, %v665
        %667 = vst [vmem:[#allocation2 + $0x268] sm:$0x80] %v666
        %v668 = vld [vmem:[#allocation2 + $0x280] sm:$0x80]
        %v669 = vsel %vm589, 0, %v668
        %670 = vst [vmem:[#allocation2 + $0x280] sm:$0x80] %v669
        %v671 = vld [vmem:[#allocation2 + $0x298] sm:$0x80]
        %v672 = vsel %vm589, 0, %v671
        %673 = vst [vmem:[#allocation2 + $0x298] sm:$0x80] %v672
        %v674 = vld [vmem:[#allocation2 + $0x2b0] sm:$0x80]
        %v675 = vsel %vm589, 0, %v674
        %676 = vst [vmem:[#allocation2 + $0x2b0] sm:$0x80] %v675
        %v677 = vld [vmem:[#allocation2 + $0x2c8] sm:$0x80]
        %v678 = vsel %vm589, 0, %v677
        %679 = vst [vmem:[#allocation2 + $0x2c8] sm:$0x80] %v678
        %v680 = vld [vmem:[#allocation2 + $0x2e0] sm:$0x80]
        %v681 = vsel %vm589, 0, %v680
        %682 = vst [vmem:[#allocation2 + $0x2e0] sm:$0x80] %v681
        %v683 = vld [vmem:[#allocation2 + $0x2f8] sm:$0x80]
        %v684 = vsel %vm589, 0, %v683
        %685 = vst [vmem:[#allocation2 + $0x2f8] sm:$0x80] %v684
        %v686 = vld [vmem:[#allocation2 + $0x310] sm:$0x80]
        %v687 = vsel %vm589, 0, %v686
        %688 = vst [vmem:[#allocation2 + $0x310] sm:$0x80] %v687
        %v689 = vld [vmem:[#allocation2 + $0x328] sm:$0x80]
        %v690 = vsel %vm589, 0, %v689
        %691 = vst [vmem:[#allocation2 + $0x328] sm:$0x80] %v690
        %v692 = vld [vmem:[#allocation2 + $0x340] sm:$0x80]
        %v693 = vsel %vm589, 0, %v692
        %694 = vst [vmem:[#allocation2 + $0x340] sm:$0x80] %v693
        %v695 = vld [vmem:[#allocation2 + $0x358] sm:$0x80]
        %v696 = vsel %vm589, 0, %v695
        %697 = vst [vmem:[#allocation2 + $0x358] sm:$0x80] %v696
        loop: start=0, step=1, limit=2
        $region93: #{tpu_custom_call.1} parent=55 // loop_pre_header
          _
        $region94: #{tpu_custom_call.1} parent=55 // loop_header
          %s699 = sphi 0, %s703
          %p700 = scmp.ge.s32.totalorder %s699, 2
        $region95: #{tpu_custom_call.1} parent=55 // loop_header_branch
          %702 = sbr.rel (%p700) target = $region99
        $region96: #{tpu_custom_call.1} parent=55 // loop_body
          %s704 = smul.u32 %s699, 8
          %s705 = sadd.s32 %s704, 1
          %s706 = smul.u32 %s704, 2
          %s707 = smul.addr %s706, 4
          %s708 = scalar_lea.vmem %s393, %s707 [#allocation3]
          %v709 = vld [vmem:[%s708] sm:$0xf]
          %v710 = vld [vmem:[%s708 + $0x4] sm:$0xf]
          %v711 = vld [vmem:[%s708 + $0x8] sm:$0xf]
          %v712 = vld [vmem:[%s708 + $0xc] sm:$0xf]
          %v713 = vld [vmem:[%s708 + $0x10] sm:$0xf]
          %v714 = vld [vmem:[%s708 + $0x14] sm:$0xf]
          %v715 = vld [vmem:[%s708 + $0x18] sm:$0xf]
          %v716 = vld [vmem:[%s708 + $0x1c] sm:$0xf]
          %v717 = vld [vmem:[%s708 + $0x20] sm:$0xf]
          %v718 = vld [vmem:[%s708 + $0x24] sm:$0xf]
          %v719 = vld [vmem:[%s708 + $0x28] sm:$0xf]
          %v720 = vld [vmem:[%s708 + $0x2c] sm:$0xf]
          %v721 = vld [vmem:[%s708 + $0x30] sm:$0xf]
          %v722 = vld [vmem:[%s708 + $0x34] sm:$0xf]
          %v723 = vld [vmem:[%s708 + $0x38] sm:$0xf]
          %v724 = vld [vmem:[%s708 + $0x3c] sm:$0xf]
          %v725 = vld [vmem:[%s708 + $0x80] sm:$0xf]
          %v726 = vld [vmem:[%s708 + $0x84] sm:$0xf]
          %v727 = vld [vmem:[%s708 + $0x88] sm:$0xf]
          %v728 = vld [vmem:[%s708 + $0x8c] sm:$0xf]
          %v729 = vld [vmem:[%s708 + $0x90] sm:$0xf]
          %v730 = vld [vmem:[%s708 + $0x94] sm:$0xf]
          %v731 = vld [vmem:[%s708 + $0x98] sm:$0xf]
          %v732 = vld [vmem:[%s708 + $0x9c] sm:$0xf]
          %v733 = vld [vmem:[%s708 + $0xa0] sm:$0xf]
          %v734 = vld [vmem:[%s708 + $0xa4] sm:$0xf]
          %v735 = vld [vmem:[%s708 + $0xa8] sm:$0xf]
          %v736 = vld [vmem:[%s708 + $0xac] sm:$0xf]
          %v737 = vld [vmem:[%s708 + $0xb0] sm:$0xf]
          %v738 = vld [vmem:[%s708 + $0xb4] sm:$0xf]
          %v739 = vld [vmem:[%s708 + $0xb8] sm:$0xf]
          %v740 = vld [vmem:[%s708 + $0xbc] sm:$0xf]
          %v741 = vld [vmem:[#allocation6] sm:$0xf]
          %v742 = vld [vmem:[#allocation6 + $0x4] sm:$0xf]
          %v743 = vld [vmem:[#allocation6 + $0x8] sm:$0xf]
          %v744 = vld [vmem:[#allocation6 + $0xc] sm:$0xf]
          %v745 = vld [vmem:[#allocation6 + $0x10] sm:$0xf]
          %v746 = vld [vmem:[#allocation6 + $0x14] sm:$0xf]
          %v747 = vld [vmem:[#allocation6 + $0x18] sm:$0xf]
          %v748 = vld [vmem:[#allocation6 + $0x1c] sm:$0xf]
          %v749 = vld [vmem:[#allocation6 + $0x20] sm:$0xf]
          %v750 = vld [vmem:[#allocation6 + $0x24] sm:$0xf]
          %v751 = vld [vmem:[#allocation6 + $0x28] sm:$0xf]
          %v752 = vld [vmem:[#allocation6 + $0x2c] sm:$0xf]
          %v753 = vld [vmem:[#allocation6 + $0x30] sm:$0xf]
          %v754 = vld [vmem:[#allocation6 + $0x34] sm:$0xf]
          %v755 = vld [vmem:[#allocation6 + $0x38] sm:$0xf]
          %v756 = vld [vmem:[#allocation6 + $0x3c] sm:$0xf]
          %v757 = vld [vmem:[#allocation8] sm:$0x1]
          %v759 = vlaneseq
          %v760 = vshrl.u32 %v759, 7
          %v761 = vsub.s32 0, %v760
          %v762 = vrot.slane %v757, %v761
          %v796 = vunpack.c.l.b16 %v709
          %v797 = vunpack.c.l.b16 %v710
          %v798 = vunpack.c.l.b16 %v711
          %v799 = vunpack.c.l.b16 %v712
          %v800 = vunpack.c.l.b16 %v713
          %v801 = vunpack.c.l.b16 %v714
          %v802 = vunpack.c.l.b16 %v715
          %v803 = vunpack.c.l.b16 %v716
          %v804 = vunpack.c.l.b16 %v717
          %v805 = vunpack.c.l.b16 %v718
          %v806 = vunpack.c.l.b16 %v719
          %v807 = vunpack.c.l.b16 %v720
          %v808 = vunpack.c.l.b16 %v721
          %v809 = vunpack.c.l.b16 %v722
          %v810 = vunpack.c.l.b16 %v723
          %v811 = vunpack.c.l.b16 %v724
          %v812 = vunpack.c.l.b16 %v725
          %v813 = vunpack.c.l.b16 %v726
          %v814 = vunpack.c.l.b16 %v727
          %v815 = vunpack.c.l.b16 %v728
          %v816 = vunpack.c.l.b16 %v729
          %v817 = vunpack.c.l.b16 %v730
          %v818 = vunpack.c.l.b16 %v731
          %v819 = vunpack.c.l.b16 %v732
          %v820 = vunpack.c.l.b16 %v733
          %v821 = vunpack.c.l.b16 %v734
          %v822 = vunpack.c.l.b16 %v735
          %v823 = vunpack.c.l.b16 %v736
          %v824 = vunpack.c.l.b16 %v737
          %v825 = vunpack.c.l.b16 %v738
          %v826 = vunpack.c.l.b16 %v739
          %v827 = vunpack.c.l.b16 %v740
          %v828 = vpack.c.b16 %v797, %v796
          %v829 = vpack.c.b16 %v799, %v798
          %v830 = vpack.c.b16 %v801, %v800
          %v831 = vpack.c.b16 %v803, %v802
          %v832 = vpack.c.b16 %v805, %v804
          %v833 = vpack.c.b16 %v807, %v806
          %v834 = vpack.c.b16 %v809, %v808
          %v835 = vpack.c.b16 %v811, %v810
          %v836 = vpack.c.b16 %v813, %v812
          %v837 = vpack.c.b16 %v815, %v814
          %v838 = vpack.c.b16 %v817, %v816
          %v839 = vpack.c.b16 %v819, %v818
          %v840 = vpack.c.b16 %v821, %v820
          %v841 = vpack.c.b16 %v823, %v822
          %v842 = vpack.c.b16 %v825, %v824
          %v843 = vpack.c.b16 %v827, %v826
          %v876 = vunpack.c.l.b16 %v741
          %v877 = vunpack.c.l.b16 %v742
          %v878 = vunpack.c.l.b16 %v743
          %v879 = vunpack.c.l.b16 %v744
          %v880 = vunpack.c.l.b16 %v745
          %v881 = vunpack.c.l.b16 %v746
          %v882 = vunpack.c.l.b16 %v747
          %v883 = vunpack.c.l.b16 %v748
          %v884 = vunpack.c.l.b16 %v749
          %v885 = vunpack.c.l.b16 %v750
          %v886 = vunpack.c.l.b16 %v751
          %v887 = vunpack.c.l.b16 %v752
          %v888 = vunpack.c.l.b16 %v753
          %v889 = vunpack.c.l.b16 %v754
          %v890 = vunpack.c.l.b16 %v755
          %v891 = vunpack.c.l.b16 %v756
          %v892 = vpack.c.b16 %v877, %v876
          %v893 = vpack.c.b16 %v879, %v878
          %v894 = vpack.c.b16 %v881, %v880
          %v895 = vpack.c.b16 %v883, %v882
          %v896 = vpack.c.b16 %v885, %v884
          %v897 = vpack.c.b16 %v887, %v886
          %v898 = vpack.c.b16 %v889, %v888
          %v899 = vpack.c.b16 %v891, %v890
          %908 = vmatprep.subr.bf16.mxu0 0
          %909 = vmatpush1.bf16.msra.mxu0 %v892
          %910 = vmatprep.subr.bf16.mxu0 0
          %911 = vmatpush1.bf16.msra.mxu0 %v893
          %912 = vmatprep.subr.bf16.mxu0 0
          %913 = vmatpush1.bf16.msra.mxu0 %v894
          %914 = vmatprep.subr.bf16.mxu0 0
          %915 = vmatpush1.bf16.msra.mxu0 %v895
          %916 = vmatprep.subr.bf16.mxu0 0
          %917 = vmatpush1.bf16.msra.mxu0 %v896
          %918 = vmatprep.subr.bf16.mxu0 0
          %919 = vmatpush1.bf16.msra.mxu0 %v897
          %920 = vmatprep.subr.bf16.mxu0 0
          %921 = vmatpush1.bf16.msra.mxu0 %v898
          %922 = vmatprep.subr.bf16.mxu0 0
          %923 = vmatpush1.bf16.msra.mxu0 %v899
          %924 = vmatprep.subr.bf16.mxu0 0
          %925 = vmatpush1.bf16.msra.mxu0 0
          %926 = vmatprep.subr.bf16.mxu0 0
          %927 = vmatpush1.bf16.msra.mxu0 0
          %928 = vmatprep.subr.bf16.mxu0 0
          %929 = vmatpush1.bf16.msra.mxu0 0
          %930 = vmatprep.subr.bf16.mxu0 0
          %931 = vmatpush1.bf16.msra.mxu0 0
          %932 = vmatprep.subr.bf16.mxu0 0
          %933 = vmatpush1.bf16.msra.mxu0 0
          %934 = vmatprep.subr.bf16.mxu0 0
          %935 = vmatpush1.bf16.msra.mxu0 0
          %936 = vmatprep.subr.bf16.mxu0 0
          %937 = vmatpush1.bf16.msra.mxu0 0
          %938 = vmatprep.subr.bf16.mxu0 0
          %939 = vmatpush1.bf16.msra.mxu0 0
          %940 = vmatprep.mubr.bf16.mxu0 0
          %941 = vmatmul.mubr.bf16.gmra.mrb[0].mxu0 %v828
          %v942 = vpop.f32.mrb[0].mxu0
          %v943 = vadd.f32 %v762, %v942
          %v944 = vpop.f32.mrb[0].mxu0
          %v945 = vpop.f32.mrb[0].mxu0
          %v946 = vadd.f32 %v762, %v945
          %v947 = vpop.f32.mrb[0].mxu0
          %948 = vmatprep.mubr.bf16.mxu0 0
          %949 = vmatmul.mubr.bf16.gmra.mrb[0].mxu0 %v829
          %v950 = vpop.f32.mrb[0].mxu0
          %v951 = vadd.f32 %v762, %v950
          %v952 = vpop.f32.mrb[0].mxu0
          %v953 = vpop.f32.mrb[0].mxu0
          %v954 = vadd.f32 %v762, %v953
          %v955 = vpop.f32.mrb[0].mxu0
          %956 = vmatprep.mubr.bf16.mxu0 0
          %957 = vmatmul.mubr.bf16.gmra.mrb[0].mxu0 %v830
          %v958 = vpop.f32.mrb[0].mxu0
          %v959 = vadd.f32 %v762, %v958
          %v960 = vpop.f32.mrb[0].mxu0
          %v961 = vpop.f32.mrb[0].mxu0
          %v962 = vadd.f32 %v762, %v961
          %v963 = vpop.f32.mrb[0].mxu0
          %964 = vmatprep.mubr.bf16.mxu0 0
          %965 = vmatmul.mubr.bf16.gmra.mrb[0].mxu0 %v831
          %v966 = vpop.f32.mrb[0].mxu0
          %v967 = vadd.f32 %v762, %v966
          %v968 = vpop.f32.mrb[0].mxu0
          %v969 = vpop.f32.mrb[0].mxu0
          %v970 = vadd.f32 %v762, %v969
          %v971 = vpop.f32.mrb[0].mxu0
          %972 = vmatprep.mubr.bf16.mxu0 0
          %973 = vmatmul.mubr.bf16.gmra.mrb[0].mxu0 %v832
          %v974 = vpop.f32.mrb[0].mxu0
          %v975 = vadd.f32 %v762, %v974
          %v976 = vpop.f32.mrb[0].mxu0
          %v977 = vpop.f32.mrb[0].mxu0
          %v978 = vadd.f32 %v762, %v977
          %v979 = vpop.f32.mrb[0].mxu0
          %980 = vmatprep.mubr.bf16.mxu0 0
          %981 = vmatmul.mubr.bf16.gmra.mrb[0].mxu0 %v833
          %v982 = vpop.f32.mrb[0].mxu0
          %v983 = vadd.f32 %v762, %v982
          %v984 = vpop.f32.mrb[0].mxu0
          %v985 = vpop.f32.mrb[0].mxu0
          %v986 = vadd.f32 %v762, %v985
          %v987 = vpop.f32.mrb[0].mxu0
          %988 = vmatprep.mubr.bf16.mxu0 0
          %989 = vmatmul.mubr.bf16.gmra.mrb[0].mxu0 %v834
          %v990 = vpop.f32.mrb[0].mxu0
          %v991 = vadd.f32 %v762, %v990
          %v992 = vpop.f32.mrb[0].mxu0
          %v993 = vpop.f32.mrb[0].mxu0
          %v994 = vadd.f32 %v762, %v993
          %v995 = vpop.f32.mrb[0].mxu0
          %996 = vmatprep.mubr.bf16.mxu0 0
          %997 = vmatmul.mubr.bf16.gmra.mrb[0].mxu0 %v835
          %v998 = vpop.f32.mrb[0].mxu0
          %v999 = vadd.f32 %v762, %v998
          %v1000 = vpop.f32.mrb[0].mxu0
          %v1001 = vpop.f32.mrb[0].mxu0
          %v1002 = vadd.f32 %v762, %v1001
          %v1003 = vpop.f32.mrb[0].mxu0
          %1004 = vmatprep.mubr.bf16.mxu0 0
          %1005 = vmatmul.mubr.bf16.gmra.mrb[0].mxu0 %v836
          %v1006 = vpop.f32.mrb[0].mxu0
          %v1007 = vadd.f32 %v762, %v1006
          %v1008 = vpop.f32.mrb[0].mxu0
          %v1009 = vpop.f32.mrb[0].mxu0
          %v1010 = vadd.f32 %v762, %v1009
          %v1011 = vpop.f32.mrb[0].mxu0
          %1012 = vmatprep.mubr.bf16.mxu0 0
          %1013 = vmatmul.mubr.bf16.gmra.mrb[0].mxu0 %v837
          %v1014 = vpop.f32.mrb[0].mxu0
          %v1015 = vadd.f32 %v762, %v1014
          %v1016 = vpop.f32.mrb[0].mxu0
          %v1017 = vpop.f32.mrb[0].mxu0
          %v1018 = vadd.f32 %v762, %v1017
          %v1019 = vpop.f32.mrb[0].mxu0
          %1020 = vmatprep.mubr.bf16.mxu0 0
          %1021 = vmatmul.mubr.bf16.gmra.mrb[0].mxu0 %v838
          %v1022 = vpop.f32.mrb[0].mxu0
          %v1023 = vadd.f32 %v762, %v1022
          %v1024 = vpop.f32.mrb[0].mxu0
          %v1025 = vpop.f32.mrb[0].mxu0
          %v1026 = vadd.f32 %v762, %v1025
          %v1027 = vpop.f32.mrb[0].mxu0
          %1028 = vmatprep.mubr.bf16.mxu0 0
          %1029 = vmatmul.mubr.bf16.gmra.mrb[0].mxu0 %v839
          %v1030 = vpop.f32.mrb[0].mxu0
          %v1031 = vadd.f32 %v762, %v1030
          %v1032 = vpop.f32.mrb[0].mxu0
          %v1033 = vpop.f32.mrb[0].mxu0
          %v1034 = vadd.f32 %v762, %v1033
          %v1035 = vpop.f32.mrb[0].mxu0
          %1036 = vmatprep.mubr.bf16.mxu0 0
          %1037 = vmatmul.mubr.bf16.gmra.mrb[0].mxu0 %v840
          %v1038 = vpop.f32.mrb[0].mxu0
          %v1039 = vadd.f32 %v762, %v1038
          %v1040 = vpop.f32.mrb[0].mxu0
          %v1041 = vpop.f32.mrb[0].mxu0
          %v1042 = vadd.f32 %v762, %v1041
          %v1043 = vpop.f32.mrb[0].mxu0
          %1044 = vmatprep.mubr.bf16.mxu0 0
          %1045 = vmatmul.mubr.bf16.gmra.mrb[0].mxu0 %v841
          %v1046 = vpop.f32.mrb[0].mxu0
          %v1047 = vadd.f32 %v762, %v1046
          %v1048 = vpop.f32.mrb[0].mxu0
          %v1049 = vpop.f32.mrb[0].mxu0
          %v1050 = vadd.f32 %v762, %v1049
          %v1051 = vpop.f32.mrb[0].mxu0
          %1052 = vmatprep.mubr.bf16.mxu0 0
          %1053 = vmatmul.mubr.bf16.gmra.mrb[0].mxu0 %v842
          %v1054 = vpop.f32.mrb[0].mxu0
          %v1055 = vadd.f32 %v762, %v1054
          %v1056 = vpop.f32.mrb[0].mxu0
          %v1057 = vpop.f32.mrb[0].mxu0
          %v1058 = vadd.f32 %v762, %v1057
          %v1059 = vpop.f32.mrb[0].mxu0
          %1060 = vmatprep.mubr.bf16.mxu0 0
          %1061 = vmatmul.mubr.bf16.gmra.mrb[0].mxu0 %v843
          %v1062 = vpop.f32.mrb[0].mxu0
          %v1063 = vadd.f32 %v762, %v1062
          %v1064 = vpop.f32.mrb[0].mxu0
          %v1065 = vpop.f32.mrb[0].mxu0
          %v1066 = vadd.f32 %v762, %v1065
          %v1067 = vpop.f32.mrb[0].mxu0
          %1068 = vdwg.mxu0
          %v1069 = vmax.f32 %v943, 0.0
          %v1070 = vmax.f32 %v946, 0.0
          %v1071 = vmax.f32 %v951, 0.0
          %v1072 = vmax.f32 %v954, 0.0
          %v1073 = vmax.f32 %v959, 0.0
          %v1074 = vmax.f32 %v962, 0.0
          %v1075 = vmax.f32 %v967, 0.0
          %v1076 = vmax.f32 %v970, 0.0
          %v1077 = vmax.f32 %v975, 0.0
          %v1078 = vmax.f32 %v978, 0.0
          %v1079 = vmax.f32 %v983, 0.0
          %v1080 = vmax.f32 %v986, 0.0
          %v1081 = vmax.f32 %v991, 0.0
          %v1082 = vmax.f32 %v994, 0.0
          %v1083 = vmax.f32 %v999, 0.0
          %v1084 = vmax.f32 %v1002, 0.0
          %v1085 = vmax.f32 %v1007, 0.0
          %v1086 = vmax.f32 %v1010, 0.0
          %v1087 = vmax.f32 %v1015, 0.0
          %v1088 = vmax.f32 %v1018, 0.0
          %v1089 = vmax.f32 %v1023, 0.0
          %v1090 = vmax.f32 %v1026, 0.0
          %v1091 = vmax.f32 %v1031, 0.0
          %v1092 = vmax.f32 %v1034, 0.0
          %v1093 = vmax.f32 %v1039, 0.0
          %v1094 = vmax.f32 %v1042, 0.0
          %v1095 = vmax.f32 %v1047, 0.0
          %v1096 = vmax.f32 %v1050, 0.0
          %v1097 = vmax.f32 %v1055, 0.0
          %v1098 = vmax.f32 %v1058, 0.0
          %v1099 = vmax.f32 %v1063, 0.0
          %v1100 = vmax.f32 %v1066, 0.0
          %v1101 = vpack.c.bf16 %v1070, %v1069
          %v1102 = vpack.c.bf16 %v1072, %v1071
          %v1103 = vpack.c.bf16 %v1074, %v1073
          %v1104 = vpack.c.bf16 %v1076, %v1075
          %v1105 = vpack.c.bf16 %v1078, %v1077
          %v1106 = vpack.c.bf16 %v1080, %v1079
          %v1107 = vpack.c.bf16 %v1082, %v1081
          %v1108 = vpack.c.bf16 %v1084, %v1083
          %v1109 = vpack.c.bf16 %v1086, %v1085
          %v1110 = vpack.c.bf16 %v1088, %v1087
          %v1111 = vpack.c.bf16 %v1090, %v1089
          %v1112 = vpack.c.bf16 %v1092, %v1091
          %v1113 = vpack.c.bf16 %v1094, %v1093
          %v1114 = vpack.c.bf16 %v1096, %v1095
          %v1115 = vpack.c.bf16 %v1098, %v1097
          %v1116 = vpack.c.bf16 %v1100, %v1099
          %s1117 = smul.u32 %s705, 3
          %s1118 = smul.addr %s1117, 8
          %s1119 = scalar_lea.vmem [#allocation2], %s1118
          %1120 = vst [vmem:[%s1119 + $0x8] sm:$0xff] %v1101
          %1121 = vst [vmem:[%s1119 + $0x20] sm:$0xff] %v1102
          %1122 = vst [vmem:[%s1119 + $0x38] sm:$0xff] %v1103
          %1123 = vst [vmem:[%s1119 + $0x50] sm:$0xff] %v1104
          %1124 = vst [vmem:[%s1119 + $0x68] sm:$0xff] %v1105
          %1125 = vst [vmem:[%s1119 + $0x80] sm:$0xff] %v1106
          %1126 = vst [vmem:[%s1119 + $0x98] sm:$0xff] %v1107
          %1127 = vst [vmem:[%s1119 + $0xb0] sm:$0xff] %v1108
          %1128 = vst [vmem:[%s1119 + $0x1b8] sm:$0xff] %v1109
          %1129 = vst [vmem:[%s1119 + $0x1d0] sm:$0xff] %v1110
          %1130 = vst [vmem:[%s1119 + $0x1e8] sm:$0xff] %v1111
          %1131 = vst [vmem:[%s1119 + $0x200] sm:$0xff] %v1112
          %1132 = vst [vmem:[%s1119 + $0x218] sm:$0xff] %v1113
          %1133 = vst [vmem:[%s1119 + $0x230] sm:$0xff] %v1114
          %1134 = vst [vmem:[%s1119 + $0x248] sm:$0xff] %v1115
          %1135 = vst [vmem:[%s1119 + $0x260] sm:$0xff] %v1116
          %v1137 = vshrl.u32 %v1101, 16
          %v1139 = vrot.slane %v1137, 7
          %v1140 = vshll.u32 %v1101, 16
          %v1142 = vor.u32 %v1139, %v1140
          %v1144 = vshrl.u32 %v1102, 16
          %v1146 = vrot.slane %v1144, 7
          %v1147 = vshll.u32 %v1102, 16
          %v1149 = vor.u32 %v1146, %v1147
          %v1151 = vshrl.u32 %v1103, 16
          %v1153 = vrot.slane %v1151, 7
          %v1154 = vshll.u32 %v1103, 16
          %v1156 = vor.u32 %v1153, %v1154
          %v1158 = vshrl.u32 %v1104, 16
          %v1160 = vrot.slane %v1158, 7
          %v1161 = vshll.u32 %v1104, 16
          %v1163 = vor.u32 %v1160, %v1161
          %v1165 = vshrl.u32 %v1105, 16
          %v1167 = vrot.slane %v1165, 7
          %v1168 = vshll.u32 %v1105, 16
          %v1170 = vor.u32 %v1167, %v1168
          %v1172 = vshrl.u32 %v1106, 16
          %v1174 = vrot.slane %v1172, 7
          %v1175 = vshll.u32 %v1106, 16
          %v1177 = vor.u32 %v1174, %v1175
          %v1179 = vshrl.u32 %v1107, 16
          %v1181 = vrot.slane %v1179, 7
          %v1182 = vshll.u32 %v1107, 16
          %v1184 = vor.u32 %v1181, %v1182
          %v1186 = vshrl.u32 %v1108, 16
          %v1188 = vrot.slane %v1186, 7
          %v1189 = vshll.u32 %v1108, 16
          %v1191 = vor.u32 %v1188, %v1189
          %v1193 = vshrl.u32 %v1109, 16
          %v1195 = vrot.slane %v1193, 7
          %v1196 = vshll.u32 %v1109, 16
          %v1198 = vor.u32 %v1195, %v1196
          %v1200 = vshrl.u32 %v1110, 16
          %v1202 = vrot.slane %v1200, 7
          %v1203 = vshll.u32 %v1110, 16
          %v1205 = vor.u32 %v1202, %v1203
          %v1207 = vshrl.u32 %v1111, 16
          %v1209 = vrot.slane %v1207, 7
          %v1210 = vshll.u32 %v1111, 16
          %v1212 = vor.u32 %v1209, %v1210
          %v1214 = vshrl.u32 %v1112, 16
          %v1216 = vrot.slane %v1214, 7
          %v1217 = vshll.u32 %v1112, 16
          %v1219 = vor.u32 %v1216, %v1217
          %v1221 = vshrl.u32 %v1113, 16
          %v1223 = vrot.slane %v1221, 7
          %v1224 = vshll.u32 %v1113, 16
          %v1226 = vor.u32 %v1223, %v1224
          %v1228 = vshrl.u32 %v1114, 16
          %v1230 = vrot.slane %v1228, 7
          %v1231 = vshll.u32 %v1114, 16
          %v1233 = vor.u32 %v1230, %v1231
          %v1235 = vshrl.u32 %v1115, 16
          %v1237 = vrot.slane %v1235, 7
          %v1238 = vshll.u32 %v1115, 16
          %v1240 = vor.u32 %v1237, %v1238
          %v1242 = vshrl.u32 %v1116, 16
          %v1244 = vrot.slane %v1242, 7
          %v1245 = vshll.u32 %v1116, 16
          %v1247 = vor.u32 %v1244, %v1245
          %vm1264 = vcmask 1047552
          %vm1265 = vsmask.f32 7938
          %vm1266 = vmand %vm1264, %vm1265
          %v1267 = vld [vmem:[%s1119] sm:$0xff]
          %v1268 = vsel %vm1266, %v1142, %v1267
          %1269 = vst [vmem:[%s1119] sm:$0xff] %v1268
          %v1270 = vld [vmem:[%s1119 + $0x18] sm:$0xff]
          %v1271 = vsel %vm1266, %v1149, %v1270
          %1272 = vst [vmem:[%s1119 + $0x18] sm:$0xff] %v1271
          %v1273 = vld [vmem:[%s1119 + $0x30] sm:$0xff]
          %v1274 = vsel %vm1266, %v1156, %v1273
          %1275 = vst [vmem:[%s1119 + $0x30] sm:$0xff] %v1274
          %v1276 = vld [vmem:[%s1119 + $0x48] sm:$0xff]
          %v1277 = vsel %vm1266, %v1163, %v1276
          %1278 = vst [vmem:[%s1119 + $0x48] sm:$0xff] %v1277
          %v1279 = vld [vmem:[%s1119 + $0x60] sm:$0xff]
          %v1280 = vsel %vm1266, %v1170, %v1279
          %1281 = vst [vmem:[%s1119 + $0x60] sm:$0xff] %v1280
          %v1282 = vld [vmem:[%s1119 + $0x78] sm:$0xff]
          %v1283 = vsel %vm1266, %v1177, %v1282
          %1284 = vst [vmem:[%s1119 + $0x78] sm:$0xff] %v1283
          %v1285 = vld [vmem:[%s1119 + $0x90] sm:$0xff]
          %v1286 = vsel %vm1266, %v1184, %v1285
          %1287 = vst [vmem:[%s1119 + $0x90] sm:$0xff] %v1286
          %v1288 = vld [vmem:[%s1119 + $0xa8] sm:$0xff]
          %v1289 = vsel %vm1266, %v1191, %v1288
          %1290 = vst [vmem:[%s1119 + $0xa8] sm:$0xff] %v1289
          %v1291 = vld [vmem:[%s1119 + $0x1b0] sm:$0xff]
          %v1292 = vsel %vm1266, %v1198, %v1291
          %1293 = vst [vmem:[%s1119 + $0x1b0] sm:$0xff] %v1292
          %v1294 = vld [vmem:[%s1119 + $0x1c8] sm:$0xff]
          %v1295 = vsel %vm1266, %v1205, %v1294
          %1296 = vst [vmem:[%s1119 + $0x1c8] sm:$0xff] %v1295
          %v1297 = vld [vmem:[%s1119 + $0x1e0] sm:$0xff]
          %v1298 = vsel %vm1266, %v1212, %v1297
          %1299 = vst [vmem:[%s1119 + $0x1e0] sm:$0xff] %v1298
          %v1300 = vld [vmem:[%s1119 + $0x1f8] sm:$0xff]
          %v1301 = vsel %vm1266, %v1219, %v1300
          %1302 = vst [vmem:[%s1119 + $0x1f8] sm:$0xff] %v1301
          %v1303 = vld [vmem:[%s1119 + $0x210] sm:$0xff]
          %v1304 = vsel %vm1266, %v1226, %v1303
          %1305 = vst [vmem:[%s1119 + $0x210] sm:$0xff] %v1304
          %v1306 = vld [vmem:[%s1119 + $0x228] sm:$0xff]
          %v1307 = vsel %vm1266, %v1233, %v1306
          %1308 = vst [vmem:[%s1119 + $0x228] sm:$0xff] %v1307
          %v1309 = vld [vmem:[%s1119 + $0x240] sm:$0xff]
          %v1310 = vsel %vm1266, %v1240, %v1309
          %1311 = vst [vmem:[%s1119 + $0x240] sm:$0xff] %v1310
          %v1312 = vld [vmem:[%s1119 + $0x258] sm:$0xff]
          %v1313 = vsel %vm1266, %v1247, %v1312
          %1314 = vst [vmem:[%s1119 + $0x258] sm:$0xff] %v1313
          %v1315 = vrot.slane %v1140, 1
          %v1316 = vor.u32 %v1137, %v1315
          %v1317 = vrot.slane %v1147, 1
          %v1318 = vor.u32 %v1144, %v1317
          %v1319 = vrot.slane %v1154, 1
          %v1320 = vor.u32 %v1151, %v1319
          %v1321 = vrot.slane %v1161, 1
          %v1322 = vor.u32 %v1158, %v1321
          %v1323 = vrot.slane %v1168, 1
          %v1324 = vor.u32 %v1165, %v1323
          %v1325 = vrot.slane %v1175, 1
          %v1326 = vor.u32 %v1172, %v1325
          %v1327 = vrot.slane %v1182, 1
          %v1328 = vor.u32 %v1179, %v1327
          %v1329 = vrot.slane %v1189, 1
          %v1330 = vor.u32 %v1186, %v1329
          %v1331 = vrot.slane %v1196, 1
          %v1332 = vor.u32 %v1193, %v1331
          %v1333 = vrot.slane %v1203, 1
          %v1334 = vor.u32 %v1200, %v1333
          %v1335 = vrot.slane %v1210, 1
          %v1336 = vor.u32 %v1207, %v1335
          %v1337 = vrot.slane %v1217, 1
          %v1338 = vor.u32 %v1214, %v1337
          %v1339 = vrot.slane %v1224, 1
          %v1340 = vor.u32 %v1221, %v1339
          %v1341 = vrot.slane %v1231, 1
          %v1342 = vor.u32 %v1228, %v1341
          %v1343 = vrot.slane %v1238, 1
          %v1344 = vor.u32 %v1235, %v1343
          %v1345 = vrot.slane %v1245, 1
          %v1346 = vor.u32 %v1242, %v1345
          %vm1363 = vsmask.f32 7424
          %vm1364 = vmand %vm1264, %vm1363
          %v1365 = vld [vmem:[%s1119 + $0x10] sm:$0xff]
          %v1366 = vsel %vm1364, %v1316, %v1365
          %1367 = vst [vmem:[%s1119 + $0x10] sm:$0xff] %v1366
          %v1368 = vld [vmem:[%s1119 + $0x28] sm:$0xff]
          %v1369 = vsel %vm1364, %v1318, %v1368
          %1370 = vst [vmem:[%s1119 + $0x28] sm:$0xff] %v1369
          %v1371 = vld [vmem:[%s1119 + $0x40] sm:$0xff]
          %v1372 = vsel %vm1364, %v1320, %v1371
          %1373 = vst [vmem:[%s1119 + $0x40] sm:$0xff] %v1372
          %v1374 = vld [vmem:[%s1119 + $0x58] sm:$0xff]
          %v1375 = vsel %vm1364, %v1322, %v1374
          %1376 = vst [vmem:[%s1119 + $0x58] sm:$0xff] %v1375
          %v1377 = vld [vmem:[%s1119 + $0x70] sm:$0xff]
          %v1378 = vsel %vm1364, %v1324, %v1377
          %1379 = vst [vmem:[%s1119 + $0x70] sm:$0xff] %v1378
          %v1380 = vld [vmem:[%s1119 + $0x88] sm:$0xff]
          %v1381 = vsel %vm1364, %v1326, %v1380
          %1382 = vst [vmem:[%s1119 + $0x88] sm:$0xff] %v1381
          %v1383 = vld [vmem:[%s1119 + $0xa0] sm:$0xff]
          %v1384 = vsel %vm1364, %v1328, %v1383
          %1385 = vst [vmem:[%s1119 + $0xa0] sm:$0xff] %v1384
          %v1386 = vld [vmem:[%s1119 + $0xb8] sm:$0xff]
          %v1387 = vsel %vm1364, %v1330, %v1386
          %1388 = vst [vmem:[%s1119 + $0xb8] sm:$0xff] %v1387
          %v1389 = vld [vmem:[%s1119 + $0x1c0] sm:$0xff]
          %v1390 = vsel %vm1364, %v1332, %v1389
          %1391 = vst [vmem:[%s1119 + $0x1c0] sm:$0xff] %v1390
          %v1392 = vld [vmem:[%s1119 + $0x1d8] sm:$0xff]
          %v1393 = vsel %vm1364, %v1334, %v1392
          %1394 = vst [vmem:[%s1119 + $0x1d8] sm:$0xff] %v1393
          %v1395 = vld [vmem:[%s1119 + $0x1f0] sm:$0xff]
          %v1396 = vsel %vm1364, %v1336, %v1395
          %1397 = vst [vmem:[%s1119 + $0x1f0] sm:$0xff] %v1396
          %v1398 = vld [vmem:[%s1119 + $0x208] sm:$0xff]
          %v1399 = vsel %vm1364, %v1338, %v1398
          %1400 = vst [vmem:[%s1119 + $0x208] sm:$0xff] %v1399
          %v1401 = vld [vmem:[%s1119 + $0x220] sm:$0xff]
          %v1402 = vsel %vm1364, %v1340, %v1401
          %1403 = vst [vmem:[%s1119 + $0x220] sm:$0xff] %v1402
          %v1404 = vld [vmem:[%s1119 + $0x238] sm:$0xff]
          %v1405 = vsel %vm1364, %v1342, %v1404
          %1406 = vst [vmem:[%s1119 + $0x238] sm:$0xff] %v1405
          %v1407 = vld [vmem:[%s1119 + $0x250] sm:$0xff]
          %v1408 = vsel %vm1364, %v1344, %v1407
          %1409 = vst [vmem:[%s1119 + $0x250] sm:$0xff] %v1408
          %v1410 = vld [vmem:[%s1119 + $0x268] sm:$0xff]
          %v1411 = vsel %vm1364, %v1346, %v1410
          %1412 = vst [vmem:[%s1119 + $0x268] sm:$0xff] %v1411
        $region97: #{tpu_custom_call.1} parent=55 // loop_footer
          %s703 = sadd.s32 1, %s699
        $region98: #{tpu_custom_call.1} parent=55 // loop_footer_branch
          %698 = sbr.rel target = $region94
        $region99: #{tpu_custom_call.1} parent=55 // loop_exit
          _
        loop: start=0, step=1, limit=2
        $region100: #{tpu_custom_call.1} parent=55 // loop_pre_header
          _
        $region101: #{tpu_custom_call.1} parent=55 // loop_header
          %s1414 = sphi 0, %s1418
          %p1415 = scmp.ge.s32.totalorder %s1414, 2
        $region102: #{tpu_custom_call.1} parent=55 // loop_header_branch
          %1417 = sbr.rel (%p1415) target = $region106
        $region103: #{tpu_custom_call.1} parent=55 // loop_body
          %s1419 = smul.u32 %s1414, 8
          %s1420 = smul.u32 %s1419, 3
          %s1421 = smul.addr %s1420, 8
          %s1422 = scalar_lea.vmem [#allocation2], %s1421
          %v1423 = vld [vmem:[%s1422] sm:$0xff]
          %v1424 = vld [vmem:[%s1422 + $0x8] sm:$0xff]
          %v1425 = vld [vmem:[%s1422 + $0x10] sm:$0xff]
          %v1426 = vld [vmem:[%s1422 + $0x18] sm:$0xff]
          %v1427 = vld [vmem:[%s1422 + $0x20] sm:$0xff]
          %v1428 = vld [vmem:[%s1422 + $0x28] sm:$0xff]
          %v1429 = vld [vmem:[%s1422 + $0x30] sm:$0xff]
          %v1430 = vld [vmem:[%s1422 + $0x38] sm:$0xff]
          %v1431 = vld [vmem:[%s1422 + $0x40] sm:$0xff]
          %v1432 = vld [vmem:[%s1422 + $0x48] sm:$0xff]
          %v1433 = vld [vmem:[%s1422 + $0x50] sm:$0xff]
          %v1434 = vld [vmem:[%s1422 + $0x58] sm:$0xff]
          %v1435 = vld [vmem:[%s1422 + $0x60] sm:$0xff]
          %v1436 = vld [vmem:[%s1422 + $0x68] sm:$0xff]
          %v1437 = vld [vmem:[%s1422 + $0x70] sm:$0xff]
          %v1438 = vld [vmem:[%s1422 + $0x78] sm:$0xff]
          %v1439 = vld [vmem:[%s1422 + $0x80] sm:$0xff]
          %v1440 = vld [vmem:[%s1422 + $0x88] sm:$0xff]
          %v1441 = vld [vmem:[%s1422 + $0x90] sm:$0xff]
          %v1442 = vld [vmem:[%s1422 + $0x98] sm:$0xff]
          %v1443 = vld [vmem:[%s1422 + $0xa0] sm:$0xff]
          %v1444 = vld [vmem:[%s1422 + $0xa8] sm:$0xff]
          %v1445 = vld [vmem:[%s1422 + $0xb0] sm:$0xff]
          %v1446 = vld [vmem:[%s1422 + $0xb8] sm:$0xff]
          %v1447 = vld [vmem:[%s1422 + $0x1b0] sm:$0xff]
          %v1448 = vld [vmem:[%s1422 + $0x1b8] sm:$0xff]
          %v1449 = vld [vmem:[%s1422 + $0x1c0] sm:$0xff]
          %v1450 = vld [vmem:[%s1422 + $0x1c8] sm:$0xff]
          %v1451 = vld [vmem:[%s1422 + $0x1d0] sm:$0xff]
          %v1452 = vld [vmem:[%s1422 + $0x1d8] sm:$0xff]
          %v1453 = vld [vmem:[%s1422 + $0x1e0] sm:$0xff]
          %v1454 = vld [vmem:[%s1422 + $0x1e8] sm:$0xff]
          %v1455 = vld [vmem:[%s1422 + $0x1f0] sm:$0xff]
          %v1456 = vld [vmem:[%s1422 + $0x1f8] sm:$0xff]
          %v1457 = vld [vmem:[%s1422 + $0x200] sm:$0xff]
          %v1458 = vld [vmem:[%s1422 + $0x208] sm:$0xff]
          %v1459 = vld [vmem:[%s1422 + $0x210] sm:$0xff]
          %v1460 = vld [vmem:[%s1422 + $0x218] sm:$0xff]
          %v1461 = vld [vmem:[%s1422 + $0x220] sm:$0xff]
          %v1462 = vld [vmem:[%s1422 + $0x228] sm:$0xff]
          %v1463 = vld [vmem:[%s1422 + $0x230] sm:$0xff]
          %v1464 = vld [vmem:[%s1422 + $0x238] sm:$0xff]
          %v1465 = vld [vmem:[%s1422 + $0x240] sm:$0xff]
          %v1466 = vld [vmem:[%s1422 + $0x248] sm:$0xff]
          %v1467 = vld [vmem:[%s1422 + $0x250] sm:$0xff]
          %v1468 = vld [vmem:[%s1422 + $0x258] sm:$0xff]
          %v1469 = vld [vmem:[%s1422 + $0x260] sm:$0xff]
          %v1470 = vld [vmem:[%s1422 + $0x268] sm:$0xff]
          %v1471 = vld [vmem:[#allocation9] sm:$0xf]
          %v1472 = vld [vmem:[#allocation9 + $0x4] sm:$0xf]
          %v1473 = vld [vmem:[#allocation9 + $0x8] sm:$0xf]
          %v1474 = vld [vmem:[#allocation9 + $0xc] sm:$0xf]
          %v1475 = vld [vmem:[#allocation9 + $0x10] sm:$0xf]
          %v1476 = vld [vmem:[#allocation9 + $0x14] sm:$0xf]
          %v1477 = vld [vmem:[#allocation9 + $0x18] sm:$0xf]
          %v1478 = vld [vmem:[#allocation9 + $0x1c] sm:$0xf]
          %v1479 = vld [vmem:[#allocation9 + $0x20] sm:$0xf]
          %v1480 = vld [vmem:[#allocation9 + $0x24] sm:$0xf]
          %v1481 = vld [vmem:[#allocation9 + $0x28] sm:$0xf]
          %v1482 = vld [vmem:[#allocation9 + $0x2c] sm:$0xf]
          %v1483 = vld [vmem:[#allocation9 + $0x30] sm:$0xf]
          %v1484 = vld [vmem:[#allocation9 + $0x34] sm:$0xf]
          %v1485 = vld [vmem:[#allocation9 + $0x38] sm:$0xf]
          %v1486 = vld [vmem:[#allocation9 + $0x3c] sm:$0xf]
          %v1487 = vld [vmem:[#allocation9 + $0x40] sm:$0xf]
          %v1488 = vld [vmem:[#allocation9 + $0x44] sm:$0xf]
          %v1489 = vld [vmem:[#allocation9 + $0x48] sm:$0xf]
          %v1490 = vld [vmem:[#allocation9 + $0x4c] sm:$0xf]
          %v1491 = vld [vmem:[#allocation9 + $0x50] sm:$0xf]
          %v1492 = vld [vmem:[#allocation9 + $0x54] sm:$0xf]
          %v1493 = vld [vmem:[#allocation9 + $0x58] sm:$0xf]
          %v1494 = vld [vmem:[#allocation9 + $0x5c] sm:$0xf]
          %v1495 = vld [vmem:[#allocation9 + $0x60] sm:$0xf]
          %v1496 = vld [vmem:[#allocation9 + $0x64] sm:$0xf]
          %v1497 = vld [vmem:[#allocation9 + $0x68] sm:$0xf]
          %v1498 = vld [vmem:[#allocation9 + $0x6c] sm:$0xf]
          %v1499 = vld [vmem:[#allocation9 + $0x70] sm:$0xf]
          %v1500 = vld [vmem:[#allocation9 + $0x74] sm:$0xf]
          %v1501 = vld [vmem:[#allocation9 + $0x78] sm:$0xf]
          %v1502 = vld [vmem:[#allocation9 + $0x7c] sm:$0xf]
          %v1503 = vld [vmem:[#allocation9 + $0x80] sm:$0xf]
          %v1504 = vld [vmem:[#allocation9 + $0x84] sm:$0xf]
          %v1505 = vld [vmem:[#allocation9 + $0x88] sm:$0xf]
          %v1506 = vld [vmem:[#allocation9 + $0x8c] sm:$0xf]
          %v1507 = vld [vmem:[#allocation9 + $0x90] sm:$0xf]
          %v1508 = vld [vmem:[#allocation9 + $0x94] sm:$0xf]
          %v1509 = vld [vmem:[#allocation9 + $0x98] sm:$0xf]
          %v1510 = vld [vmem:[#allocation9 + $0x9c] sm:$0xf]
          %v1511 = vld [vmem:[#allocation9 + $0xa0] sm:$0xf]
          %v1512 = vld [vmem:[#allocation9 + $0xa4] sm:$0xf]
          %v1513 = vld [vmem:[#allocation9 + $0xa8] sm:$0xf]
          %v1514 = vld [vmem:[#allocation9 + $0xac] sm:$0xf]
          %v1515 = vld [vmem:[#allocation9 + $0xb0] sm:$0xf]
          %v1516 = vld [vmem:[#allocation9 + $0xb4] sm:$0xf]
          %v1517 = vld [vmem:[#allocation9 + $0xb8] sm:$0xf]
          %v1518 = vld [vmem:[#allocation9 + $0xbc] sm:$0xf]
          %s1519 = sadd.s32 %s1419, 1
          %s1520 = smul.u32 %s1519, 3
          %s1521 = smul.addr %s1520, 8
          %s1522 = scalar_lea.vmem [#allocation2], %s1521
          %v1523 = vld [vmem:[%s1522] sm:$0xff]
          %v1524 = vld [vmem:[%s1522 + $0x8] sm:$0xff]
          %v1525 = vld [vmem:[%s1522 + $0x10] sm:$0xff]
          %v1526 = vld [vmem:[%s1522 + $0x18] sm:$0xff]
          %v1527 = vld [vmem:[%s1522 + $0x20] sm:$0xff]
          %v1528 = vld [vmem:[%s1522 + $0x28] sm:$0xff]
          %v1529 = vld [vmem:[%s1522 + $0x30] sm:$0xff]
          %v1530 = vld [vmem:[%s1522 + $0x38] sm:$0xff]
          %v1531 = vld [vmem:[%s1522 + $0x40] sm:$0xff]
          %v1532 = vld [vmem:[%s1522 + $0x48] sm:$0xff]
          %v1533 = vld [vmem:[%s1522 + $0x50] sm:$0xff]
          %v1534 = vld [vmem:[%s1522 + $0x58] sm:$0xff]
          %v1535 = vld [vmem:[%s1522 + $0x60] sm:$0xff]
          %v1536 = vld [vmem:[%s1522 + $0x68] sm:$0xff]
          %v1537 = vld [vmem:[%s1522 + $0x70] sm:$0xff]
          %v1538 = vld [vmem:[%s1522 + $0x78] sm:$0xff]
          %v1539 = vld [vmem:[%s1522 + $0x80] sm:$0xff]
          %v1540 = vld [vmem:[%s1522 + $0x88] sm:$0xff]
          %v1541 = vld [vmem:[%s1522 + $0x90] sm:$0xff]
          %v1542 = vld [vmem:[%s1522 + $0x98] sm:$0xff]
          %v1543 = vld [vmem:[%s1522 + $0xa0] sm:$0xff]
          %v1544 = vld [vmem:[%s1522 + $0xa8] sm:$0xff]
          %v1545 = vld [vmem:[%s1522 + $0xb0] sm:$0xff]
          %v1546 = vld [vmem:[%s1522 + $0xb8] sm:$0xff]
          %v1547 = vld [vmem:[%s1522 + $0x1b0] sm:$0xff]
          %v1548 = vld [vmem:[%s1522 + $0x1b8] sm:$0xff]
          %v1549 = vld [vmem:[%s1522 + $0x1c0] sm:$0xff]
          %v1550 = vld [vmem:[%s1522 + $0x1c8] sm:$0xff]
          %v1551 = vld [vmem:[%s1522 + $0x1d0] sm:$0xff]
          %v1552 = vld [vmem:[%s1522 + $0x1d8] sm:$0xff]
          %v1553 = vld [vmem:[%s1522 + $0x1e0] sm:$0xff]
          %v1554 = vld [vmem:[%s1522 + $0x1e8] sm:$0xff]
          %v1555 = vld [vmem:[%s1522 + $0x1f0] sm:$0xff]
          %v1556 = vld [vmem:[%s1522 + $0x1f8] sm:$0xff]
          %v1557 = vld [vmem:[%s1522 + $0x200] sm:$0xff]
          %v1558 = vld [vmem:[%s1522 + $0x208] sm:$0xff]
          %v1559 = vld [vmem:[%s1522 + $0x210] sm:$0xff]
          %v1560 = vld [vmem:[%s1522 + $0x218] sm:$0xff]
          %v1561 = vld [vmem:[%s1522 + $0x220] sm:$0xff]
          %v1562 = vld [vmem:[%s1522 + $0x228] sm:$0xff]
          %v1563 = vld [vmem:[%s1522 + $0x230] sm:$0xff]
          %v1564 = vld [vmem:[%s1522 + $0x238] sm:$0xff]
          %v1565 = vld [vmem:[%s1522 + $0x240] sm:$0xff]
          %v1566 = vld [vmem:[%s1522 + $0x248] sm:$0xff]
          %v1567 = vld [vmem:[%s1522 + $0x250] sm:$0xff]
          %v1568 = vld [vmem:[%s1522 + $0x258] sm:$0xff]
          %v1569 = vld [vmem:[%s1522 + $0x260] sm:$0xff]
          %v1570 = vld [vmem:[%s1522 + $0x268] sm:$0xff]
          %s1571 = scalar_lea.vmem [#allocation9], 192
          %v1572 = vld [vmem:[%s1571] sm:$0xf]
          %v1573 = vld [vmem:[%s1571 + $0x4] sm:$0xf]
          %v1574 = vld [vmem:[%s1571 + $0x8] sm:$0xf]
          %v1575 = vld [vmem:[%s1571 + $0xc] sm:$0xf]
          %v1576 = vld [vmem:[%s1571 + $0x10] sm:$0xf]
          %v1577 = vld [vmem:[%s1571 + $0x14] sm:$0xf]
          %v1578 = vld [vmem:[%s1571 + $0x18] sm:$0xf]
          %v1579 = vld [vmem:[%s1571 + $0x1c] sm:$0xf]
          %v1580 = vld [vmem:[%s1571 + $0x20] sm:$0xf]
          %v1581 = vld [vmem:[%s1571 + $0x24] sm:$0xf]
          %v1582 = vld [vmem:[%s1571 + $0x28] sm:$0xf]
          %v1583 = vld [vmem:[%s1571 + $0x2c] sm:$0xf]
          %v1584 = vld [vmem:[%s1571 + $0x30] sm:$0xf]
          %v1585 = vld [vmem:[%s1571 + $0x34] sm:$0xf]
          %v1586 = vld [vmem:[%s1571 + $0x38] sm:$0xf]
          %v1587 = vld [vmem:[%s1571 + $0x3c] sm:$0xf]
          %v1588 = vld [vmem:[%s1571 + $0x40] sm:$0xf]
          %v1589 = vld [vmem:[%s1571 + $0x44] sm:$0xf]
          %v1590 = vld [vmem:[%s1571 + $0x48] sm:$0xf]
          %v1591 = vld [vmem:[%s1571 + $0x4c] sm:$0xf]
          %v1592 = vld [vmem:[%s1571 + $0x50] sm:$0xf]
          %v1593 = vld [vmem:[%s1571 + $0x54] sm:$0xf]
          %v1594 = vld [vmem:[%s1571 + $0x58] sm:$0xf]
          %v1595 = vld [vmem:[%s1571 + $0x5c] sm:$0xf]
          %v1596 = vld [vmem:[%s1571 + $0x60] sm:$0xf]
          %v1597 = vld [vmem:[%s1571 + $0x64] sm:$0xf]
          %v1598 = vld [vmem:[%s1571 + $0x68] sm:$0xf]
          %v1599 = vld [vmem:[%s1571 + $0x6c] sm:$0xf]
          %v1600 = vld [vmem:[%s1571 + $0x70] sm:$0xf]
          %v1601 = vld [vmem:[%s1571 + $0x74] sm:$0xf]
          %v1602 = vld [vmem:[%s1571 + $0x78] sm:$0xf]
          %v1603 = vld [vmem:[%s1571 + $0x7c] sm:$0xf]
          %v1604 = vld [vmem:[%s1571 + $0x80] sm:$0xf]
          %v1605 = vld [vmem:[%s1571 + $0x84] sm:$0xf]
          %v1606 = vld [vmem:[%s1571 + $0x88] sm:$0xf]
          %v1607 = vld [vmem:[%s1571 + $0x8c] sm:$0xf]
          %v1608 = vld [vmem:[%s1571 + $0x90] sm:$0xf]
          %v1609 = vld [vmem:[%s1571 + $0x94] sm:$0xf]
          %v1610 = vld [vmem:[%s1571 + $0x98] sm:$0xf]
          %v1611 = vld [vmem:[%s1571 + $0x9c] sm:$0xf]
          %v1612 = vld [vmem:[%s1571 + $0xa0] sm:$0xf]
          %v1613 = vld [vmem:[%s1571 + $0xa4] sm:$0xf]
          %v1614 = vld [vmem:[%s1571 + $0xa8] sm:$0xf]
          %v1615 = vld [vmem:[%s1571 + $0xac] sm:$0xf]
          %v1616 = vld [vmem:[%s1571 + $0xb0] sm:$0xf]
          %v1617 = vld [vmem:[%s1571 + $0xb4] sm:$0xf]
          %v1618 = vld [vmem:[%s1571 + $0xb8] sm:$0xf]
          %v1619 = vld [vmem:[%s1571 + $0xbc] sm:$0xf]
          %v1668 = vunpack.c.l.b16 %v1572
          %v1669 = vunpack.c.l.b16 %v1573
          %v1670 = vunpack.c.l.b16 %v1574
          %v1671 = vunpack.c.l.b16 %v1575
          %v1672 = vunpack.c.l.b16 %v1576
          %v1673 = vunpack.c.l.b16 %v1577
          %v1674 = vunpack.c.l.b16 %v1578
          %v1675 = vunpack.c.l.b16 %v1579
          %v1676 = vunpack.c.l.b16 %v1580
          %v1677 = vunpack.c.l.b16 %v1581
          %v1678 = vunpack.c.l.b16 %v1582
          %v1679 = vunpack.c.l.b16 %v1583
          %v1680 = vunpack.c.l.b16 %v1584
          %v1681 = vunpack.c.l.b16 %v1585
          %v1682 = vunpack.c.l.b16 %v1586
          %v1683 = vunpack.c.l.b16 %v1587
          %v1684 = vunpack.c.l.b16 %v1588
          %v1685 = vunpack.c.l.b16 %v1589
          %v1686 = vunpack.c.l.b16 %v1590
          %v1687 = vunpack.c.l.b16 %v1591
          %v1688 = vunpack.c.l.b16 %v1592
          %v1689 = vunpack.c.l.b16 %v1593
          %v1690 = vunpack.c.l.b16 %v1594
          %v1691 = vunpack.c.l.b16 %v1595
          %v1692 = vunpack.c.l.b16 %v1596
          %v1693 = vunpack.c.l.b16 %v1597
          %v1694 = vunpack.c.l.b16 %v1598
          %v1695 = vunpack.c.l.b16 %v1599
          %v1696 = vunpack.c.l.b16 %v1600
          %v1697 = vunpack.c.l.b16 %v1601
          %v1698 = vunpack.c.l.b16 %v1602
          %v1699 = vunpack.c.l.b16 %v1603
          %v1700 = vunpack.c.l.b16 %v1604
          %v1701 = vunpack.c.l.b16 %v1605
          %v1702 = vunpack.c.l.b16 %v1606
          %v1703 = vunpack.c.l.b16 %v1607
          %v1704 = vunpack.c.l.b16 %v1608
          %v1705 = vunpack.c.l.b16 %v1609
          %v1706 = vunpack.c.l.b16 %v1610
          %v1707 = vunpack.c.l.b16 %v1611
          %v1708 = vunpack.c.l.b16 %v1612
          %v1709 = vunpack.c.l.b16 %v1613
          %v1710 = vunpack.c.l.b16 %v1614
          %v1711 = vunpack.c.l.b16 %v1615
          %v1712 = vunpack.c.l.b16 %v1616
          %v1713 = vunpack.c.l.b16 %v1617
          %v1714 = vunpack.c.l.b16 %v1618
          %v1715 = vunpack.c.l.b16 %v1619
          %v1716 = vpack.c.b16 %v1669, %v1668
          %v1717 = vpack.c.b16 %v1671, %v1670
          %v1718 = vpack.c.b16 %v1673, %v1672
          %v1719 = vpack.c.b16 %v1675, %v1674
          %v1720 = vpack.c.b16 %v1677, %v1676
          %v1721 = vpack.c.b16 %v1679, %v1678
          %v1722 = vpack.c.b16 %v1681, %v1680
          %v1723 = vpack.c.b16 %v1683, %v1682
          %v1724 = vpack.c.b16 %v1685, %v1684
          %v1725 = vpack.c.b16 %v1687, %v1686
          %v1726 = vpack.c.b16 %v1689, %v1688
          %v1727 = vpack.c.b16 %v1691, %v1690
          %v1728 = vpack.c.b16 %v1693, %v1692
          %v1729 = vpack.c.b16 %v1695, %v1694
          %v1730 = vpack.c.b16 %v1697, %v1696
          %v1731 = vpack.c.b16 %v1699, %v1698
          %v1732 = vpack.c.b16 %v1701, %v1700
          %v1733 = vpack.c.b16 %v1703, %v1702
          %v1734 = vpack.c.b16 %v1705, %v1704
          %v1735 = vpack.c.b16 %v1707, %v1706
          %v1736 = vpack.c.b16 %v1709, %v1708
          %v1737 = vpack.c.b16 %v1711, %v1710
          %v1738 = vpack.c.b16 %v1713, %v1712
          %v1739 = vpack.c.b16 %v1715, %v1714
          %1764 = vmatprep.subr.bf16.mxu0 0
          %1765 = vmatpush1.bf16.msra.mxu0 %v1716
          %1766 = vmatprep.subr.bf16.mxu0 0
          %1767 = vmatpush1.bf16.msra.mxu0 %v1717
          %1768 = vmatprep.subr.bf16.mxu0 0
          %1769 = vmatpush1.bf16.msra.mxu0 %v1718
          %1770 = vmatprep.subr.bf16.mxu0 0
          %1771 = vmatpush1.bf16.msra.mxu0 %v1719
          %1772 = vmatprep.subr.bf16.mxu0 0
          %1773 = vmatpush1.bf16.msra.mxu0 %v1720
          %1774 = vmatprep.subr.bf16.mxu0 0
          %1775 = vmatpush1.bf16.msra.mxu0 %v1721
          %1776 = vmatprep.subr.bf16.mxu0 0
          %1777 = vmatpush1.bf16.msra.mxu0 %v1722
          %1778 = vmatprep.subr.bf16.mxu0 0
          %1779 = vmatpush1.bf16.msra.mxu0 %v1723
          %1780 = vmatprep.subr.bf16.mxu0 0
          %1781 = vmatpush1.bf16.msra.mxu0 %v1724
          %1782 = vmatprep.subr.bf16.mxu0 0
          %1783 = vmatpush1.bf16.msra.mxu0 %v1725
          %1784 = vmatprep.subr.bf16.mxu0 0
          %1785 = vmatpush1.bf16.msra.mxu0 %v1726
          %1786 = vmatprep.subr.bf16.mxu0 0
          %1787 = vmatpush1.bf16.msra.mxu0 %v1727
          %1788 = vmatprep.subr.bf16.mxu0 0
          %1789 = vmatpush1.bf16.msra.mxu0 %v1728
          %1790 = vmatprep.subr.bf16.mxu0 0
          %1791 = vmatpush1.bf16.msra.mxu0 %v1729
          %1792 = vmatprep.subr.bf16.mxu0 0
          %1793 = vmatpush1.bf16.msra.mxu0 %v1730
          %1794 = vmatprep.subr.bf16.mxu0 0
          %1795 = vmatpush1.bf16.msra.mxu0 %v1731
          %1796 = vmatprep.mubr.bf16.mxu0 %v1524
          %1797 = vmatmul.mubr.bf16.gmra.mrb[0].mxu0 %v1523
          %v1798 = vpop.f32.mrb[0].mxu0
          %v1799 = vadd.f32 0.0, %v1798
          %v1800 = vpop.f32.mrb[0].mxu0
          %v1801 = vpop.f32.mrb[0].mxu0
          %v1802 = vadd.f32 0.0, %v1801
          %v1803 = vpop.f32.mrb[0].mxu0
          %1804 = vmatprep.mubr.bf16.mxu0 %v1527
          %1805 = vmatmul.mubr.bf16.gmra.mrb[0].mxu0 %v1526
          %v1806 = vpop.f32.mrb[0].mxu0
          %v1807 = vadd.f32 0.0, %v1806
          %v1808 = vpop.f32.mrb[0].mxu0
          %v1809 = vpop.f32.mrb[0].mxu0
          %v1810 = vadd.f32 0.0, %v1809
          %v1811 = vpop.f32.mrb[0].mxu0
          %1812 = vmatprep.mubr.bf16.mxu0 %v1530
          %1813 = vmatmul.mubr.bf16.gmra.mrb[0].mxu0 %v1529
          %v1814 = vpop.f32.mrb[0].mxu0
          %v1815 = vadd.f32 0.0, %v1814
          %v1816 = vpop.f32.mrb[0].mxu0
          %v1817 = vpop.f32.mrb[0].mxu0
          %v1818 = vadd.f32 0.0, %v1817
          %v1819 = vpop.f32.mrb[0].mxu0
          %1820 = vmatprep.mubr.bf16.mxu0 %v1533
          %1821 = vmatmul.mubr.bf16.gmra.mrb[0].mxu0 %v1532
          %v1822 = vpop.f32.mrb[0].mxu0
          %v1823 = vadd.f32 0.0, %v1822
          %v1824 = vpop.f32.mrb[0].mxu0
          %v1825 = vpop.f32.mrb[0].mxu0
          %v1826 = vadd.f32 0.0, %v1825
          %v1827 = vpop.f32.mrb[0].mxu0
          %1828 = vmatprep.mubr.bf16.mxu0 %v1536
          %1829 = vmatmul.mubr.bf16.gmra.mrb[0].mxu0 %v1535
          %v1830 = vpop.f32.mrb[0].mxu0
          %v1831 = vadd.f32 0.0, %v1830
          %v1832 = vpop.f32.mrb[0].mxu0
          %v1833 = vpop.f32.mrb[0].mxu0
          %v1834 = vadd.f32 0.0, %v1833
          %v1835 = vpop.f32.mrb[0].mxu0
          %1836 = vmatprep.mubr.bf16.mxu0 %v1539
          %1837 = vmatmul.mubr.bf16.gmra.mrb[0].mxu0 %v1538
          %v1838 = vpop.f32.mrb[0].mxu0
          %v1839 = vadd.f32 0.0, %v1838
          %v1840 = vpop.f32.mrb[0].mxu0
          %v1841 = vpop.f32.mrb[0].mxu0
          %v1842 = vadd.f32 0.0, %v1841
          %v1843 = vpop.f32.mrb[0].mxu0
          %1844 = vmatprep.mubr.bf16.mxu0 %v1542
          %1845 = vmatmul.mubr.bf16.gmra.mrb[0].mxu0 %v1541
          %v1846 = vpop.f32.mrb[0].mxu0
          %v1847 = vadd.f32 0.0, %v1846
          %v1848 = vpop.f32.mrb[0].mxu0
          %v1849 = vpop.f32.mrb[0].mxu0
          %v1850 = vadd.f32 0.0, %v1849
          %v1851 = vpop.f32.mrb[0].mxu0
          %1852 = vmatprep.mubr.bf16.mxu0 %v1545
          %1853 = vmatmul.mubr.bf16.gmra.mrb[0].mxu0 %v1544
          %v1854 = vpop.f32.mrb[0].mxu0
          %v1855 = vadd.f32 0.0, %v1854
          %v1856 = vpop.f32.mrb[0].mxu0
          %v1857 = vpop.f32.mrb[0].mxu0
          %v1858 = vadd.f32 0.0, %v1857
          %v1859 = vpop.f32.mrb[0].mxu0
          %1860 = vmatprep.mubr.bf16.mxu0 %v1548
          %1861 = vmatmul.mubr.bf16.gmra.mrb[0].mxu0 %v1547
          %v1862 = vpop.f32.mrb[0].mxu0
          %v1863 = vadd.f32 0.0, %v1862
          %v1864 = vpop.f32.mrb[0].mxu0
          %v1865 = vpop.f32.mrb[0].mxu0
          %v1866 = vadd.f32 0.0, %v1865
          %v1867 = vpop.f32.mrb[0].mxu0
          %1868 = vmatprep.mubr.bf16.mxu0 %v1551
          %1869 = vmatmul.mubr.bf16.gmra.mrb[0].mxu0 %v1550
          %v1870 = vpop.f32.mrb[0].mxu0
          %v1871 = vadd.f32 0.0, %v1870
          %v1872 = vpop.f32.mrb[0].mxu0
          %v1873 = vpop.f32.mrb[0].mxu0
          %v1874 = vadd.f32 0.0, %v1873
          %v1875 = vpop.f32.mrb[0].mxu0
          %1876 = vmatprep.mubr.bf16.mxu0 %v1554
          %1877 = vmatmul.mubr.bf16.gmra.mrb[0].mxu0 %v1553
          %v1878 = vpop.f32.mrb[0].mxu0
          %v1879 = vadd.f32 0.0, %v1878
          %v1880 = vpop.f32.mrb[0].mxu0
          %v1881 = vpop.f32.mrb[0].mxu0
          %v1882 = vadd.f32 0.0, %v1881
          %v1883 = vpop.f32.mrb[0].mxu0
          %1884 = vmatprep.mubr.bf16.mxu0 %v1557
          %1885 = vmatmul.mubr.bf16.gmra.mrb[0].mxu0 %v1556
          %v1886 = vpop.f32.mrb[0].mxu0
          %v1887 = vadd.f32 0.0, %v1886
          %v1888 = vpop.f32.mrb[0].mxu0
          %v1889 = vpop.f32.mrb[0].mxu0
          %v1890 = vadd.f32 0.0, %v1889
          %v1891 = vpop.f32.mrb[0].mxu0
          %1892 = vmatprep.mubr.bf16.mxu0 %v1560
          %1893 = vmatmul.mubr.bf16.gmra.mrb[0].mxu0 %v1559
          %v1894 = vpop.f32.mrb[0].mxu0
          %v1895 = vadd.f32 0.0, %v1894
          %v1896 = vpop.f32.mrb[0].mxu0
          %v1897 = vpop.f32.mrb[0].mxu0
          %v1898 = vadd.f32 0.0, %v1897
          %v1899 = vpop.f32.mrb[0].mxu0
          %1900 = vmatprep.mubr.bf16.mxu0 %v1563
          %1901 = vmatmul.mubr.bf16.gmra.mrb[0].mxu0 %v1562
          %v1902 = vpop.f32.mrb[0].mxu0
          %v1903 = vadd.f32 0.0, %v1902
          %v1904 = vpop.f32.mrb[0].mxu0
          %v1905 = vpop.f32.mrb[0].mxu0
          %v1906 = vadd.f32 0.0, %v1905
          %v1907 = vpop.f32.mrb[0].mxu0
          %1908 = vmatprep.mubr.bf16.mxu0 %v1566
          %1909 = vmatmul.mubr.bf16.gmra.mrb[0].mxu0 %v1565
          %v1910 = vpop.f32.mrb[0].mxu0
          %v1911 = vadd.f32 0.0, %v1910
          %v1912 = vpop.f32.mrb[0].mxu0
          %v1913 = vpop.f32.mrb[0].mxu0
          %v1914 = vadd.f32 0.0, %v1913
          %v1915 = vpop.f32.mrb[0].mxu0
          %1916 = vmatprep.mubr.bf16.mxu0 %v1569
          %1917 = vmatmul.mubr.bf16.gmra.mrb[0].mxu0 %v1568
          %v1918 = vpop.f32.mrb[0].mxu0
          %v1919 = vadd.f32 0.0, %v1918
          %v1920 = vpop.f32.mrb[0].mxu0
          %v1921 = vpop.f32.mrb[0].mxu0
          %v1922 = vadd.f32 0.0, %v1921
          %v1923 = vpop.f32.mrb[0].mxu0
          %1924 = vdwg.mxu0
          %1925 = vmatprep.subr.bf16.mxu0 0
          %1926 = vmatpush1.bf16.msra.mxu0 %v1732
          %1927 = vmatprep.subr.bf16.mxu0 0
          %1928 = vmatpush1.bf16.msra.mxu0 %v1733
          %1929 = vmatprep.subr.bf16.mxu0 0
          %1930 = vmatpush1.bf16.msra.mxu0 %v1734
          %1931 = vmatprep.subr.bf16.mxu0 0
          %1932 = vmatpush1.bf16.msra.mxu0 %v1735
          %1933 = vmatprep.subr.bf16.mxu0 0
          %1934 = vmatpush1.bf16.msra.mxu0 %v1736
          %1935 = vmatprep.subr.bf16.mxu0 0
          %1936 = vmatpush1.bf16.msra.mxu0 %v1737
          %1937 = vmatprep.subr.bf16.mxu0 0
          %1938 = vmatpush1.bf16.msra.mxu0 %v1738
          %1939 = vmatprep.subr.bf16.mxu0 0
          %1940 = vmatpush1.bf16.msra.mxu0 %v1739
          %1941 = vmatprep.subr.bf16.mxu0 0
          %1942 = vmatpush1.bf16.msra.mxu0 0
          %1943 = vmatprep.subr.bf16.mxu0 0
          %1944 = vmatpush1.bf16.msra.mxu0 0
          %1945 = vmatprep.subr.bf16.mxu0 0
          %1946 = vmatpush1.bf16.msra.mxu0 0
          %1947 = vmatprep.subr.bf16.mxu0 0
          %1948 = vmatpush1.bf16.msra.mxu0 0
          %1949 = vmatprep.subr.bf16.mxu0 0
          %1950 = vmatpush1.bf16.msra.mxu0 0
          %1951 = vmatprep.subr.bf16.mxu0 0
          %1952 = vmatpush1.bf16.msra.mxu0 0
          %1953 = vmatprep.subr.bf16.mxu0 0
          %1954 = vmatpush1.bf16.msra.mxu0 0
          %1955 = vmatprep.subr.bf16.mxu0 0
          %1956 = vmatpush1.bf16.msra.mxu0 0
          %1957 = vmatprep.mubr.bf16.mxu0 0
          %1958 = vmatmul.mubr.bf16.gmra.mrb[0].mxu0 %v1525
          %v1959 = vpop.f32.mrb[0].mxu0
          %v1960 = vadd.f32 %v1799, %v1959
          %v1961 = vpop.f32.mrb[0].mxu0
          %v1962 = vpop.f32.mrb[0].mxu0
          %v1963 = vadd.f32 %v1802, %v1962
          %v1964 = vpop.f32.mrb[0].mxu0
          %1965 = vmatprep.mubr.bf16.mxu0 0
          %1966 = vmatmul.mubr.bf16.gmra.mrb[0].mxu0 %v1528
          %v1967 = vpop.f32.mrb[0].mxu0
          %v1968 = vadd.f32 %v1807, %v1967
          %v1969 = vpop.f32.mrb[0].mxu0
          %v1970 = vpop.f32.mrb[0].mxu0
          %v1971 = vadd.f32 %v1810, %v1970
          %v1972 = vpop.f32.mrb[0].mxu0
          %1973 = vmatprep.mubr.bf16.mxu0 0
          %1974 = vmatmul.mubr.bf16.gmra.mrb[0].mxu0 %v1531
          %v1975 = vpop.f32.mrb[0].mxu0
          %v1976 = vadd.f32 %v1815, %v1975
          %v1977 = vpop.f32.mrb[0].mxu0
          %v1978 = vpop.f32.mrb[0].mxu0
          %v1979 = vadd.f32 %v1818, %v1978
          %v1980 = vpop.f32.mrb[0].mxu0
          %1981 = vmatprep.mubr.bf16.mxu0 0
          %1982 = vmatmul.mubr.bf16.gmra.mrb[0].mxu0 %v1534
          %v1983 = vpop.f32.mrb[0].mxu0
          %v1984 = vadd.f32 %v1823, %v1983
          %v1985 = vpop.f32.mrb[0].mxu0
          %v1986 = vpop.f32.mrb[0].mxu0
          %v1987 = vadd.f32 %v1826, %v1986
          %v1988 = vpop.f32.mrb[0].mxu0
          %1989 = vmatprep.mubr.bf16.mxu0 0
          %1990 = vmatmul.mubr.bf16.gmra.mrb[0].mxu0 %v1537
          %v1991 = vpop.f32.mrb[0].mxu0
          %v1992 = vadd.f32 %v1831, %v1991
          %v1993 = vpop.f32.mrb[0].mxu0
          %v1994 = vpop.f32.mrb[0].mxu0
          %v1995 = vadd.f32 %v1834, %v1994
          %v1996 = vpop.f32.mrb[0].mxu0
          %1997 = vmatprep.mubr.bf16.mxu0 0
          %1998 = vmatmul.mubr.bf16.gmra.mrb[0].mxu0 %v1540
          %v1999 = vpop.f32.mrb[0].mxu0
          %v2000 = vadd.f32 %v1839, %v1999
          %v2001 = vpop.f32.mrb[0].mxu0
          %v2002 = vpop.f32.mrb[0].mxu0
          %v2003 = vadd.f32 %v1842, %v2002
          %v2004 = vpop.f32.mrb[0].mxu0
          %2005 = vmatprep.mubr.bf16.mxu0 0
          %2006 = vmatmul.mubr.bf16.gmra.mrb[0].mxu0 %v1543
          %v2007 = vpop.f32.mrb[0].mxu0
          %v2008 = vadd.f32 %v1847, %v2007
          %v2009 = vpop.f32.mrb[0].mxu0
          %v2010 = vpop.f32.mrb[0].mxu0
          %v2011 = vadd.f32 %v1850, %v2010
          %v2012 = vpop.f32.mrb[0].mxu0
          %2013 = vmatprep.mubr.bf16.mxu0 0
          %2014 = vmatmul.mubr.bf16.gmra.mrb[0].mxu0 %v1546
          %v2015 = vpop.f32.mrb[0].mxu0
          %v2016 = vadd.f32 %v1855, %v2015
          %v2017 = vpop.f32.mrb[0].mxu0
          %v2018 = vpop.f32.mrb[0].mxu0
          %v2019 = vadd.f32 %v1858, %v2018
          %v2020 = vpop.f32.mrb[0].mxu0
          %2021 = vmatprep.mubr.bf16.mxu0 0
          %2022 = vmatmul.mubr.bf16.gmra.mrb[0].mxu0 %v1549
          %v2023 = vpop.f32.mrb[0].mxu0
          %v2024 = vadd.f32 %v1863, %v2023
          %v2025 = vpop.f32.mrb[0].mxu0
          %v2026 = vpop.f32.mrb[0].mxu0
          %v2027 = vadd.f32 %v1866, %v2026
          %v2028 = vpop.f32.mrb[0].mxu0
          %2029 = vmatprep.mubr.bf16.mxu0 0
          %2030 = vmatmul.mubr.bf16.gmra.mrb[0].mxu0 %v1552
          %v2031 = vpop.f32.mrb[0].mxu0
          %v2032 = vadd.f32 %v1871, %v2031
          %v2033 = vpop.f32.mrb[0].mxu0
          %v2034 = vpop.f32.mrb[0].mxu0
          %v2035 = vadd.f32 %v1874, %v2034
          %v2036 = vpop.f32.mrb[0].mxu0
          %2037 = vmatprep.mubr.bf16.mxu0 0
          %2038 = vmatmul.mubr.bf16.gmra.mrb[0].mxu0 %v1555
          %v2039 = vpop.f32.mrb[0].mxu0
          %v2040 = vadd.f32 %v1879, %v2039
          %v2041 = vpop.f32.mrb[0].mxu0
          %v2042 = vpop.f32.mrb[0].mxu0
          %v2043 = vadd.f32 %v1882, %v2042
          %v2044 = vpop.f32.mrb[0].mxu0
          %2045 = vmatprep.mubr.bf16.mxu0 0
          %2046 = vmatmul.mubr.bf16.gmra.mrb[0].mxu0 %v1558
          %v2047 = vpop.f32.mrb[0].mxu0
          %v2048 = vadd.f32 %v1887, %v2047
          %v2049 = vpop.f32.mrb[0].mxu0
          %v2050 = vpop.f32.mrb[0].mxu0
          %v2051 = vadd.f32 %v1890, %v2050
          %v2052 = vpop.f32.mrb[0].mxu0
          %2053 = vmatprep.mubr.bf16.mxu0 0
          %2054 = vmatmul.mubr.bf16.gmra.mrb[0].mxu0 %v1561
          %v2055 = vpop.f32.mrb[0].mxu0
          %v2056 = vadd.f32 %v1895, %v2055
          %v2057 = vpop.f32.mrb[0].mxu0
          %v2058 = vpop.f32.mrb[0].mxu0
          %v2059 = vadd.f32 %v1898, %v2058
          %v2060 = vpop.f32.mrb[0].mxu0
          %2061 = vmatprep.mubr.bf16.mxu0 0
          %2062 = vmatmul.mubr.bf16.gmra.mrb[0].mxu0 %v1564
          %v2063 = vpop.f32.mrb[0].mxu0
          %v2064 = vadd.f32 %v1903, %v2063
          %v2065 = vpop.f32.mrb[0].mxu0
          %v2066 = vpop.f32.mrb[0].mxu0
          %v2067 = vadd.f32 %v1906, %v2066
          %v2068 = vpop.f32.mrb[0].mxu0
          %2069 = vmatprep.mubr.bf16.mxu0 0
          %2070 = vmatmul.mubr.bf16.gmra.mrb[0].mxu0 %v1567
          %v2071 = vpop.f32.mrb[0].mxu0
          %v2072 = vadd.f32 %v1911, %v2071
          %v2073 = vpop.f32.mrb[0].mxu0
          %v2074 = vpop.f32.mrb[0].mxu0
          %v2075 = vadd.f32 %v1914, %v2074
          %v2076 = vpop.f32.mrb[0].mxu0
          %2077 = vmatprep.mubr.bf16.mxu0 0
          %2078 = vmatmul.mubr.bf16.gmra.mrb[0].mxu0 %v1570
          %v2079 = vpop.f32.mrb[0].mxu0
          %v2080 = vadd.f32 %v1919, %v2079
          %v2081 = vpop.f32.mrb[0].mxu0
          %v2082 = vpop.f32.mrb[0].mxu0
          %v2083 = vadd.f32 %v1922, %v2082
          %v2084 = vpop.f32.mrb[0].mxu0
          %2085 = vdwg.mxu0
          %v2134 = vunpack.c.l.b16 %v1471
          %v2135 = vunpack.c.l.b16 %v1472
          %v2136 = vunpack.c.l.b16 %v1473
          %v2137 = vunpack.c.l.b16 %v1474
          %v2138 = vunpack.c.l.b16 %v1475
          %v2139 = vunpack.c.l.b16 %v1476
          %v2140 = vunpack.c.l.b16 %v1477
          %v2141 = vunpack.c.l.b16 %v1478
          %v2142 = vunpack.c.l.b16 %v1479
          %v2143 = vunpack.c.l.b16 %v1480
          %v2144 = vunpack.c.l.b16 %v1481
          %v2145 = vunpack.c.l.b16 %v1482
          %v2146 = vunpack.c.l.b16 %v1483
          %v2147 = vunpack.c.l.b16 %v1484
          %v2148 = vunpack.c.l.b16 %v1485
          %v2149 = vunpack.c.l.b16 %v1486
          %v2150 = vunpack.c.l.b16 %v1487
          %v2151 = vunpack.c.l.b16 %v1488
          %v2152 = vunpack.c.l.b16 %v1489
          %v2153 = vunpack.c.l.b16 %v1490
          %v2154 = vunpack.c.l.b16 %v1491
          %v2155 = vunpack.c.l.b16 %v1492
          %v2156 = vunpack.c.l.b16 %v1493
          %v2157 = vunpack.c.l.b16 %v1494
          %v2158 = vunpack.c.l.b16 %v1495
          %v2159 = vunpack.c.l.b16 %v1496
          %v2160 = vunpack.c.l.b16 %v1497
          %v2161 = vunpack.c.l.b16 %v1498
          %v2162 = vunpack.c.l.b16 %v1499
          %v2163 = vunpack.c.l.b16 %v1500
          %v2164 = vunpack.c.l.b16 %v1501
          %v2165 = vunpack.c.l.b16 %v1502
          %v2166 = vunpack.c.l.b16 %v1503
          %v2167 = vunpack.c.l.b16 %v1504
          %v2168 = vunpack.c.l.b16 %v1505
          %v2169 = vunpack.c.l.b16 %v1506
          %v2170 = vunpack.c.l.b16 %v1507
          %v2171 = vunpack.c.l.b16 %v1508
          %v2172 = vunpack.c.l.b16 %v1509
          %v2173 = vunpack.c.l.b16 %v1510
          %v2174 = vunpack.c.l.b16 %v1511
          %v2175 = vunpack.c.l.b16 %v1512
          %v2176 = vunpack.c.l.b16 %v1513
          %v2177 = vunpack.c.l.b16 %v1514
          %v2178 = vunpack.c.l.b16 %v1515
          %v2179 = vunpack.c.l.b16 %v1516
          %v2180 = vunpack.c.l.b16 %v1517
          %v2181 = vunpack.c.l.b16 %v1518
          %v2182 = vpack.c.b16 %v2135, %v2134
          %v2183 = vpack.c.b16 %v2137, %v2136
          %v2184 = vpack.c.b16 %v2139, %v2138
          %v2185 = vpack.c.b16 %v2141, %v2140
          %v2186 = vpack.c.b16 %v2143, %v2142
          %v2187 = vpack.c.b16 %v2145, %v2144
          %v2188 = vpack.c.b16 %v2147, %v2146
          %v2189 = vpack.c.b16 %v2149, %v2148
          %v2190 = vpack.c.b16 %v2151, %v2150
          %v2191 = vpack.c.b16 %v2153, %v2152
          %v2192 = vpack.c.b16 %v2155, %v2154
          %v2193 = vpack.c.b16 %v2157, %v2156
          %v2194 = vpack.c.b16 %v2159, %v2158
          %v2195 = vpack.c.b16 %v2161, %v2160
          %v2196 = vpack.c.b16 %v2163, %v2162
          %v2197 = vpack.c.b16 %v2165, %v2164
          %v2198 = vpack.c.b16 %v2167, %v2166
          %v2199 = vpack.c.b16 %v2169, %v2168
          %v2200 = vpack.c.b16 %v2171, %v2170
          %v2201 = vpack.c.b16 %v2173, %v2172
          %v2202 = vpack.c.b16 %v2175, %v2174
          %v2203 = vpack.c.b16 %v2177, %v2176
          %v2204 = vpack.c.b16 %v2179, %v2178
          %v2205 = vpack.c.b16 %v2181, %v2180
          %2230 = vmatprep.subr.bf16.mxu0 0
          %2231 = vmatpush1.bf16.msra.mxu0 %v2182
          %2232 = vmatprep.subr.bf16.mxu0 0
          %2233 = vmatpush1.bf16.msra.mxu0 %v2183
          %2234 = vmatprep.subr.bf16.mxu0 0
          %2235 = vmatpush1.bf16.msra.mxu0 %v2184
          %2236 = vmatprep.subr.bf16.mxu0 0
          %2237 = vmatpush1.bf16.msra.mxu0 %v2185
          %2238 = vmatprep.subr.bf16.mxu0 0
          %2239 = vmatpush1.bf16.msra.mxu0 %v2186
          %2240 = vmatprep.subr.bf16.mxu0 0
          %2241 = vmatpush1.bf16.msra.mxu0 %v2187
          %2242 = vmatprep.subr.bf16.mxu0 0
          %2243 = vmatpush1.bf16.msra.mxu0 %v2188
          %2244 = vmatprep.subr.bf16.mxu0 0
          %2245 = vmatpush1.bf16.msra.mxu0 %v2189
          %2246 = vmatprep.subr.bf16.mxu0 0
          %2247 = vmatpush1.bf16.msra.mxu0 %v2190
          %2248 = vmatprep.subr.bf16.mxu0 0
          %2249 = vmatpush1.bf16.msra.mxu0 %v2191
          %2250 = vmatprep.subr.bf16.mxu0 0
          %2251 = vmatpush1.bf16.msra.mxu0 %v2192
          %2252 = vmatprep.subr.bf16.mxu0 0
          %2253 = vmatpush1.bf16.msra.mxu0 %v2193
          %2254 = vmatprep.subr.bf16.mxu0 0
          %2255 = vmatpush1.bf16.msra.mxu0 %v2194
          %2256 = vmatprep.subr.bf16.mxu0 0
          %2257 = vmatpush1.bf16.msra.mxu0 %v2195
          %2258 = vmatprep.subr.bf16.mxu0 0
          %2259 = vmatpush1.bf16.msra.mxu0 %v2196
          %2260 = vmatprep.subr.bf16.mxu0 0
          %2261 = vmatpush1.bf16.msra.mxu0 %v2197
          %2262 = vmatprep.mubr.bf16.mxu0 %v1424
          %2263 = vmatmul.mubr.bf16.gmra.mrb[0].mxu0 %v1423
          %v2264 = vpop.f32.mrb[0].mxu0
          %v2265 = vadd.f32 %v1960, %v2264
          %v2266 = vpop.f32.mrb[0].mxu0
          %v2267 = vpop.f32.mrb[0].mxu0
          %v2268 = vadd.f32 %v1963, %v2267
          %v2269 = vpop.f32.mrb[0].mxu0
          %2270 = vmatprep.mubr.bf16.mxu0 %v1427
          %2271 = vmatmul.mubr.bf16.gmra.mrb[0].mxu0 %v1426
          %v2272 = vpop.f32.mrb[0].mxu0
          %v2273 = vadd.f32 %v1968, %v2272
          %v2274 = vpop.f32.mrb[0].mxu0
          %v2275 = vpop.f32.mrb[0].mxu0
          %v2276 = vadd.f32 %v1971, %v2275
          %v2277 = vpop.f32.mrb[0].mxu0
          %2278 = vmatprep.mubr.bf16.mxu0 %v1430
          %2279 = vmatmul.mubr.bf16.gmra.mrb[0].mxu0 %v1429
          %v2280 = vpop.f32.mrb[0].mxu0
          %v2281 = vadd.f32 %v1976, %v2280
          %v2282 = vpop.f32.mrb[0].mxu0
          %v2283 = vpop.f32.mrb[0].mxu0
          %v2284 = vadd.f32 %v1979, %v2283
          %v2285 = vpop.f32.mrb[0].mxu0
          %2286 = vmatprep.mubr.bf16.mxu0 %v1433
          %2287 = vmatmul.mubr.bf16.gmra.mrb[0].mxu0 %v1432
          %v2288 = vpop.f32.mrb[0].mxu0
          %v2289 = vadd.f32 %v1984, %v2288
          %v2290 = vpop.f32.mrb[0].mxu0
          %v2291 = vpop.f32.mrb[0].mxu0
          %v2292 = vadd.f32 %v1987, %v2291
          %v2293 = vpop.f32.mrb[0].mxu0
          %2294 = vmatprep.mubr.bf16.mxu0 %v1436
          %2295 = vmatmul.mubr.bf16.gmra.mrb[0].mxu0 %v1435
          %v2296 = vpop.f32.mrb[0].mxu0
          %v2297 = vadd.f32 %v1992, %v2296
          %v2298 = vpop.f32.mrb[0].mxu0
          %v2299 = vpop.f32.mrb[0].mxu0
          %v2300 = vadd.f32 %v1995, %v2299
          %v2301 = vpop.f32.mrb[0].mxu0
          %2302 = vmatprep.mubr.bf16.mxu0 %v1439
          %2303 = vmatmul.mubr.bf16.gmra.mrb[0].mxu0 %v1438
          %v2304 = vpop.f32.mrb[0].mxu0
          %v2305 = vadd.f32 %v2000, %v2304
          %v2306 = vpop.f32.mrb[0].mxu0
          %v2307 = vpop.f32.mrb[0].mxu0
          %v2308 = vadd.f32 %v2003, %v2307
          %v2309 = vpop.f32.mrb[0].mxu0
          %2310 = vmatprep.mubr.bf16.mxu0 %v1442
          %2311 = vmatmul.mubr.bf16.gmra.mrb[0].mxu0 %v1441
          %v2312 = vpop.f32.mrb[0].mxu0
          %v2313 = vadd.f32 %v2008, %v2312
          %v2314 = vpop.f32.mrb[0].mxu0
          %v2315 = vpop.f32.mrb[0].mxu0
          %v2316 = vadd.f32 %v2011, %v2315
          %v2317 = vpop.f32.mrb[0].mxu0
          %2318 = vmatprep.mubr.bf16.mxu0 %v1445
          %2319 = vmatmul.mubr.bf16.gmra.mrb[0].mxu0 %v1444
          %v2320 = vpop.f32.mrb[0].mxu0
          %v2321 = vadd.f32 %v2016, %v2320
          %v2322 = vpop.f32.mrb[0].mxu0
          %v2323 = vpop.f32.mrb[0].mxu0
          %v2324 = vadd.f32 %v2019, %v2323
          %v2325 = vpop.f32.mrb[0].mxu0
          %2326 = vmatprep.mubr.bf16.mxu0 %v1448
          %2327 = vmatmul.mubr.bf16.gmra.mrb[0].mxu0 %v1447
          %v2328 = vpop.f32.mrb[0].mxu0
          %v2329 = vadd.f32 %v2024, %v2328
          %v2330 = vpop.f32.mrb[0].mxu0
          %v2331 = vpop.f32.mrb[0].mxu0
          %v2332 = vadd.f32 %v2027, %v2331
          %v2333 = vpop.f32.mrb[0].mxu0
          %2334 = vmatprep.mubr.bf16.mxu0 %v1451
          %2335 = vmatmul.mubr.bf16.gmra.mrb[0].mxu0 %v1450
          %v2336 = vpop.f32.mrb[0].mxu0
          %v2337 = vadd.f32 %v2032, %v2336
          %v2338 = vpop.f32.mrb[0].mxu0
          %v2339 = vpop.f32.mrb[0].mxu0
          %v2340 = vadd.f32 %v2035, %v2339
          %v2341 = vpop.f32.mrb[0].mxu0
          %2342 = vmatprep.mubr.bf16.mxu0 %v1454
          %2343 = vmatmul.mubr.bf16.gmra.mrb[0].mxu0 %v1453
          %v2344 = vpop.f32.mrb[0].mxu0
          %v2345 = vadd.f32 %v2040, %v2344
          %v2346 = vpop.f32.mrb[0].mxu0
          %v2347 = vpop.f32.mrb[0].mxu0
          %v2348 = vadd.f32 %v2043, %v2347
          %v2349 = vpop.f32.mrb[0].mxu0
          %2350 = vmatprep.mubr.bf16.mxu0 %v1457
          %2351 = vmatmul.mubr.bf16.gmra.mrb[0].mxu0 %v1456
          %v2352 = vpop.f32.mrb[0].mxu0
          %v2353 = vadd.f32 %v2048, %v2352
          %v2354 = vpop.f32.mrb[0].mxu0
          %v2355 = vpop.f32.mrb[0].mxu0
          %v2356 = vadd.f32 %v2051, %v2355
          %v2357 = vpop.f32.mrb[0].mxu0
          %2358 = vmatprep.mubr.bf16.mxu0 %v1460
          %2359 = vmatmul.mubr.bf16.gmra.mrb[0].mxu0 %v1459
          %v2360 = vpop.f32.mrb[0].mxu0
          %v2361 = vadd.f32 %v2056, %v2360
          %v2362 = vpop.f32.mrb[0].mxu0
          %v2363 = vpop.f32.mrb[0].mxu0
          %v2364 = vadd.f32 %v2059, %v2363
          %v2365 = vpop.f32.mrb[0].mxu0
          %2366 = vmatprep.mubr.bf16.mxu0 %v1463
          %2367 = vmatmul.mubr.bf16.gmra.mrb[0].mxu0 %v1462
          %v2368 = vpop.f32.mrb[0].mxu0
          %v2369 = vadd.f32 %v2064, %v2368
          %v2370 = vpop.f32.mrb[0].mxu0
          %v2371 = vpop.f32.mrb[0].mxu0
          %v2372 = vadd.f32 %v2067, %v2371
          %v2373 = vpop.f32.mrb[0].mxu0
          %2374 = vmatprep.mubr.bf16.mxu0 %v1466
          %2375 = vmatmul.mubr.bf16.gmra.mrb[0].mxu0 %v1465
          %v2376 = vpop.f32.mrb[0].mxu0
          %v2377 = vadd.f32 %v2072, %v2376
          %v2378 = vpop.f32.mrb[0].mxu0
          %v2379 = vpop.f32.mrb[0].mxu0
          %v2380 = vadd.f32 %v2075, %v2379
          %v2381 = vpop.f32.mrb[0].mxu0
          %2382 = vmatprep.mubr.bf16.mxu0 %v1469
          %2383 = vmatmul.mubr.bf16.gmra.mrb[0].mxu0 %v1468
          %v2384 = vpop.f32.mrb[0].mxu0
          %v2385 = vadd.f32 %v2080, %v2384
          %v2386 = vpop.f32.mrb[0].mxu0
          %v2387 = vpop.f32.mrb[0].mxu0
          %v2388 = vadd.f32 %v2083, %v2387
          %v2389 = vpop.f32.mrb[0].mxu0
          %2390 = vdwg.mxu0
          %2391 = vmatprep.subr.bf16.mxu0 0
          %2392 = vmatpush1.bf16.msra.mxu0 %v2198
          %2393 = vmatprep.subr.bf16.mxu0 0
          %2394 = vmatpush1.bf16.msra.mxu0 %v2199
          %2395 = vmatprep.subr.bf16.mxu0 0
          %2396 = vmatpush1.bf16.msra.mxu0 %v2200
          %2397 = vmatprep.subr.bf16.mxu0 0
          %2398 = vmatpush1.bf16.msra.mxu0 %v2201
          %2399 = vmatprep.subr.bf16.mxu0 0
          %2400 = vmatpush1.bf16.msra.mxu0 %v2202
          %2401 = vmatprep.subr.bf16.mxu0 0
          %2402 = vmatpush1.bf16.msra.mxu0 %v2203
          %2403 = vmatprep.subr.bf16.mxu0 0
          %2404 = vmatpush1.bf16.msra.mxu0 %v2204
          %2405 = vmatprep.subr.bf16.mxu0 0
          %2406 = vmatpush1.bf16.msra.mxu0 %v2205
          %2407 = vmatprep.subr.bf16.mxu0 0
          %2408 = vmatpush1.bf16.msra.mxu0 0
          %2409 = vmatprep.subr.bf16.mxu0 0
          %2410 = vmatpush1.bf16.msra.mxu0 0
          %2411 = vmatprep.subr.bf16.mxu0 0
          %2412 = vmatpush1.bf16.msra.mxu0 0
          %2413 = vmatprep.subr.bf16.mxu0 0
          %2414 = vmatpush1.bf16.msra.mxu0 0
          %2415 = vmatprep.subr.bf16.mxu0 0
          %2416 = vmatpush1.bf16.msra.mxu0 0
          %2417 = vmatprep.subr.bf16.mxu0 0
          %2418 = vmatpush1.bf16.msra.mxu0 0
          %2419 = vmatprep.subr.bf16.mxu0 0
          %2420 = vmatpush1.bf16.msra.mxu0 0
          %2421 = vmatprep.subr.bf16.mxu0 0
          %2422 = vmatpush1.bf16.msra.mxu0 0
          %2423 = vmatprep.mubr.bf16.mxu0 0
          %2424 = vmatmul.mubr.bf16.gmra.mrb[0].mxu0 %v1425
          %v2425 = vpop.f32.mrb[0].mxu0
          %v2426 = vadd.f32 %v2265, %v2425
          %v2427 = vpop.f32.mrb[0].mxu0
          %v2428 = vpop.f32.mrb[0].mxu0
          %v2429 = vadd.f32 %v2268, %v2428
          %v2430 = vpop.f32.mrb[0].mxu0
          %2431 = vmatprep.mubr.bf16.mxu0 0
          %2432 = vmatmul.mubr.bf16.gmra.mrb[0].mxu0 %v1428
          %v2433 = vpop.f32.mrb[0].mxu0
          %v2434 = vadd.f32 %v2273, %v2433
          %v2435 = vpop.f32.mrb[0].mxu0
          %v2436 = vpop.f32.mrb[0].mxu0
          %v2437 = vadd.f32 %v2276, %v2436
          %v2438 = vpop.f32.mrb[0].mxu0
          %2439 = vmatprep.mubr.bf16.mxu0 0
          %2440 = vmatmul.mubr.bf16.gmra.mrb[0].mxu0 %v1431
          %v2441 = vpop.f32.mrb[0].mxu0
          %v2442 = vadd.f32 %v2281, %v2441
          %v2443 = vpop.f32.mrb[0].mxu0
          %v2444 = vpop.f32.mrb[0].mxu0
          %v2445 = vadd.f32 %v2284, %v2444
          %v2446 = vpop.f32.mrb[0].mxu0
          %2447 = vmatprep.mubr.bf16.mxu0 0
          %2448 = vmatmul.mubr.bf16.gmra.mrb[0].mxu0 %v1434
          %v2449 = vpop.f32.mrb[0].mxu0
          %v2450 = vadd.f32 %v2289, %v2449
          %v2451 = vpop.f32.mrb[0].mxu0
          %v2452 = vpop.f32.mrb[0].mxu0
          %v2453 = vadd.f32 %v2292, %v2452
          %v2454 = vpop.f32.mrb[0].mxu0
          %2455 = vmatprep.mubr.bf16.mxu0 0
          %2456 = vmatmul.mubr.bf16.gmra.mrb[0].mxu0 %v1437
          %v2457 = vpop.f32.mrb[0].mxu0
          %v2458 = vadd.f32 %v2297, %v2457
          %v2459 = vpop.f32.mrb[0].mxu0
          %v2460 = vpop.f32.mrb[0].mxu0
          %v2461 = vadd.f32 %v2300, %v2460
          %v2462 = vpop.f32.mrb[0].mxu0
          %2463 = vmatprep.mubr.bf16.mxu0 0
          %2464 = vmatmul.mubr.bf16.gmra.mrb[0].mxu0 %v1440
          %v2465 = vpop.f32.mrb[0].mxu0
          %v2466 = vadd.f32 %v2305, %v2465
          %v2467 = vpop.f32.mrb[0].mxu0
          %v2468 = vpop.f32.mrb[0].mxu0
          %v2469 = vadd.f32 %v2308, %v2468
          %v2470 = vpop.f32.mrb[0].mxu0
          %2471 = vmatprep.mubr.bf16.mxu0 0
          %2472 = vmatmul.mubr.bf16.gmra.mrb[0].mxu0 %v1443
          %v2473 = vpop.f32.mrb[0].mxu0
          %v2474 = vadd.f32 %v2313, %v2473
          %v2475 = vpop.f32.mrb[0].mxu0
          %v2476 = vpop.f32.mrb[0].mxu0
          %v2477 = vadd.f32 %v2316, %v2476
          %v2478 = vpop.f32.mrb[0].mxu0
          %2479 = vmatprep.mubr.bf16.mxu0 0
          %2480 = vmatmul.mubr.bf16.gmra.mrb[0].mxu0 %v1446
          %v2481 = vpop.f32.mrb[0].mxu0
          %v2482 = vadd.f32 %v2321, %v2481
          %v2483 = vpop.f32.mrb[0].mxu0
          %v2484 = vpop.f32.mrb[0].mxu0
          %v2485 = vadd.f32 %v2324, %v2484
          %v2486 = vpop.f32.mrb[0].mxu0
          %2487 = vmatprep.mubr.bf16.mxu0 0
          %2488 = vmatmul.mubr.bf16.gmra.mrb[0].mxu0 %v1449
          %v2489 = vpop.f32.mrb[0].mxu0
          %v2490 = vadd.f32 %v2329, %v2489
          %v2491 = vpop.f32.mrb[0].mxu0
          %v2492 = vpop.f32.mrb[0].mxu0
          %v2493 = vadd.f32 %v2332, %v2492
          %v2494 = vpop.f32.mrb[0].mxu0
          %2495 = vmatprep.mubr.bf16.mxu0 0
          %2496 = vmatmul.mubr.bf16.gmra.mrb[0].mxu0 %v1452
          %v2497 = vpop.f32.mrb[0].mxu0
          %v2498 = vadd.f32 %v2337, %v2497
          %v2499 = vpop.f32.mrb[0].mxu0
          %v2500 = vpop.f32.mrb[0].mxu0
          %v2501 = vadd.f32 %v2340, %v2500
          %v2502 = vpop.f32.mrb[0].mxu0
          %2503 = vmatprep.mubr.bf16.mxu0 0
          %2504 = vmatmul.mubr.bf16.gmra.mrb[0].mxu0 %v1455
          %v2505 = vpop.f32.mrb[0].mxu0
          %v2506 = vadd.f32 %v2345, %v2505
          %v2507 = vpop.f32.mrb[0].mxu0
          %v2508 = vpop.f32.mrb[0].mxu0
          %v2509 = vadd.f32 %v2348, %v2508
          %v2510 = vpop.f32.mrb[0].mxu0
          %2511 = vmatprep.mubr.bf16.mxu0 0
          %2512 = vmatmul.mubr.bf16.gmra.mrb[0].mxu0 %v1458
          %v2513 = vpop.f32.mrb[0].mxu0
          %v2514 = vadd.f32 %v2353, %v2513
          %v2515 = vpop.f32.mrb[0].mxu0
          %v2516 = vpop.f32.mrb[0].mxu0
          %v2517 = vadd.f32 %v2356, %v2516
          %v2518 = vpop.f32.mrb[0].mxu0
          %2519 = vmatprep.mubr.bf16.mxu0 0
          %2520 = vmatmul.mubr.bf16.gmra.mrb[0].mxu0 %v1461
          %v2521 = vpop.f32.mrb[0].mxu0
          %v2522 = vadd.f32 %v2361, %v2521
          %v2523 = vpop.f32.mrb[0].mxu0
          %v2524 = vpop.f32.mrb[0].mxu0
          %v2525 = vadd.f32 %v2364, %v2524
          %v2526 = vpop.f32.mrb[0].mxu0
          %2527 = vmatprep.mubr.bf16.mxu0 0
          %2528 = vmatmul.mubr.bf16.gmra.mrb[0].mxu0 %v1464
          %v2529 = vpop.f32.mrb[0].mxu0
          %v2530 = vadd.f32 %v2369, %v2529
          %v2531 = vpop.f32.mrb[0].mxu0
          %v2532 = vpop.f32.mrb[0].mxu0
          %v2533 = vadd.f32 %v2372, %v2532
          %v2534 = vpop.f32.mrb[0].mxu0
          %2535 = vmatprep.mubr.bf16.mxu0 0
          %2536 = vmatmul.mubr.bf16.gmra.mrb[0].mxu0 %v1467
          %v2537 = vpop.f32.mrb[0].mxu0
          %v2538 = vadd.f32 %v2377, %v2537
          %v2539 = vpop.f32.mrb[0].mxu0
          %v2540 = vpop.f32.mrb[0].mxu0
          %v2541 = vadd.f32 %v2380, %v2540
          %v2542 = vpop.f32.mrb[0].mxu0
          %2543 = vmatprep.mubr.bf16.mxu0 0
          %2544 = vmatmul.mubr.bf16.gmra.mrb[0].mxu0 %v1470
          %v2545 = vpop.f32.mrb[0].mxu0
          %v2546 = vadd.f32 %v2385, %v2545
          %v2547 = vpop.f32.mrb[0].mxu0
          %v2548 = vpop.f32.mrb[0].mxu0
          %v2549 = vadd.f32 %v2388, %v2548
          %v2550 = vpop.f32.mrb[0].mxu0
          %2551 = vdwg.mxu0
          %s2552 = sadd.s32 %s1419, 2
          %s2553 = smul.u32 %s2552, 3
          %s2554 = smul.addr %s2553, 8
          %s2555 = scalar_lea.vmem [#allocation2], %s2554
          %v2556 = vld [vmem:[%s2555] sm:$0xff]
          %v2557 = vld [vmem:[%s2555 + $0x8] sm:$0xff]
          %v2558 = vld [vmem:[%s2555 + $0x10] sm:$0xff]
          %v2559 = vld [vmem:[%s2555 + $0x18] sm:$0xff]
          %v2560 = vld [vmem:[%s2555 + $0x20] sm:$0xff]
          %v2561 = vld [vmem:[%s2555 + $0x28] sm:$0xff]
          %v2562 = vld [vmem:[%s2555 + $0x30] sm:$0xff]
          %v2563 = vld [vmem:[%s2555 + $0x38] sm:$0xff]
          %v2564 = vld [vmem:[%s2555 + $0x40] sm:$0xff]
          %v2565 = vld [vmem:[%s2555 + $0x48] sm:$0xff]
          %v2566 = vld [vmem:[%s2555 + $0x50] sm:$0xff]
          %v2567 = vld [vmem:[%s2555 + $0x58] sm:$0xff]
          %v2568 = vld [vmem:[%s2555 + $0x60] sm:$0xff]
          %v2569 = vld [vmem:[%s2555 + $0x68] sm:$0xff]
          %v2570 = vld [vmem:[%s2555 + $0x70] sm:$0xff]
          %v2571 = vld [vmem:[%s2555 + $0x78] sm:$0xff]
          %v2572 = vld [vmem:[%s2555 + $0x80] sm:$0xff]
          %v2573 = vld [vmem:[%s2555 + $0x88] sm:$0xff]
          %v2574 = vld [vmem:[%s2555 + $0x90] sm:$0xff]
          %v2575 = vld [vmem:[%s2555 + $0x98] sm:$0xff]
          %v2576 = vld [vmem:[%s2555 + $0xa0] sm:$0xff]
          %v2577 = vld [vmem:[%s2555 + $0xa8] sm:$0xff]
          %v2578 = vld [vmem:[%s2555 + $0xb0] sm:$0xff]
          %v2579 = vld [vmem:[%s2555 + $0xb8] sm:$0xff]
          %v2580 = vld [vmem:[%s2555 + $0x1b0] sm:$0xff]
          %v2581 = vld [vmem:[%s2555 + $0x1b8] sm:$0xff]
          %v2582 = vld [vmem:[%s2555 + $0x1c0] sm:$0xff]
          %v2583 = vld [vmem:[%s2555 + $0x1c8] sm:$0xff]
          %v2584 = vld [vmem:[%s2555 + $0x1d0] sm:$0xff]
          %v2585 = vld [vmem:[%s2555 + $0x1d8] sm:$0xff]
          %v2586 = vld [vmem:[%s2555 + $0x1e0] sm:$0xff]
          %v2587 = vld [vmem:[%s2555 + $0x1e8] sm:$0xff]
          %v2588 = vld [vmem:[%s2555 + $0x1f0] sm:$0xff]
          %v2589 = vld [vmem:[%s2555 + $0x1f8] sm:$0xff]
          %v2590 = vld [vmem:[%s2555 + $0x200] sm:$0xff]
          %v2591 = vld [vmem:[%s2555 + $0x208] sm:$0xff]
          %v2592 = vld [vmem:[%s2555 + $0x210] sm:$0xff]
          %v2593 = vld [vmem:[%s2555 + $0x218] sm:$0xff]
          %v2594 = vld [vmem:[%s2555 + $0x220] sm:$0xff]
          %v2595 = vld [vmem:[%s2555 + $0x228] sm:$0xff]
          %v2596 = vld [vmem:[%s2555 + $0x230] sm:$0xff]
          %v2597 = vld [vmem:[%s2555 + $0x238] sm:$0xff]
          %v2598 = vld [vmem:[%s2555 + $0x240] sm:$0xff]
          %v2599 = vld [vmem:[%s2555 + $0x248] sm:$0xff]
          %v2600 = vld [vmem:[%s2555 + $0x250] sm:$0xff]
          %v2601 = vld [vmem:[%s2555 + $0x258] sm:$0xff]
          %v2602 = vld [vmem:[%s2555 + $0x260] sm:$0xff]
          %v2603 = vld [vmem:[%s2555 + $0x268] sm:$0xff]
          %s2604 = scalar_lea.vmem [#allocation9], 384
          %v2605 = vld [vmem:[%s2604] sm:$0xf]
          %v2606 = vld [vmem:[%s2604 + $0x4] sm:$0xf]
          %v2607 = vld [vmem:[%s2604 + $0x8] sm:$0xf]
          %v2608 = vld [vmem:[%s2604 + $0xc] sm:$0xf]
          %v2609 = vld [vmem:[%s2604 + $0x10] sm:$0xf]
          %v2610 = vld [vmem:[%s2604 + $0x14] sm:$0xf]
          %v2611 = vld [vmem:[%s2604 + $0x18] sm:$0xf]
          %v2612 = vld [vmem:[%s2604 + $0x1c] sm:$0xf]
          %v2613 = vld [vmem:[%s2604 + $0x20] sm:$0xf]
          %v2614 = vld [vmem:[%s2604 + $0x24] sm:$0xf]
          %v2615 = vld [vmem:[%s2604 + $0x28] sm:$0xf]
          %v2616 = vld [vmem:[%s2604 + $0x2c] sm:$0xf]
          %v2617 = vld [vmem:[%s2604 + $0x30] sm:$0xf]
          %v2618 = vld [vmem:[%s2604 + $0x34] sm:$0xf]
          %v2619 = vld [vmem:[%s2604 + $0x38] sm:$0xf]
          %v2620 = vld [vmem:[%s2604 + $0x3c] sm:$0xf]
          %v2621 = vld [vmem:[%s2604 + $0x40] sm:$0xf]
          %v2622 = vld [vmem:[%s2604 + $0x44] sm:$0xf]
          %v2623 = vld [vmem:[%s2604 + $0x48] sm:$0xf]
          %v2624 = vld [vmem:[%s2604 + $0x4c] sm:$0xf]
          %v2625 = vld [vmem:[%s2604 + $0x50] sm:$0xf]
          %v2626 = vld [vmem:[%s2604 + $0x54] sm:$0xf]
          %v2627 = vld [vmem:[%s2604 + $0x58] sm:$0xf]
          %v2628 = vld [vmem:[%s2604 + $0x5c] sm:$0xf]
          %v2629 = vld [vmem:[%s2604 + $0x60] sm:$0xf]
          %v2630 = vld [vmem:[%s2604 + $0x64] sm:$0xf]
          %v2631 = vld [vmem:[%s2604 + $0x68] sm:$0xf]
          %v2632 = vld [vmem:[%s2604 + $0x6c] sm:$0xf]
          %v2633 = vld [vmem:[%s2604 + $0x70] sm:$0xf]
          %v2634 = vld [vmem:[%s2604 + $0x74] sm:$0xf]
          %v2635 = vld [vmem:[%s2604 + $0x78] sm:$0xf]
          %v2636 = vld [vmem:[%s2604 + $0x7c] sm:$0xf]
          %v2637 = vld [vmem:[%s2604 + $0x80] sm:$0xf]
          %v2638 = vld [vmem:[%s2604 + $0x84] sm:$0xf]
          %v2639 = vld [vmem:[%s2604 + $0x88] sm:$0xf]
          %v2640 = vld [vmem:[%s2604 + $0x8c] sm:$0xf]
          %v2641 = vld [vmem:[%s2604 + $0x90] sm:$0xf]
          %v2642 = vld [vmem:[%s2604 + $0x94] sm:$0xf]
          %v2643 = vld [vmem:[%s2604 + $0x98] sm:$0xf]
          %v2644 = vld [vmem:[%s2604 + $0x9c] sm:$0xf]
          %v2645 = vld [vmem:[%s2604 + $0xa0] sm:$0xf]
          %v2646 = vld [vmem:[%s2604 + $0xa4] sm:$0xf]
          %v2647 = vld [vmem:[%s2604 + $0xa8] sm:$0xf]
          %v2648 = vld [vmem:[%s2604 + $0xac] sm:$0xf]
          %v2649 = vld [vmem:[%s2604 + $0xb0] sm:$0xf]
          %v2650 = vld [vmem:[%s2604 + $0xb4] sm:$0xf]
          %v2651 = vld [vmem:[%s2604 + $0xb8] sm:$0xf]
          %v2652 = vld [vmem:[%s2604 + $0xbc] sm:$0xf]
          %v2701 = vunpack.c.l.b16 %v2605
          %v2702 = vunpack.c.l.b16 %v2606
          %v2703 = vunpack.c.l.b16 %v2607
          %v2704 = vunpack.c.l.b16 %v2608
          %v2705 = vunpack.c.l.b16 %v2609
          %v2706 = vunpack.c.l.b16 %v2610
          %v2707 = vunpack.c.l.b16 %v2611
          %v2708 = vunpack.c.l.b16 %v2612
          %v2709 = vunpack.c.l.b16 %v2613
          %v2710 = vunpack.c.l.b16 %v2614
          %v2711 = vunpack.c.l.b16 %v2615
          %v2712 = vunpack.c.l.b16 %v2616
          %v2713 = vunpack.c.l.b16 %v2617
          %v2714 = vunpack.c.l.b16 %v2618
          %v2715 = vunpack.c.l.b16 %v2619
          %v2716 = vunpack.c.l.b16 %v2620
          %v2717 = vunpack.c.l.b16 %v2621
          %v2718 = vunpack.c.l.b16 %v2622
          %v2719 = vunpack.c.l.b16 %v2623
          %v2720 = vunpack.c.l.b16 %v2624
          %v2721 = vunpack.c.l.b16 %v2625
          %v2722 = vunpack.c.l.b16 %v2626
          %v2723 = vunpack.c.l.b16 %v2627
          %v2724 = vunpack.c.l.b16 %v2628
          %v2725 = vunpack.c.l.b16 %v2629
          %v2726 = vunpack.c.l.b16 %v2630
          %v2727 = vunpack.c.l.b16 %v2631
          %v2728 = vunpack.c.l.b16 %v2632
          %v2729 = vunpack.c.l.b16 %v2633
          %v2730 = vunpack.c.l.b16 %v2634
          %v2731 = vunpack.c.l.b16 %v2635
          %v2732 = vunpack.c.l.b16 %v2636
          %v2733 = vunpack.c.l.b16 %v2637
          %v2734 = vunpack.c.l.b16 %v2638
          %v2735 = vunpack.c.l.b16 %v2639
          %v2736 = vunpack.c.l.b16 %v2640
          %v2737 = vunpack.c.l.b16 %v2641
          %v2738 = vunpack.c.l.b16 %v2642
          %v2739 = vunpack.c.l.b16 %v2643
          %v2740 = vunpack.c.l.b16 %v2644
          %v2741 = vunpack.c.l.b16 %v2645
          %v2742 = vunpack.c.l.b16 %v2646
          %v2743 = vunpack.c.l.b16 %v2647
          %v2744 = vunpack.c.l.b16 %v2648
          %v2745 = vunpack.c.l.b16 %v2649
          %v2746 = vunpack.c.l.b16 %v2650
          %v2747 = vunpack.c.l.b16 %v2651
          %v2748 = vunpack.c.l.b16 %v2652
          %v2749 = vpack.c.b16 %v2702, %v2701
          %v2750 = vpack.c.b16 %v2704, %v2703
          %v2751 = vpack.c.b16 %v2706, %v2705
          %v2752 = vpack.c.b16 %v2708, %v2707
          %v2753 = vpack.c.b16 %v2710, %v2709
          %v2754 = vpack.c.b16 %v2712, %v2711
          %v2755 = vpack.c.b16 %v2714, %v2713
          %v2756 = vpack.c.b16 %v2716, %v2715
          %v2757 = vpack.c.b16 %v2718, %v2717
          %v2758 = vpack.c.b16 %v2720, %v2719
          %v2759 = vpack.c.b16 %v2722, %v2721
          %v2760 = vpack.c.b16 %v2724, %v2723
          %v2761 = vpack.c.b16 %v2726, %v2725
          %v2762 = vpack.c.b16 %v2728, %v2727
          %v2763 = vpack.c.b16 %v2730, %v2729
          %v2764 = vpack.c.b16 %v2732, %v2731
          %v2765 = vpack.c.b16 %v2734, %v2733
          %v2766 = vpack.c.b16 %v2736, %v2735
          %v2767 = vpack.c.b16 %v2738, %v2737
          %v2768 = vpack.c.b16 %v2740, %v2739
          %v2769 = vpack.c.b16 %v2742, %v2741
          %v2770 = vpack.c.b16 %v2744, %v2743
          %v2771 = vpack.c.b16 %v2746, %v2745
          %v2772 = vpack.c.b16 %v2748, %v2747
          %2797 = vmatprep.subr.bf16.mxu0 0
          %2798 = vmatpush1.bf16.msra.mxu0 %v2749
          %2799 = vmatprep.subr.bf16.mxu0 0
          %2800 = vmatpush1.bf16.msra.mxu0 %v2750
          %2801 = vmatprep.subr.bf16.mxu0 0
          %2802 = vmatpush1.bf16.msra.mxu0 %v2751
          %2803 = vmatprep.subr.bf16.mxu0 0
          %2804 = vmatpush1.bf16.msra.mxu0 %v2752
          %2805 = vmatprep.subr.bf16.mxu0 0
          %2806 = vmatpush1.bf16.msra.mxu0 %v2753
          %2807 = vmatprep.subr.bf16.mxu0 0
          %2808 = vmatpush1.bf16.msra.mxu0 %v2754
          %2809 = vmatprep.subr.bf16.mxu0 0
          %2810 = vmatpush1.bf16.msra.mxu0 %v2755
          %2811 = vmatprep.subr.bf16.mxu0 0
          %2812 = vmatpush1.bf16.msra.mxu0 %v2756
          %2813 = vmatprep.subr.bf16.mxu0 0
          %2814 = vmatpush1.bf16.msra.mxu0 %v2757
          %2815 = vmatprep.subr.bf16.mxu0 0
          %2816 = vmatpush1.bf16.msra.mxu0 %v2758
          %2817 = vmatprep.subr.bf16.mxu0 0
          %2818 = vmatpush1.bf16.msra.mxu0 %v2759
          %2819 = vmatprep.subr.bf16.mxu0 0
          %2820 = vmatpush1.bf16.msra.mxu0 %v2760
          %2821 = vmatprep.subr.bf16.mxu0 0
          %2822 = vmatpush1.bf16.msra.mxu0 %v2761
          %2823 = vmatprep.subr.bf16.mxu0 0
          %2824 = vmatpush1.bf16.msra.mxu0 %v2762
          %2825 = vmatprep.subr.bf16.mxu0 0
          %2826 = vmatpush1.bf16.msra.mxu0 %v2763
          %2827 = vmatprep.subr.bf16.mxu0 0
          %2828 = vmatpush1.bf16.msra.mxu0 %v2764
          %2829 = vmatprep.mubr.bf16.mxu0 %v2557
          %2830 = vmatmul.mubr.bf16.gmra.mrb[0].mxu0 %v2556
          %v2831 = vpop.f32.mrb[0].mxu0
          %v2832 = vadd.f32 0.0, %v2831
          %v2833 = vpop.f32.mrb[0].mxu0
          %v2834 = vpop.f32.mrb[0].mxu0
          %v2835 = vadd.f32 0.0, %v2834
          %v2836 = vpop.f32.mrb[0].mxu0
          %2837 = vmatprep.mubr.bf16.mxu0 %v2560
          %2838 = vmatmul.mubr.bf16.gmra.mrb[0].mxu0 %v2559
          %v2839 = vpop.f32.mrb[0].mxu0
          %v2840 = vadd.f32 0.0, %v2839
          %v2841 = vpop.f32.mrb[0].mxu0
          %v2842 = vpop.f32.mrb[0].mxu0
          %v2843 = vadd.f32 0.0, %v2842
          %v2844 = vpop.f32.mrb[0].mxu0
          %2845 = vmatprep.mubr.bf16.mxu0 %v2563
          %2846 = vmatmul.mubr.bf16.gmra.mrb[0].mxu0 %v2562
          %v2847 = vpop.f32.mrb[0].mxu0
          %v2848 = vadd.f32 0.0, %v2847
          %v2849 = vpop.f32.mrb[0].mxu0
          %v2850 = vpop.f32.mrb[0].mxu0
          %v2851 = vadd.f32 0.0, %v2850
          %v2852 = vpop.f32.mrb[0].mxu0
          %2853 = vmatprep.mubr.bf16.mxu0 %v2566
          %2854 = vmatmul.mubr.bf16.gmra.mrb[0].mxu0 %v2565
          %v2855 = vpop.f32.mrb[0].mxu0
          %v2856 = vadd.f32 0.0, %v2855
          %v2857 = vpop.f32.mrb[0].mxu0
          %v2858 = vpop.f32.mrb[0].mxu0
          %v2859 = vadd.f32 0.0, %v2858
          %v2860 = vpop.f32.mrb[0].mxu0
          %2861 = vmatprep.mubr.bf16.mxu0 %v2569
          %2862 = vmatmul.mubr.bf16.gmra.mrb[0].mxu0 %v2568
          %v2863 = vpop.f32.mrb[0].mxu0
          %v2864 = vadd.f32 0.0, %v2863
          %v2865 = vpop.f32.mrb[0].mxu0
          %v2866 = vpop.f32.mrb[0].mxu0
          %v2867 = vadd.f32 0.0, %v2866
          %v2868 = vpop.f32.mrb[0].mxu0
          %2869 = vmatprep.mubr.bf16.mxu0 %v2572
          %2870 = vmatmul.mubr.bf16.gmra.mrb[0].mxu0 %v2571
          %v2871 = vpop.f32.mrb[0].mxu0
          %v2872 = vadd.f32 0.0, %v2871
          %v2873 = vpop.f32.mrb[0].mxu0
          %v2874 = vpop.f32.mrb[0].mxu0
          %v2875 = vadd.f32 0.0, %v2874
          %v2876 = vpop.f32.mrb[0].mxu0
          %2877 = vmatprep.mubr.bf16.mxu0 %v2575
          %2878 = vmatmul.mubr.bf16.gmra.mrb[0].mxu0 %v2574
          %v2879 = vpop.f32.mrb[0].mxu0
          %v2880 = vadd.f32 0.0, %v2879
          %v2881 = vpop.f32.mrb[0].mxu0
          %v2882 = vpop.f32.mrb[0].mxu0
          %v2883 = vadd.f32 0.0, %v2882
          %v2884 = vpop.f32.mrb[0].mxu0
          %2885 = vmatprep.mubr.bf16.mxu0 %v2578
          %2886 = vmatmul.mubr.bf16.gmra.mrb[0].mxu0 %v2577
          %v2887 = vpop.f32.mrb[0].mxu0
          %v2888 = vadd.f32 0.0, %v2887
          %v2889 = vpop.f32.mrb[0].mxu0
          %v2890 = vpop.f32.mrb[0].mxu0
          %v2891 = vadd.f32 0.0, %v2890
          %v2892 = vpop.f32.mrb[0].mxu0
          %2893 = vmatprep.mubr.bf16.mxu0 %v2581
          %2894 = vmatmul.mubr.bf16.gmra.mrb[0].mxu0 %v2580
          %v2895 = vpop.f32.mrb[0].mxu0
          %v2896 = vadd.f32 0.0, %v2895
          %v2897 = vpop.f32.mrb[0].mxu0
          %v2898 = vpop.f32.mrb[0].mxu0
          %v2899 = vadd.f32 0.0, %v2898
          %v2900 = vpop.f32.mrb[0].mxu0
          %2901 = vmatprep.mubr.bf16.mxu0 %v2584
          %2902 = vmatmul.mubr.bf16.gmra.mrb[0].mxu0 %v2583
          %v2903 = vpop.f32.mrb[0].mxu0
          %v2904 = vadd.f32 0.0, %v2903
          %v2905 = vpop.f32.mrb[0].mxu0
          %v2906 = vpop.f32.mrb[0].mxu0
          %v2907 = vadd.f32 0.0, %v2906
          %v2908 = vpop.f32.mrb[0].mxu0
          %2909 = vmatprep.mubr.bf16.mxu0 %v2587
          %2910 = vmatmul.mubr.bf16.gmra.mrb[0].mxu0 %v2586
          %v2911 = vpop.f32.mrb[0].mxu0
          %v2912 = vadd.f32 0.0, %v2911
          %v2913 = vpop.f32.mrb[0].mxu0
          %v2914 = vpop.f32.mrb[0].mxu0
          %v2915 = vadd.f32 0.0, %v2914
          %v2916 = vpop.f32.mrb[0].mxu0
          %2917 = vmatprep.mubr.bf16.mxu0 %v2590
          %2918 = vmatmul.mubr.bf16.gmra.mrb[0].mxu0 %v2589
          %v2919 = vpop.f32.mrb[0].mxu0
          %v2920 = vadd.f32 0.0, %v2919
          %v2921 = vpop.f32.mrb[0].mxu0
          %v2922 = vpop.f32.mrb[0].mxu0
          %v2923 = vadd.f32 0.0, %v2922
          %v2924 = vpop.f32.mrb[0].mxu0
          %2925 = vmatprep.mubr.bf16.mxu0 %v2593
          %2926 = vmatmul.mubr.bf16.gmra.mrb[0].mxu0 %v2592
          %v2927 = vpop.f32.mrb[0].mxu0
          %v2928 = vadd.f32 0.0, %v2927
          %v2929 = vpop.f32.mrb[0].mxu0
          %v2930 = vpop.f32.mrb[0].mxu0
          %v2931 = vadd.f32 0.0, %v2930
          %v2932 = vpop.f32.mrb[0].mxu0
          %2933 = vmatprep.mubr.bf16.mxu0 %v2596
          %2934 = vmatmul.mubr.bf16.gmra.mrb[0].mxu0 %v2595
          %v2935 = vpop.f32.mrb[0].mxu0
          %v2936 = vadd.f32 0.0, %v2935
          %v2937 = vpop.f32.mrb[0].mxu0
          %v2938 = vpop.f32.mrb[0].mxu0
          %v2939 = vadd.f32 0.0, %v2938
          %v2940 = vpop.f32.mrb[0].mxu0
          %2941 = vmatprep.mubr.bf16.mxu0 %v2599
          %2942 = vmatmul.mubr.bf16.gmra.mrb[0].mxu0 %v2598
          %v2943 = vpop.f32.mrb[0].mxu0
          %v2944 = vadd.f32 0.0, %v2943
          %v2945 = vpop.f32.mrb[0].mxu0
          %v2946 = vpop.f32.mrb[0].mxu0
          %v2947 = vadd.f32 0.0, %v2946
          %v2948 = vpop.f32.mrb[0].mxu0
          %2949 = vmatprep.mubr.bf16.mxu0 %v2602
          %2950 = vmatmul.mubr.bf16.gmra.mrb[0].mxu0 %v2601
          %v2951 = vpop.f32.mrb[0].mxu0
          %v2952 = vadd.f32 0.0, %v2951
          %v2953 = vpop.f32.mrb[0].mxu0
          %v2954 = vpop.f32.mrb[0].mxu0
          %v2955 = vadd.f32 0.0, %v2954
          %v2956 = vpop.f32.mrb[0].mxu0
          %2957 = vdwg.mxu0
          %2958 = vmatprep.subr.bf16.mxu0 0
          %2959 = vmatpush1.bf16.msra.mxu0 %v2765
          %2960 = vmatprep.subr.bf16.mxu0 0
          %2961 = vmatpush1.bf16.msra.mxu0 %v2766
          %2962 = vmatprep.subr.bf16.mxu0 0
          %2963 = vmatpush1.bf16.msra.mxu0 %v2767
          %2964 = vmatprep.subr.bf16.mxu0 0
          %2965 = vmatpush1.bf16.msra.mxu0 %v2768
          %2966 = vmatprep.subr.bf16.mxu0 0
          %2967 = vmatpush1.bf16.msra.mxu0 %v2769
          %2968 = vmatprep.subr.bf16.mxu0 0
          %2969 = vmatpush1.bf16.msra.mxu0 %v2770
          %2970 = vmatprep.subr.bf16.mxu0 0
          %2971 = vmatpush1.bf16.msra.mxu0 %v2771
          %2972 = vmatprep.subr.bf16.mxu0 0
          %2973 = vmatpush1.bf16.msra.mxu0 %v2772
          %2974 = vmatprep.subr.bf16.mxu0 0
          %2975 = vmatpush1.bf16.msra.mxu0 0
          %2976 = vmatprep.subr.bf16.mxu0 0
          %2977 = vmatpush1.bf16.msra.mxu0 0
          %2978 = vmatprep.subr.bf16.mxu0 0
          %2979 = vmatpush1.bf16.msra.mxu0 0
          %2980 = vmatprep.subr.bf16.mxu0 0
          %2981 = vmatpush1.bf16.msra.mxu0 0
          %2982 = vmatprep.subr.bf16.mxu0 0
          %2983 = vmatpush1.bf16.msra.mxu0 0
          %2984 = vmatprep.subr.bf16.mxu0 0
          %2985 = vmatpush1.bf16.msra.mxu0 0
          %2986 = vmatprep.subr.bf16.mxu0 0
          %2987 = vmatpush1.bf16.msra.mxu0 0
          %2988 = vmatprep.subr.bf16.mxu0 0
          %2989 = vmatpush1.bf16.msra.mxu0 0
          %2990 = vmatprep.mubr.bf16.mxu0 0
          %2991 = vmatmul.mubr.bf16.gmra.mrb[0].mxu0 %v2558
          %v2992 = vpop.f32.mrb[0].mxu0
          %v2993 = vadd.f32 %v2832, %v2992
          %v2994 = vpop.f32.mrb[0].mxu0
          %v2995 = vpop.f32.mrb[0].mxu0
          %v2996 = vadd.f32 %v2835, %v2995
          %v2997 = vpop.f32.mrb[0].mxu0
          %2998 = vmatprep.mubr.bf16.mxu0 0
          %2999 = vmatmul.mubr.bf16.gmra.mrb[0].mxu0 %v2561
          %v3000 = vpop.f32.mrb[0].mxu0
          %v3001 = vadd.f32 %v2840, %v3000
          %v3002 = vpop.f32.mrb[0].mxu0
          %v3003 = vpop.f32.mrb[0].mxu0
          %v3004 = vadd.f32 %v2843, %v3003
          %v3005 = vpop.f32.mrb[0].mxu0
          %3006 = vmatprep.mubr.bf16.mxu0 0
          %3007 = vmatmul.mubr.bf16.gmra.mrb[0].mxu0 %v2564
          %v3008 = vpop.f32.mrb[0].mxu0
          %v3009 = vadd.f32 %v2848, %v3008
          %v3010 = vpop.f32.mrb[0].mxu0
          %v3011 = vpop.f32.mrb[0].mxu0
          %v3012 = vadd.f32 %v2851, %v3011
          %v3013 = vpop.f32.mrb[0].mxu0
          %3014 = vmatprep.mubr.bf16.mxu0 0
          %3015 = vmatmul.mubr.bf16.gmra.mrb[0].mxu0 %v2567
          %v3016 = vpop.f32.mrb[0].mxu0
          %v3017 = vadd.f32 %v2856, %v3016
          %v3018 = vpop.f32.mrb[0].mxu0
          %v3019 = vpop.f32.mrb[0].mxu0
          %v3020 = vadd.f32 %v2859, %v3019
          %v3021 = vpop.f32.mrb[0].mxu0
          %3022 = vmatprep.mubr.bf16.mxu0 0
          %3023 = vmatmul.mubr.bf16.gmra.mrb[0].mxu0 %v2570
          %v3024 = vpop.f32.mrb[0].mxu0
          %v3025 = vadd.f32 %v2864, %v3024
          %v3026 = vpop.f32.mrb[0].mxu0
          %v3027 = vpop.f32.mrb[0].mxu0
          %v3028 = vadd.f32 %v2867, %v3027
          %v3029 = vpop.f32.mrb[0].mxu0
          %3030 = vmatprep.mubr.bf16.mxu0 0
          %3031 = vmatmul.mubr.bf16.gmra.mrb[0].mxu0 %v2573
          %v3032 = vpop.f32.mrb[0].mxu0
          %v3033 = vadd.f32 %v2872, %v3032
          %v3034 = vpop.f32.mrb[0].mxu0
          %v3035 = vpop.f32.mrb[0].mxu0
          %v3036 = vadd.f32 %v2875, %v3035
          %v3037 = vpop.f32.mrb[0].mxu0
          %3038 = vmatprep.mubr.bf16.mxu0 0
          %3039 = vmatmul.mubr.bf16.gmra.mrb[0].mxu0 %v2576
          %v3040 = vpop.f32.mrb[0].mxu0
          %v3041 = vadd.f32 %v2880, %v3040
          %v3042 = vpop.f32.mrb[0].mxu0
          %v3043 = vpop.f32.mrb[0].mxu0
          %v3044 = vadd.f32 %v2883, %v3043
          %v3045 = vpop.f32.mrb[0].mxu0
          %3046 = vmatprep.mubr.bf16.mxu0 0
          %3047 = vmatmul.mubr.bf16.gmra.mrb[0].mxu0 %v2579
          %v3048 = vpop.f32.mrb[0].mxu0
          %v3049 = vadd.f32 %v2888, %v3048
          %v3050 = vpop.f32.mrb[0].mxu0
          %v3051 = vpop.f32.mrb[0].mxu0
          %v3052 = vadd.f32 %v2891, %v3051
          %v3053 = vpop.f32.mrb[0].mxu0
          %3054 = vmatprep.mubr.bf16.mxu0 0
          %3055 = vmatmul.mubr.bf16.gmra.mrb[0].mxu0 %v2582
          %v3056 = vpop.f32.mrb[0].mxu0
          %v3057 = vadd.f32 %v2896, %v3056
          %v3058 = vpop.f32.mrb[0].mxu0
          %v3059 = vpop.f32.mrb[0].mxu0
          %v3060 = vadd.f32 %v2899, %v3059
          %v3061 = vpop.f32.mrb[0].mxu0
          %3062 = vmatprep.mubr.bf16.mxu0 0
          %3063 = vmatmul.mubr.bf16.gmra.mrb[0].mxu0 %v2585
          %v3064 = vpop.f32.mrb[0].mxu0
          %v3065 = vadd.f32 %v2904, %v3064
          %v3066 = vpop.f32.mrb[0].mxu0
          %v3067 = vpop.f32.mrb[0].mxu0
          %v3068 = vadd.f32 %v2907, %v3067
          %v3069 = vpop.f32.mrb[0].mxu0
          %3070 = vmatprep.mubr.bf16.mxu0 0
          %3071 = vmatmul.mubr.bf16.gmra.mrb[0].mxu0 %v2588
          %v3072 = vpop.f32.mrb[0].mxu0
          %v3073 = vadd.f32 %v2912, %v3072
          %v3074 = vpop.f32.mrb[0].mxu0
          %v3075 = vpop.f32.mrb[0].mxu0
          %v3076 = vadd.f32 %v2915, %v3075
          %v3077 = vpop.f32.mrb[0].mxu0
          %3078 = vmatprep.mubr.bf16.mxu0 0
          %3079 = vmatmul.mubr.bf16.gmra.mrb[0].mxu0 %v2591
          %v3080 = vpop.f32.mrb[0].mxu0
          %v3081 = vadd.f32 %v2920, %v3080
          %v3082 = vpop.f32.mrb[0].mxu0
          %v3083 = vpop.f32.mrb[0].mxu0
          %v3084 = vadd.f32 %v2923, %v3083
          %v3085 = vpop.f32.mrb[0].mxu0
          %3086 = vmatprep.mubr.bf16.mxu0 0
          %3087 = vmatmul.mubr.bf16.gmra.mrb[0].mxu0 %v2594
          %v3088 = vpop.f32.mrb[0].mxu0
          %v3089 = vadd.f32 %v2928, %v3088
          %v3090 = vpop.f32.mrb[0].mxu0
          %v3091 = vpop.f32.mrb[0].mxu0
          %v3092 = vadd.f32 %v2931, %v3091
          %v3093 = vpop.f32.mrb[0].mxu0
          %3094 = vmatprep.mubr.bf16.mxu0 0
          %3095 = vmatmul.mubr.bf16.gmra.mrb[0].mxu0 %v2597
          %v3096 = vpop.f32.mrb[0].mxu0
          %v3097 = vadd.f32 %v2936, %v3096
          %v3098 = vpop.f32.mrb[0].mxu0
          %v3099 = vpop.f32.mrb[0].mxu0
          %v3100 = vadd.f32 %v2939, %v3099
          %v3101 = vpop.f32.mrb[0].mxu0
          %3102 = vmatprep.mubr.bf16.mxu0 0
          %3103 = vmatmul.mubr.bf16.gmra.mrb[0].mxu0 %v2600
          %v3104 = vpop.f32.mrb[0].mxu0
          %v3105 = vadd.f32 %v2944, %v3104
          %v3106 = vpop.f32.mrb[0].mxu0
          %v3107 = vpop.f32.mrb[0].mxu0
          %v3108 = vadd.f32 %v2947, %v3107
          %v3109 = vpop.f32.mrb[0].mxu0
          %3110 = vmatprep.mubr.bf16.mxu0 0
          %3111 = vmatmul.mubr.bf16.gmra.mrb[0].mxu0 %v2603
          %v3112 = vpop.f32.mrb[0].mxu0
          %v3113 = vadd.f32 %v2952, %v3112
          %v3114 = vpop.f32.mrb[0].mxu0
          %v3115 = vpop.f32.mrb[0].mxu0
          %v3116 = vadd.f32 %v2955, %v3115
          %v3117 = vpop.f32.mrb[0].mxu0
          %3118 = vdwg.mxu0
          %v3119 = vadd.f32 %v2426, %v2993
          %v3120 = vadd.f32 %v2429, %v2996
          %v3121 = vadd.f32 %v2434, %v3001
          %v3122 = vadd.f32 %v2437, %v3004
          %v3123 = vadd.f32 %v2442, %v3009
          %v3124 = vadd.f32 %v2445, %v3012
          %v3125 = vadd.f32 %v2450, %v3017
          %v3126 = vadd.f32 %v2453, %v3020
          %v3127 = vadd.f32 %v2458, %v3025
          %v3128 = vadd.f32 %v2461, %v3028
          %v3129 = vadd.f32 %v2466, %v3033
          %v3130 = vadd.f32 %v2469, %v3036
          %v3131 = vadd.f32 %v2474, %v3041
          %v3132 = vadd.f32 %v2477, %v3044
          %v3133 = vadd.f32 %v2482, %v3049
          %v3134 = vadd.f32 %v2485, %v3052
          %v3135 = vadd.f32 %v2490, %v3057
          %v3136 = vadd.f32 %v2493, %v3060
          %v3137 = vadd.f32 %v2498, %v3065
          %v3138 = vadd.f32 %v2501, %v3068
          %v3139 = vadd.f32 %v2506, %v3073
          %v3140 = vadd.f32 %v2509, %v3076
          %v3141 = vadd.f32 %v2514, %v3081
          %v3142 = vadd.f32 %v2517, %v3084
          %v3143 = vadd.f32 %v2522, %v3089
          %v3144 = vadd.f32 %v2525, %v3092
          %v3145 = vadd.f32 %v2530, %v3097
          %v3146 = vadd.f32 %v2533, %v3100
          %v3147 = vadd.f32 %v2538, %v3105
          %v3148 = vadd.f32 %v2541, %v3108
          %v3149 = vadd.f32 %v2546, %v3113
          %v3150 = vadd.f32 %v2549, %v3116
          %v3151 = vld [vmem:[#allocation11] sm:$0x1]
          %v3153 = vlaneseq
          %v3154 = vshrl.u32 %v3153, 7
          %v3155 = vsub.s32 0, %v3154
          %v3156 = vrot.slane %v3151, %v3155
          %v3158 = vadd.f32 %v3119, %v3156
          %v3159 = vadd.f32 %v3120, %v3156
          %v3160 = vadd.f32 %v3121, %v3156
          %v3161 = vadd.f32 %v3122, %v3156
          %v3162 = vadd.f32 %v3123, %v3156
          %v3163 = vadd.f32 %v3124, %v3156
          %v3164 = vadd.f32 %v3125, %v3156
          %v3165 = vadd.f32 %v3126, %v3156
          %v3166 = vadd.f32 %v3127, %v3156
          %v3167 = vadd.f32 %v3128, %v3156
          %v3168 = vadd.f32 %v3129, %v3156
          %v3169 = vadd.f32 %v3130, %v3156
          %v3170 = vadd.f32 %v3131, %v3156
          %v3171 = vadd.f32 %v3132, %v3156
          %v3172 = vadd.f32 %v3133, %v3156
          %v3173 = vadd.f32 %v3134, %v3156
          %v3174 = vadd.f32 %v3135, %v3156
          %v3175 = vadd.f32 %v3136, %v3156
          %v3176 = vadd.f32 %v3137, %v3156
          %v3177 = vadd.f32 %v3138, %v3156
          %v3178 = vadd.f32 %v3139, %v3156
          %v3179 = vadd.f32 %v3140, %v3156
          %v3180 = vadd.f32 %v3141, %v3156
          %v3181 = vadd.f32 %v3142, %v3156
          %v3182 = vadd.f32 %v3143, %v3156
          %v3183 = vadd.f32 %v3144, %v3156
          %v3184 = vadd.f32 %v3145, %v3156
          %v3185 = vadd.f32 %v3146, %v3156
          %v3186 = vadd.f32 %v3147, %v3156
          %v3187 = vadd.f32 %v3148, %v3156
          %v3188 = vadd.f32 %v3149, %v3156
          %v3189 = vadd.f32 %v3150, %v3156
          %v3190 = vmax.f32 %v3158, 0.0
          %v3191 = vmax.f32 %v3159, 0.0
          %v3192 = vmax.f32 %v3160, 0.0
          %v3193 = vmax.f32 %v3161, 0.0
          %v3194 = vmax.f32 %v3162, 0.0
          %v3195 = vmax.f32 %v3163, 0.0
          %v3196 = vmax.f32 %v3164, 0.0
          %v3197 = vmax.f32 %v3165, 0.0
          %v3198 = vmax.f32 %v3166, 0.0
          %v3199 = vmax.f32 %v3167, 0.0
          %v3200 = vmax.f32 %v3168, 0.0
          %v3201 = vmax.f32 %v3169, 0.0
          %v3202 = vmax.f32 %v3170, 0.0
          %v3203 = vmax.f32 %v3171, 0.0
          %v3204 = vmax.f32 %v3172, 0.0
          %v3205 = vmax.f32 %v3173, 0.0
          %v3206 = vmax.f32 %v3174, 0.0
          %v3207 = vmax.f32 %v3175, 0.0
          %v3208 = vmax.f32 %v3176, 0.0
          %v3209 = vmax.f32 %v3177, 0.0
          %v3210 = vmax.f32 %v3178, 0.0
          %v3211 = vmax.f32 %v3179, 0.0
          %v3212 = vmax.f32 %v3180, 0.0
          %v3213 = vmax.f32 %v3181, 0.0
          %v3214 = vmax.f32 %v3182, 0.0
          %v3215 = vmax.f32 %v3183, 0.0
          %v3216 = vmax.f32 %v3184, 0.0
          %v3217 = vmax.f32 %v3185, 0.0
          %v3218 = vmax.f32 %v3186, 0.0
          %v3219 = vmax.f32 %v3187, 0.0
          %v3220 = vmax.f32 %v3188, 0.0
          %v3221 = vmax.f32 %v3189, 0.0
          %v3222 = vpack.c.bf16 %v3191, %v3190
          %v3223 = vpack.c.bf16 %v3193, %v3192
          %v3224 = vpack.c.bf16 %v3195, %v3194
          %v3225 = vpack.c.bf16 %v3197, %v3196
          %v3226 = vpack.c.bf16 %v3199, %v3198
          %v3227 = vpack.c.bf16 %v3201, %v3200
          %v3228 = vpack.c.bf16 %v3203, %v3202
          %v3229 = vpack.c.bf16 %v3205, %v3204
          %v3230 = vpack.c.bf16 %v3207, %v3206
          %v3231 = vpack.c.bf16 %v3209, %v3208
          %v3232 = vpack.c.bf16 %v3211, %v3210
          %v3233 = vpack.c.bf16 %v3213, %v3212
          %v3234 = vpack.c.bf16 %v3215, %v3214
          %v3235 = vpack.c.bf16 %v3217, %v3216
          %v3236 = vpack.c.bf16 %v3219, %v3218
          %v3237 = vpack.c.bf16 %v3221, %v3220
          %v3238 = vld [vmem:[#allocation12] sm:$0xf]
          %v3239 = vld [vmem:[#allocation12 + $0x4] sm:$0xf]
          %v3240 = vld [vmem:[#allocation12 + $0x8] sm:$0xf]
          %v3241 = vld [vmem:[#allocation12 + $0xc] sm:$0xf]
          %v3242 = vld [vmem:[#allocation12 + $0x10] sm:$0xf]
          %v3243 = vld [vmem:[#allocation12 + $0x14] sm:$0xf]
          %v3244 = vld [vmem:[#allocation12 + $0x18] sm:$0xf]
          %v3245 = vld [vmem:[#allocation12 + $0x1c] sm:$0xf]
          %v3246 = vld [vmem:[#allocation12 + $0x20] sm:$0xf]
          %v3247 = vld [vmem:[#allocation12 + $0x24] sm:$0xf]
          %v3248 = vld [vmem:[#allocation12 + $0x28] sm:$0xf]
          %v3249 = vld [vmem:[#allocation12 + $0x2c] sm:$0xf]
          %v3250 = vld [vmem:[#allocation12 + $0x30] sm:$0xf]
          %v3251 = vld [vmem:[#allocation12 + $0x34] sm:$0xf]
          %v3252 = vld [vmem:[#allocation12 + $0x38] sm:$0xf]
          %v3253 = vld [vmem:[#allocation12 + $0x3c] sm:$0xf]
          %v3254 = vld [vmem:[#allocation14] sm:$0x1]
          %v3256 = vlaneseq
          %v3257 = vshrl.u32 %v3256, 7
          %v3258 = vsub.s32 0, %v3257
          %v3259 = vrot.slane %v3254, %v3258
          %v3277 = vunpack.c.l.b16 %v3238
          %v3278 = vunpack.c.l.b16 %v3239
          %v3279 = vunpack.c.l.b16 %v3240
          %v3280 = vunpack.c.l.b16 %v3241
          %v3281 = vunpack.c.l.b16 %v3242
          %v3282 = vunpack.c.l.b16 %v3243
          %v3283 = vunpack.c.l.b16 %v3244
          %v3284 = vunpack.c.l.b16 %v3245
          %v3285 = vunpack.c.l.b16 %v3246
          %v3286 = vunpack.c.l.b16 %v3247
          %v3287 = vunpack.c.l.b16 %v3248
          %v3288 = vunpack.c.l.b16 %v3249
          %v3289 = vunpack.c.l.b16 %v3250
          %v3290 = vunpack.c.l.b16 %v3251
          %v3291 = vunpack.c.l.b16 %v3252
          %v3292 = vunpack.c.l.b16 %v3253
          %v3293 = vpack.c.b16 %v3278, %v3277
          %v3294 = vpack.c.b16 %v3280, %v3279
          %v3295 = vpack.c.b16 %v3282, %v3281
          %v3296 = vpack.c.b16 %v3284, %v3283
          %v3297 = vpack.c.b16 %v3286, %v3285
          %v3298 = vpack.c.b16 %v3288, %v3287
          %v3299 = vpack.c.b16 %v3290, %v3289
          %v3300 = vpack.c.b16 %v3292, %v3291
          %3309 = vmatprep.subr.bf16.mxu0 0
          %3310 = vmatpush1.bf16.msra.mxu0 %v3293
          %3311 = vmatprep.subr.bf16.mxu0 0
          %3312 = vmatpush1.bf16.msra.mxu0 %v3294
          %3313 = vmatprep.subr.bf16.mxu0 0
          %3314 = vmatpush1.bf16.msra.mxu0 %v3295
          %3315 = vmatprep.subr.bf16.mxu0 0
          %3316 = vmatpush1.bf16.msra.mxu0 %v3296
          %3317 = vmatprep.subr.bf16.mxu0 0
          %3318 = vmatpush1.bf16.msra.mxu0 %v3297
          %3319 = vmatprep.subr.bf16.mxu0 0
          %3320 = vmatpush1.bf16.msra.mxu0 %v3298
          %3321 = vmatprep.subr.bf16.mxu0 0
          %3322 = vmatpush1.bf16.msra.mxu0 %v3299
          %3323 = vmatprep.subr.bf16.mxu0 0
          %3324 = vmatpush1.bf16.msra.mxu0 %v3300
          %3325 = vmatprep.subr.bf16.mxu0 0
          %3326 = vmatpush1.bf16.msra.mxu0 0
          %3327 = vmatprep.subr.bf16.mxu0 0
          %3328 = vmatpush1.bf16.msra.mxu0 0
          %3329 = vmatprep.subr.bf16.mxu0 0
          %3330 = vmatpush1.bf16.msra.mxu0 0
          %3331 = vmatprep.subr.bf16.mxu0 0
          %3332 = vmatpush1.bf16.msra.mxu0 0
          %3333 = vmatprep.subr.bf16.mxu0 0
          %3334 = vmatpush1.bf16.msra.mxu0 0
          %3335 = vmatprep.subr.bf16.mxu0 0
          %3336 = vmatpush1.bf16.msra.mxu0 0
          %3337 = vmatprep.subr.bf16.mxu0 0
          %3338 = vmatpush1.bf16.msra.mxu0 0
          %3339 = vmatprep.subr.bf16.mxu0 0
          %3340 = vmatpush1.bf16.msra.mxu0 0
          %3341 = vmatprep.mubr.bf16.mxu0 0
          %3342 = vmatmul.mubr.bf16.gmra.mrb[0].mxu0 %v3222
          %v3343 = vpop.f32.mrb[0].mxu0
          %v3344 = vadd.f32 %v3259, %v3343
          %v3345 = vpop.f32.mrb[0].mxu0
          %v3346 = vpop.f32.mrb[0].mxu0
          %v3347 = vadd.f32 %v3259, %v3346
          %v3348 = vpop.f32.mrb[0].mxu0
          %3349 = vmatprep.mubr.bf16.mxu0 0
          %3350 = vmatmul.mubr.bf16.gmra.mrb[0].mxu0 %v3223
          %v3351 = vpop.f32.mrb[0].mxu0
          %v3352 = vadd.f32 %v3259, %v3351
          %v3353 = vpop.f32.mrb[0].mxu0
          %v3354 = vpop.f32.mrb[0].mxu0
          %v3355 = vadd.f32 %v3259, %v3354
          %v3356 = vpop.f32.mrb[0].mxu0
          %3357 = vmatprep.mubr.bf16.mxu0 0
          %3358 = vmatmul.mubr.bf16.gmra.mrb[0].mxu0 %v3224
          %v3359 = vpop.f32.mrb[0].mxu0
          %v3360 = vadd.f32 %v3259, %v3359
          %v3361 = vpop.f32.mrb[0].mxu0
          %v3362 = vpop.f32.mrb[0].mxu0
          %v3363 = vadd.f32 %v3259, %v3362
          %v3364 = vpop.f32.mrb[0].mxu0
          %3365 = vmatprep.mubr.bf16.mxu0 0
          %3366 = vmatmul.mubr.bf16.gmra.mrb[0].mxu0 %v3225
          %v3367 = vpop.f32.mrb[0].mxu0
          %v3368 = vadd.f32 %v3259, %v3367
          %v3369 = vpop.f32.mrb[0].mxu0
          %v3370 = vpop.f32.mrb[0].mxu0
          %v3371 = vadd.f32 %v3259, %v3370
          %v3372 = vpop.f32.mrb[0].mxu0
          %3373 = vmatprep.mubr.bf16.mxu0 0
          %3374 = vmatmul.mubr.bf16.gmra.mrb[0].mxu0 %v3226
          %v3375 = vpop.f32.mrb[0].mxu0
          %v3376 = vadd.f32 %v3259, %v3375
          %v3377 = vpop.f32.mrb[0].mxu0
          %v3378 = vpop.f32.mrb[0].mxu0
          %v3379 = vadd.f32 %v3259, %v3378
          %v3380 = vpop.f32.mrb[0].mxu0
          %3381 = vmatprep.mubr.bf16.mxu0 0
          %3382 = vmatmul.mubr.bf16.gmra.mrb[0].mxu0 %v3227
          %v3383 = vpop.f32.mrb[0].mxu0
          %v3384 = vadd.f32 %v3259, %v3383
          %v3385 = vpop.f32.mrb[0].mxu0
          %v3386 = vpop.f32.mrb[0].mxu0
          %v3387 = vadd.f32 %v3259, %v3386
          %v3388 = vpop.f32.mrb[0].mxu0
          %3389 = vmatprep.mubr.bf16.mxu0 0
          %3390 = vmatmul.mubr.bf16.gmra.mrb[0].mxu0 %v3228
          %v3391 = vpop.f32.mrb[0].mxu0
          %v3392 = vadd.f32 %v3259, %v3391
          %v3393 = vpop.f32.mrb[0].mxu0
          %v3394 = vpop.f32.mrb[0].mxu0
          %v3395 = vadd.f32 %v3259, %v3394
          %v3396 = vpop.f32.mrb[0].mxu0
          %3397 = vmatprep.mubr.bf16.mxu0 0
          %3398 = vmatmul.mubr.bf16.gmra.mrb[0].mxu0 %v3229
          %v3399 = vpop.f32.mrb[0].mxu0
          %v3400 = vadd.f32 %v3259, %v3399
          %v3401 = vpop.f32.mrb[0].mxu0
          %v3402 = vpop.f32.mrb[0].mxu0
          %v3403 = vadd.f32 %v3259, %v3402
          %v3404 = vpop.f32.mrb[0].mxu0
          %3405 = vmatprep.mubr.bf16.mxu0 0
          %3406 = vmatmul.mubr.bf16.gmra.mrb[0].mxu0 %v3230
          %v3407 = vpop.f32.mrb[0].mxu0
          %v3408 = vadd.f32 %v3259, %v3407
          %v3409 = vpop.f32.mrb[0].mxu0
          %v3410 = vpop.f32.mrb[0].mxu0
          %v3411 = vadd.f32 %v3259, %v3410
          %v3412 = vpop.f32.mrb[0].mxu0
          %3413 = vmatprep.mubr.bf16.mxu0 0
          %3414 = vmatmul.mubr.bf16.gmra.mrb[0].mxu0 %v3231
          %v3415 = vpop.f32.mrb[0].mxu0
          %v3416 = vadd.f32 %v3259, %v3415
          %v3417 = vpop.f32.mrb[0].mxu0
          %v3418 = vpop.f32.mrb[0].mxu0
          %v3419 = vadd.f32 %v3259, %v3418
          %v3420 = vpop.f32.mrb[0].mxu0
          %3421 = vmatprep.mubr.bf16.mxu0 0
          %3422 = vmatmul.mubr.bf16.gmra.mrb[0].mxu0 %v3232
          %v3423 = vpop.f32.mrb[0].mxu0
          %v3424 = vadd.f32 %v3259, %v3423
          %v3425 = vpop.f32.mrb[0].mxu0
          %v3426 = vpop.f32.mrb[0].mxu0
          %v3427 = vadd.f32 %v3259, %v3426
          %v3428 = vpop.f32.mrb[0].mxu0
          %3429 = vmatprep.mubr.bf16.mxu0 0
          %3430 = vmatmul.mubr.bf16.gmra.mrb[0].mxu0 %v3233
          %v3431 = vpop.f32.mrb[0].mxu0
          %v3432 = vadd.f32 %v3259, %v3431
          %v3433 = vpop.f32.mrb[0].mxu0
          %v3434 = vpop.f32.mrb[0].mxu0
          %v3435 = vadd.f32 %v3259, %v3434
          %v3436 = vpop.f32.mrb[0].mxu0
          %3437 = vmatprep.mubr.bf16.mxu0 0
          %3438 = vmatmul.mubr.bf16.gmra.mrb[0].mxu0 %v3234
          %v3439 = vpop.f32.mrb[0].mxu0
          %v3440 = vadd.f32 %v3259, %v3439
          %v3441 = vpop.f32.mrb[0].mxu0
          %v3442 = vpop.f32.mrb[0].mxu0
          %v3443 = vadd.f32 %v3259, %v3442
          %v3444 = vpop.f32.mrb[0].mxu0
          %3445 = vmatprep.mubr.bf16.mxu0 0
          %3446 = vmatmul.mubr.bf16.gmra.mrb[0].mxu0 %v3235
          %v3447 = vpop.f32.mrb[0].mxu0
          %v3448 = vadd.f32 %v3259, %v3447
          %v3449 = vpop.f32.mrb[0].mxu0
          %v3450 = vpop.f32.mrb[0].mxu0
          %v3451 = vadd.f32 %v3259, %v3450
          %v3452 = vpop.f32.mrb[0].mxu0
          %3453 = vmatprep.mubr.bf16.mxu0 0
          %3454 = vmatmul.mubr.bf16.gmra.mrb[0].mxu0 %v3236
          %v3455 = vpop.f32.mrb[0].mxu0
          %v3456 = vadd.f32 %v3259, %v3455
          %v3457 = vpop.f32.mrb[0].mxu0
          %v3458 = vpop.f32.mrb[0].mxu0
          %v3459 = vadd.f32 %v3259, %v3458
          %v3460 = vpop.f32.mrb[0].mxu0
          %3461 = vmatprep.mubr.bf16.mxu0 0
          %3462 = vmatmul.mubr.bf16.gmra.mrb[0].mxu0 %v3237
          %v3463 = vpop.f32.mrb[0].mxu0
          %v3464 = vadd.f32 %v3259, %v3463
          %v3465 = vpop.f32.mrb[0].mxu0
          %v3466 = vpop.f32.mrb[0].mxu0
          %v3467 = vadd.f32 %v3259, %v3466
          %v3468 = vpop.f32.mrb[0].mxu0
          %3469 = vdwg.mxu0
          %s3470 = smul.u32 %s1419, 2
          %s3471 = smul.addr %s3470, 4
          %s3472 = scalar_lea.vmem %s393, %s3471 [#allocation3]
          %v3473 = vld [vmem:[%s3472] sm:$0xf]
          %v3474 = vld [vmem:[%s3472 + $0x4] sm:$0xf]
          %v3475 = vld [vmem:[%s3472 + $0x8] sm:$0xf]
          %v3476 = vld [vmem:[%s3472 + $0xc] sm:$0xf]
          %v3477 = vld [vmem:[%s3472 + $0x10] sm:$0xf]
          %v3478 = vld [vmem:[%s3472 + $0x14] sm:$0xf]
          %v3479 = vld [vmem:[%s3472 + $0x18] sm:$0xf]
          %v3480 = vld [vmem:[%s3472 + $0x1c] sm:$0xf]
          %v3481 = vld [vmem:[%s3472 + $0x20] sm:$0xf]
          %v3482 = vld [vmem:[%s3472 + $0x24] sm:$0xf]
          %v3483 = vld [vmem:[%s3472 + $0x28] sm:$0xf]
          %v3484 = vld [vmem:[%s3472 + $0x2c] sm:$0xf]
          %v3485 = vld [vmem:[%s3472 + $0x30] sm:$0xf]
          %v3486 = vld [vmem:[%s3472 + $0x34] sm:$0xf]
          %v3487 = vld [vmem:[%s3472 + $0x38] sm:$0xf]
          %v3488 = vld [vmem:[%s3472 + $0x3c] sm:$0xf]
          %v3489 = vld [vmem:[%s3472 + $0x80] sm:$0xf]
          %v3490 = vld [vmem:[%s3472 + $0x84] sm:$0xf]
          %v3491 = vld [vmem:[%s3472 + $0x88] sm:$0xf]
          %v3492 = vld [vmem:[%s3472 + $0x8c] sm:$0xf]
          %v3493 = vld [vmem:[%s3472 + $0x90] sm:$0xf]
          %v3494 = vld [vmem:[%s3472 + $0x94] sm:$0xf]
          %v3495 = vld [vmem:[%s3472 + $0x98] sm:$0xf]
          %v3496 = vld [vmem:[%s3472 + $0x9c] sm:$0xf]
          %v3497 = vld [vmem:[%s3472 + $0xa0] sm:$0xf]
          %v3498 = vld [vmem:[%s3472 + $0xa4] sm:$0xf]
          %v3499 = vld [vmem:[%s3472 + $0xa8] sm:$0xf]
          %v3500 = vld [vmem:[%s3472 + $0xac] sm:$0xf]
          %v3501 = vld [vmem:[%s3472 + $0xb0] sm:$0xf]
          %v3502 = vld [vmem:[%s3472 + $0xb4] sm:$0xf]
          %v3503 = vld [vmem:[%s3472 + $0xb8] sm:$0xf]
          %v3504 = vld [vmem:[%s3472 + $0xbc] sm:$0xf]
          %v3505 = vld [vmem:[#allocation15] sm:$0xf]
          %v3506 = vld [vmem:[#allocation15 + $0x4] sm:$0xf]
          %v3507 = vld [vmem:[#allocation15 + $0x8] sm:$0xf]
          %v3508 = vld [vmem:[#allocation15 + $0xc] sm:$0xf]
          %v3509 = vld [vmem:[#allocation15 + $0x10] sm:$0xf]
          %v3510 = vld [vmem:[#allocation15 + $0x14] sm:$0xf]
          %v3511 = vld [vmem:[#allocation15 + $0x18] sm:$0xf]
          %v3512 = vld [vmem:[#allocation15 + $0x1c] sm:$0xf]
          %v3513 = vld [vmem:[#allocation15 + $0x20] sm:$0xf]
          %v3514 = vld [vmem:[#allocation15 + $0x24] sm:$0xf]
          %v3515 = vld [vmem:[#allocation15 + $0x28] sm:$0xf]
          %v3516 = vld [vmem:[#allocation15 + $0x2c] sm:$0xf]
          %v3517 = vld [vmem:[#allocation15 + $0x30] sm:$0xf]
          %v3518 = vld [vmem:[#allocation15 + $0x34] sm:$0xf]
          %v3519 = vld [vmem:[#allocation15 + $0x38] sm:$0xf]
          %v3520 = vld [vmem:[#allocation15 + $0x3c] sm:$0xf]
          %v3521 = vld [vmem:[#allocation17] sm:$0x1]
          %v3523 = vlaneseq
          %v3524 = vshrl.u32 %v3523, 7
          %v3525 = vsub.s32 0, %v3524
          %v3526 = vrot.slane %v3521, %v3525
          %v3560 = vunpack.c.l.b16 %v3473
          %v3561 = vunpack.c.l.b16 %v3474
          %v3562 = vunpack.c.l.b16 %v3475
          %v3563 = vunpack.c.l.b16 %v3476
          %v3564 = vunpack.c.l.b16 %v3477
          %v3565 = vunpack.c.l.b16 %v3478
          %v3566 = vunpack.c.l.b16 %v3479
          %v3567 = vunpack.c.l.b16 %v3480
          %v3568 = vunpack.c.l.b16 %v3481
          %v3569 = vunpack.c.l.b16 %v3482
          %v3570 = vunpack.c.l.b16 %v3483
          %v3571 = vunpack.c.l.b16 %v3484
          %v3572 = vunpack.c.l.b16 %v3485
          %v3573 = vunpack.c.l.b16 %v3486
          %v3574 = vunpack.c.l.b16 %v3487
          %v3575 = vunpack.c.l.b16 %v3488
          %v3576 = vunpack.c.l.b16 %v3489
          %v3577 = vunpack.c.l.b16 %v3490
          %v3578 = vunpack.c.l.b16 %v3491
          %v3579 = vunpack.c.l.b16 %v3492
          %v3580 = vunpack.c.l.b16 %v3493
          %v3581 = vunpack.c.l.b16 %v3494
          %v3582 = vunpack.c.l.b16 %v3495
          %v3583 = vunpack.c.l.b16 %v3496
          %v3584 = vunpack.c.l.b16 %v3497
          %v3585 = vunpack.c.l.b16 %v3498
          %v3586 = vunpack.c.l.b16 %v3499
          %v3587 = vunpack.c.l.b16 %v3500
          %v3588 = vunpack.c.l.b16 %v3501
          %v3589 = vunpack.c.l.b16 %v3502
          %v3590 = vunpack.c.l.b16 %v3503
          %v3591 = vunpack.c.l.b16 %v3504
          %v3592 = vpack.c.b16 %v3561, %v3560
          %v3593 = vpack.c.b16 %v3563, %v3562
          %v3594 = vpack.c.b16 %v3565, %v3564
          %v3595 = vpack.c.b16 %v3567, %v3566
          %v3596 = vpack.c.b16 %v3569, %v3568
          %v3597 = vpack.c.b16 %v3571, %v3570
          %v3598 = vpack.c.b16 %v3573, %v3572
          %v3599 = vpack.c.b16 %v3575, %v3574
          %v3600 = vpack.c.b16 %v3577, %v3576
          %v3601 = vpack.c.b16 %v3579, %v3578
          %v3602 = vpack.c.b16 %v3581, %v3580
          %v3603 = vpack.c.b16 %v3583, %v3582
          %v3604 = vpack.c.b16 %v3585, %v3584
          %v3605 = vpack.c.b16 %v3587, %v3586
          %v3606 = vpack.c.b16 %v3589, %v3588
          %v3607 = vpack.c.b16 %v3591, %v3590
          %v3640 = vunpack.c.l.b16 %v3505
          %v3641 = vunpack.c.l.b16 %v3506
          %v3642 = vunpack.c.l.b16 %v3507
          %v3643 = vunpack.c.l.b16 %v3508
          %v3644 = vunpack.c.l.b16 %v3509
          %v3645 = vunpack.c.l.b16 %v3510
          %v3646 = vunpack.c.l.b16 %v3511
          %v3647 = vunpack.c.l.b16 %v3512
          %v3648 = vunpack.c.l.b16 %v3513
          %v3649 = vunpack.c.l.b16 %v3514
          %v3650 = vunpack.c.l.b16 %v3515
          %v3651 = vunpack.c.l.b16 %v3516
          %v3652 = vunpack.c.l.b16 %v3517
          %v3653 = vunpack.c.l.b16 %v3518
          %v3654 = vunpack.c.l.b16 %v3519
          %v3655 = vunpack.c.l.b16 %v3520
          %v3656 = vpack.c.b16 %v3641, %v3640
          %v3657 = vpack.c.b16 %v3643, %v3642
          %v3658 = vpack.c.b16 %v3645, %v3644
          %v3659 = vpack.c.b16 %v3647, %v3646
          %v3660 = vpack.c.b16 %v3649, %v3648
          %v3661 = vpack.c.b16 %v3651, %v3650
          %v3662 = vpack.c.b16 %v3653, %v3652
          %v3663 = vpack.c.b16 %v3655, %v3654
          %3672 = vmatprep.subr.bf16.mxu0 0
          %3673 = vmatpush1.bf16.msra.mxu0 %v3656
          %3674 = vmatprep.subr.bf16.mxu0 0
          %3675 = vmatpush1.bf16.msra.mxu0 %v3657
          %3676 = vmatprep.subr.bf16.mxu0 0
          %3677 = vmatpush1.bf16.msra.mxu0 %v3658
          %3678 = vmatprep.subr.bf16.mxu0 0
          %3679 = vmatpush1.bf16.msra.mxu0 %v3659
          %3680 = vmatprep.subr.bf16.mxu0 0
          %3681 = vmatpush1.bf16.msra.mxu0 %v3660
          %3682 = vmatprep.subr.bf16.mxu0 0
          %3683 = vmatpush1.bf16.msra.mxu0 %v3661
          %3684 = vmatprep.subr.bf16.mxu0 0
          %3685 = vmatpush1.bf16.msra.mxu0 %v3662
          %3686 = vmatprep.subr.bf16.mxu0 0
          %3687 = vmatpush1.bf16.msra.mxu0 %v3663
          %3688 = vmatprep.subr.bf16.mxu0 0
          %3689 = vmatpush1.bf16.msra.mxu0 0
          %3690 = vmatprep.subr.bf16.mxu0 0
          %3691 = vmatpush1.bf16.msra.mxu0 0
          %3692 = vmatprep.subr.bf16.mxu0 0
          %3693 = vmatpush1.bf16.msra.mxu0 0
          %3694 = vmatprep.subr.bf16.mxu0 0
          %3695 = vmatpush1.bf16.msra.mxu0 0
          %3696 = vmatprep.subr.bf16.mxu0 0
          %3697 = vmatpush1.bf16.msra.mxu0 0
          %3698 = vmatprep.subr.bf16.mxu0 0
          %3699 = vmatpush1.bf16.msra.mxu0 0
          %3700 = vmatprep.subr.bf16.mxu0 0
          %3701 = vmatpush1.bf16.msra.mxu0 0
          %3702 = vmatprep.subr.bf16.mxu0 0
          %3703 = vmatpush1.bf16.msra.mxu0 0
          %3704 = vmatprep.mubr.bf16.mxu0 0
          %3705 = vmatmul.mubr.bf16.gmra.mrb[0].mxu0 %v3592
          %v3706 = vpop.f32.mrb[0].mxu0
          %v3707 = vadd.f32 %v3526, %v3706
          %v3708 = vpop.f32.mrb[0].mxu0
          %v3709 = vpop.f32.mrb[0].mxu0
          %v3710 = vadd.f32 %v3526, %v3709
          %v3711 = vpop.f32.mrb[0].mxu0
          %3712 = vmatprep.mubr.bf16.mxu0 0
          %3713 = vmatmul.mubr.bf16.gmra.mrb[0].mxu0 %v3593
          %v3714 = vpop.f32.mrb[0].mxu0
          %v3715 = vadd.f32 %v3526, %v3714
          %v3716 = vpop.f32.mrb[0].mxu0
          %v3717 = vpop.f32.mrb[0].mxu0
          %v3718 = vadd.f32 %v3526, %v3717
          %v3719 = vpop.f32.mrb[0].mxu0
          %3720 = vmatprep.mubr.bf16.mxu0 0
          %3721 = vmatmul.mubr.bf16.gmra.mrb[0].mxu0 %v3594
          %v3722 = vpop.f32.mrb[0].mxu0
          %v3723 = vadd.f32 %v3526, %v3722
          %v3724 = vpop.f32.mrb[0].mxu0
          %v3725 = vpop.f32.mrb[0].mxu0
          %v3726 = vadd.f32 %v3526, %v3725
          %v3727 = vpop.f32.mrb[0].mxu0
          %3728 = vmatprep.mubr.bf16.mxu0 0
          %3729 = vmatmul.mubr.bf16.gmra.mrb[0].mxu0 %v3595
          %v3730 = vpop.f32.mrb[0].mxu0
          %v3731 = vadd.f32 %v3526, %v3730
          %v3732 = vpop.f32.mrb[0].mxu0
          %v3733 = vpop.f32.mrb[0].mxu0
          %v3734 = vadd.f32 %v3526, %v3733
          %v3735 = vpop.f32.mrb[0].mxu0
          %3736 = vmatprep.mubr.bf16.mxu0 0
          %3737 = vmatmul.mubr.bf16.gmra.mrb[0].mxu0 %v3596
          %v3738 = vpop.f32.mrb[0].mxu0
          %v3739 = vadd.f32 %v3526, %v3738
          %v3740 = vpop.f32.mrb[0].mxu0
          %v3741 = vpop.f32.mrb[0].mxu0
          %v3742 = vadd.f32 %v3526, %v3741
          %v3743 = vpop.f32.mrb[0].mxu0
          %3744 = vmatprep.mubr.bf16.mxu0 0
          %3745 = vmatmul.mubr.bf16.gmra.mrb[0].mxu0 %v3597
          %v3746 = vpop.f32.mrb[0].mxu0
          %v3747 = vadd.f32 %v3526, %v3746
          %v3748 = vpop.f32.mrb[0].mxu0
          %v3749 = vpop.f32.mrb[0].mxu0
          %v3750 = vadd.f32 %v3526, %v3749
          %v3751 = vpop.f32.mrb[0].mxu0
          %3752 = vmatprep.mubr.bf16.mxu0 0
          %3753 = vmatmul.mubr.bf16.gmra.mrb[0].mxu0 %v3598
          %v3754 = vpop.f32.mrb[0].mxu0
          %v3755 = vadd.f32 %v3526, %v3754
          %v3756 = vpop.f32.mrb[0].mxu0
          %v3757 = vpop.f32.mrb[0].mxu0
          %v3758 = vadd.f32 %v3526, %v3757
          %v3759 = vpop.f32.mrb[0].mxu0
          %3760 = vmatprep.mubr.bf16.mxu0 0
          %3761 = vmatmul.mubr.bf16.gmra.mrb[0].mxu0 %v3599
          %v3762 = vpop.f32.mrb[0].mxu0
          %v3763 = vadd.f32 %v3526, %v3762
          %v3764 = vpop.f32.mrb[0].mxu0
          %v3765 = vpop.f32.mrb[0].mxu0
          %v3766 = vadd.f32 %v3526, %v3765
          %v3767 = vpop.f32.mrb[0].mxu0
          %3768 = vmatprep.mubr.bf16.mxu0 0
          %3769 = vmatmul.mubr.bf16.gmra.mrb[0].mxu0 %v3600
          %v3770 = vpop.f32.mrb[0].mxu0
          %v3771 = vadd.f32 %v3526, %v3770
          %v3772 = vpop.f32.mrb[0].mxu0
          %v3773 = vpop.f32.mrb[0].mxu0
          %v3774 = vadd.f32 %v3526, %v3773
          %v3775 = vpop.f32.mrb[0].mxu0
          %3776 = vmatprep.mubr.bf16.mxu0 0
          %3777 = vmatmul.mubr.bf16.gmra.mrb[0].mxu0 %v3601
          %v3778 = vpop.f32.mrb[0].mxu0
          %v3779 = vadd.f32 %v3526, %v3778
          %v3780 = vpop.f32.mrb[0].mxu0
          %v3781 = vpop.f32.mrb[0].mxu0
          %v3782 = vadd.f32 %v3526, %v3781
          %v3783 = vpop.f32.mrb[0].mxu0
          %3784 = vmatprep.mubr.bf16.mxu0 0
          %3785 = vmatmul.mubr.bf16.gmra.mrb[0].mxu0 %v3602
          %v3786 = vpop.f32.mrb[0].mxu0
          %v3787 = vadd.f32 %v3526, %v3786
          %v3788 = vpop.f32.mrb[0].mxu0
          %v3789 = vpop.f32.mrb[0].mxu0
          %v3790 = vadd.f32 %v3526, %v3789
          %v3791 = vpop.f32.mrb[0].mxu0
          %3792 = vmatprep.mubr.bf16.mxu0 0
          %3793 = vmatmul.mubr.bf16.gmra.mrb[0].mxu0 %v3603
          %v3794 = vpop.f32.mrb[0].mxu0
          %v3795 = vadd.f32 %v3526, %v3794
          %v3796 = vpop.f32.mrb[0].mxu0
          %v3797 = vpop.f32.mrb[0].mxu0
          %v3798 = vadd.f32 %v3526, %v3797
          %v3799 = vpop.f32.mrb[0].mxu0
          %3800 = vmatprep.mubr.bf16.mxu0 0
          %3801 = vmatmul.mubr.bf16.gmra.mrb[0].mxu0 %v3604
          %v3802 = vpop.f32.mrb[0].mxu0
          %v3803 = vadd.f32 %v3526, %v3802
          %v3804 = vpop.f32.mrb[0].mxu0
          %v3805 = vpop.f32.mrb[0].mxu0
          %v3806 = vadd.f32 %v3526, %v3805
          %v3807 = vpop.f32.mrb[0].mxu0
          %3808 = vmatprep.mubr.bf16.mxu0 0
          %3809 = vmatmul.mubr.bf16.gmra.mrb[0].mxu0 %v3605
          %v3810 = vpop.f32.mrb[0].mxu0
          %v3811 = vadd.f32 %v3526, %v3810
          %v3812 = vpop.f32.mrb[0].mxu0
          %v3813 = vpop.f32.mrb[0].mxu0
          %v3814 = vadd.f32 %v3526, %v3813
          %v3815 = vpop.f32.mrb[0].mxu0
          %3816 = vmatprep.mubr.bf16.mxu0 0
          %3817 = vmatmul.mubr.bf16.gmra.mrb[0].mxu0 %v3606
          %v3818 = vpop.f32.mrb[0].mxu0
          %v3819 = vadd.f32 %v3526, %v3818
          %v3820 = vpop.f32.mrb[0].mxu0
          %v3821 = vpop.f32.mrb[0].mxu0
          %v3822 = vadd.f32 %v3526, %v3821
          %v3823 = vpop.f32.mrb[0].mxu0
          %3824 = vmatprep.mubr.bf16.mxu0 0
          %3825 = vmatmul.mubr.bf16.gmra.mrb[0].mxu0 %v3607
          %v3826 = vpop.f32.mrb[0].mxu0
          %v3827 = vadd.f32 %v3526, %v3826
          %v3828 = vpop.f32.mrb[0].mxu0
          %v3829 = vpop.f32.mrb[0].mxu0
          %v3830 = vadd.f32 %v3526, %v3829
          %v3831 = vpop.f32.mrb[0].mxu0
          %3832 = vdwg.mxu0
          %v3833 = vadd.f32 %v3344, %v3707
          %v3834 = vadd.f32 %v3347, %v3710
          %v3835 = vadd.f32 %v3352, %v3715
          %v3836 = vadd.f32 %v3355, %v3718
          %v3837 = vadd.f32 %v3360, %v3723
          %v3838 = vadd.f32 %v3363, %v3726
          %v3839 = vadd.f32 %v3368, %v3731
          %v3840 = vadd.f32 %v3371, %v3734
          %v3841 = vadd.f32 %v3376, %v3739
          %v3842 = vadd.f32 %v3379, %v3742
          %v3843 = vadd.f32 %v3384, %v3747
          %v3844 = vadd.f32 %v3387, %v3750
          %v3845 = vadd.f32 %v3392, %v3755
          %v3846 = vadd.f32 %v3395, %v3758
          %v3847 = vadd.f32 %v3400, %v3763
          %v3848 = vadd.f32 %v3403, %v3766
          %v3849 = vadd.f32 %v3408, %v3771
          %v3850 = vadd.f32 %v3411, %v3774
          %v3851 = vadd.f32 %v3416, %v3779
          %v3852 = vadd.f32 %v3419, %v3782
          %v3853 = vadd.f32 %v3424, %v3787
          %v3854 = vadd.f32 %v3427, %v3790
          %v3855 = vadd.f32 %v3432, %v3795
          %v3856 = vadd.f32 %v3435, %v3798
          %v3857 = vadd.f32 %v3440, %v3803
          %v3858 = vadd.f32 %v3443, %v3806
          %v3859 = vadd.f32 %v3448, %v3811
          %v3860 = vadd.f32 %v3451, %v3814
          %v3861 = vadd.f32 %v3456, %v3819
          %v3862 = vadd.f32 %v3459, %v3822
          %v3863 = vadd.f32 %v3464, %v3827
          %v3864 = vadd.f32 %v3467, %v3830
          %v3865 = vmax.f32 %v3833, 0.0
          %v3866 = vmax.f32 %v3834, 0.0
          %v3867 = vmax.f32 %v3835, 0.0
          %v3868 = vmax.f32 %v3836, 0.0
          %v3869 = vmax.f32 %v3837, 0.0
          %v3870 = vmax.f32 %v3838, 0.0
          %v3871 = vmax.f32 %v3839, 0.0
          %v3872 = vmax.f32 %v3840, 0.0
          %v3873 = vmax.f32 %v3841, 0.0
          %v3874 = vmax.f32 %v3842, 0.0
          %v3875 = vmax.f32 %v3843, 0.0
          %v3876 = vmax.f32 %v3844, 0.0
          %v3877 = vmax.f32 %v3845, 0.0
          %v3878 = vmax.f32 %v3846, 0.0
          %v3879 = vmax.f32 %v3847, 0.0
          %v3880 = vmax.f32 %v3848, 0.0
          %v3881 = vmax.f32 %v3849, 0.0
          %v3882 = vmax.f32 %v3850, 0.0
          %v3883 = vmax.f32 %v3851, 0.0
          %v3884 = vmax.f32 %v3852, 0.0
          %v3885 = vmax.f32 %v3853, 0.0
          %v3886 = vmax.f32 %v3854, 0.0
          %v3887 = vmax.f32 %v3855, 0.0
          %v3888 = vmax.f32 %v3856, 0.0
          %v3889 = vmax.f32 %v3857, 0.0
          %v3890 = vmax.f32 %v3858, 0.0
          %v3891 = vmax.f32 %v3859, 0.0
          %v3892 = vmax.f32 %v3860, 0.0
          %v3893 = vmax.f32 %v3861, 0.0
          %v3894 = vmax.f32 %v3862, 0.0
          %v3895 = vmax.f32 %v3863, 0.0
          %v3896 = vmax.f32 %v3864, 0.0
          %v3897 = vpack.c.bf16 %v3866, %v3865
          %v3898 = vpack.c.bf16 %v3868, %v3867
          %v3899 = vpack.c.bf16 %v3870, %v3869
          %v3900 = vpack.c.bf16 %v3872, %v3871
          %v3901 = vpack.c.bf16 %v3874, %v3873
          %v3902 = vpack.c.bf16 %v3876, %v3875
          %v3903 = vpack.c.bf16 %v3878, %v3877
          %v3904 = vpack.c.bf16 %v3880, %v3879
          %v3905 = vpack.c.bf16 %v3882, %v3881
          %v3906 = vpack.c.bf16 %v3884, %v3883
          %v3907 = vpack.c.bf16 %v3886, %v3885
          %v3908 = vpack.c.bf16 %v3888, %v3887
          %v3909 = vpack.c.bf16 %v3890, %v3889
          %v3910 = vpack.c.bf16 %v3892, %v3891
          %v3911 = vpack.c.bf16 %v3894, %v3893
          %v3912 = vpack.c.bf16 %v3896, %v3895
          %v3929 = vunpack.c.l.b16 %v3897
          %v3930 = vunpack.c.h.b16 %v3897
          %v3931 = vunpack.c.l.b16 %v3898
          %v3932 = vunpack.c.h.b16 %v3898
          %v3933 = vunpack.c.l.b16 %v3899
          %v3934 = vunpack.c.h.b16 %v3899
          %v3935 = vunpack.c.l.b16 %v3900
          %v3936 = vunpack.c.h.b16 %v3900
          %v3937 = vunpack.c.l.b16 %v3901
          %v3938 = vunpack.c.h.b16 %v3901
          %v3939 = vunpack.c.l.b16 %v3902
          %v3940 = vunpack.c.h.b16 %v3902
          %v3941 = vunpack.c.l.b16 %v3903
          %v3942 = vunpack.c.h.b16 %v3903
          %v3943 = vunpack.c.l.b16 %v3904
          %v3944 = vunpack.c.h.b16 %v3904
          %v3945 = vunpack.c.l.b16 %v3905
          %v3946 = vunpack.c.h.b16 %v3905
          %v3947 = vunpack.c.l.b16 %v3906
          %v3948 = vunpack.c.h.b16 %v3906
          %v3949 = vunpack.c.l.b16 %v3907
          %v3950 = vunpack.c.h.b16 %v3907
          %v3951 = vunpack.c.l.b16 %v3908
          %v3952 = vunpack.c.h.b16 %v3908
          %v3953 = vunpack.c.l.b16 %v3909
          %v3954 = vunpack.c.h.b16 %v3909
          %v3955 = vunpack.c.l.b16 %v3910
          %v3956 = vunpack.c.h.b16 %v3910
          %v3957 = vunpack.c.l.b16 %v3911
          %v3958 = vunpack.c.h.b16 %v3911
          %v3959 = vunpack.c.l.b16 %v3912
          %v3960 = vunpack.c.h.b16 %v3912
          %v3961 = vpack.c.b16 %v3929, %v3929
          %v3962 = vpack.c.b16 %v3930, %v3930
          %v3963 = vpack.c.b16 %v3931, %v3931
          %v3964 = vpack.c.b16 %v3932, %v3932
          %v3965 = vpack.c.b16 %v3933, %v3933
          %v3966 = vpack.c.b16 %v3934, %v3934
          %v3967 = vpack.c.b16 %v3935, %v3935
          %v3968 = vpack.c.b16 %v3936, %v3936
          %v3969 = vpack.c.b16 %v3937, %v3937
          %v3970 = vpack.c.b16 %v3938, %v3938
          %v3971 = vpack.c.b16 %v3939, %v3939
          %v3972 = vpack.c.b16 %v3940, %v3940
          %v3973 = vpack.c.b16 %v3941, %v3941
          %v3974 = vpack.c.b16 %v3942, %v3942
          %v3975 = vpack.c.b16 %v3943, %v3943
          %v3976 = vpack.c.b16 %v3944, %v3944
          %v3977 = vpack.c.b16 %v3945, %v3945
          %v3978 = vpack.c.b16 %v3946, %v3946
          %v3979 = vpack.c.b16 %v3947, %v3947
          %v3980 = vpack.c.b16 %v3948, %v3948
          %v3981 = vpack.c.b16 %v3949, %v3949
          %v3982 = vpack.c.b16 %v3950, %v3950
          %v3983 = vpack.c.b16 %v3951, %v3951
          %v3984 = vpack.c.b16 %v3952, %v3952
          %v3985 = vpack.c.b16 %v3953, %v3953
          %v3986 = vpack.c.b16 %v3954, %v3954
          %v3987 = vpack.c.b16 %v3955, %v3955
          %v3988 = vpack.c.b16 %v3956, %v3956
          %v3989 = vpack.c.b16 %v3957, %v3957
          %v3990 = vpack.c.b16 %v3958, %v3958
          %v3991 = vpack.c.b16 %v3959, %v3959
          %v3992 = vpack.c.b16 %v3960, %v3960
          %s4025 = smul.addr %s3470, 4
          %s4026 = scalar_lea.vmem %s459, %s4025 [#allocation18]
          %4027 = vst [vmem:[%s4026] sm:$0xf] %v3961
          %4028 = vst [vmem:[%s4026 + $0x4] sm:$0xf] %v3962
          %4029 = vst [vmem:[%s4026 + $0x8] sm:$0xf] %v3963
          %4030 = vst [vmem:[%s4026 + $0xc] sm:$0xf] %v3964
          %4031 = vst [vmem:[%s4026 + $0x10] sm:$0xf] %v3965
          %4032 = vst [vmem:[%s4026 + $0x14] sm:$0xf] %v3966
          %4033 = vst [vmem:[%s4026 + $0x18] sm:$0xf] %v3967
          %4034 = vst [vmem:[%s4026 + $0x1c] sm:$0xf] %v3968
          %4035 = vst [vmem:[%s4026 + $0x20] sm:$0xf] %v3969
          %4036 = vst [vmem:[%s4026 + $0x24] sm:$0xf] %v3970
          %4037 = vst [vmem:[%s4026 + $0x28] sm:$0xf] %v3971
          %4038 = vst [vmem:[%s4026 + $0x2c] sm:$0xf] %v3972
          %4039 = vst [vmem:[%s4026 + $0x30] sm:$0xf] %v3973
          %4040 = vst [vmem:[%s4026 + $0x34] sm:$0xf] %v3974
          %4041 = vst [vmem:[%s4026 + $0x38] sm:$0xf] %v3975
          %4042 = vst [vmem:[%s4026 + $0x3c] sm:$0xf] %v3976
          %4043 = vst [vmem:[%s4026 + $0x80] sm:$0xf] %v3977
          %4044 = vst [vmem:[%s4026 + $0x84] sm:$0xf] %v3978
          %4045 = vst [vmem:[%s4026 + $0x88] sm:$0xf] %v3979
          %4046 = vst [vmem:[%s4026 + $0x8c] sm:$0xf] %v3980
          %4047 = vst [vmem:[%s4026 + $0x90] sm:$0xf] %v3981
          %4048 = vst [vmem:[%s4026 + $0x94] sm:$0xf] %v3982
          %4049 = vst [vmem:[%s4026 + $0x98] sm:$0xf] %v3983
          %4050 = vst [vmem:[%s4026 + $0x9c] sm:$0xf] %v3984
          %4051 = vst [vmem:[%s4026 + $0xa0] sm:$0xf] %v3985
          %4052 = vst [vmem:[%s4026 + $0xa4] sm:$0xf] %v3986
          %4053 = vst [vmem:[%s4026 + $0xa8] sm:$0xf] %v3987
          %4054 = vst [vmem:[%s4026 + $0xac] sm:$0xf] %v3988
          %4055 = vst [vmem:[%s4026 + $0xb0] sm:$0xf] %v3989
          %4056 = vst [vmem:[%s4026 + $0xb4] sm:$0xf] %v3990
          %4057 = vst [vmem:[%s4026 + $0xb8] sm:$0xf] %v3991
          %4058 = vst [vmem:[%s4026 + $0xbc] sm:$0xf] %v3992
        $region104: #{tpu_custom_call.1} parent=55 // loop_footer
          %s1418 = sadd.s32 1, %s1414
        $region105: #{tpu_custom_call.1} parent=55 // loop_footer_branch
          %1413 = sbr.rel target = $region101
        $region106: #{tpu_custom_call.1} parent=55 // loop_exit
          _
        %s4059 = sand.u32 %s232, 1
        %s4060 = scalar_lea.sflag [#allocation5], %s4059
        %s4061 = sand.u32 %s232, 1
        %s4062 = smul.addr %s4061, 256
        %s4063 = scalar_lea.vmem [#allocation18], %s4062
        // Predicated region
        $region107: #{tpu_custom_call.1} parent=55 // pred_check
          %p4064 = pneg %p242
        $region108: #{tpu_custom_call.1} parent=55 // pred_check_branch
          %4066 = sbr.rel (%p4064) target = $region110
        $region109: #{tpu_custom_call.1} parent=55 // pred_region
          %s4067 = smul.u32 2, %s30
          %s4069 = ssub.s32 4096, 4096
          %4070 = vsyncadd %s4060, %s4069
          %s4071 = smul.addr %s4067, 32
          %s4072 = smul.addr %s4071, 64
          %s4073 = scalar_lea.hbm %s9, %s4072
          %s4074 = sshll.u32 %s4063, 4
          %s4075 = int_to_ptr.vmem [resolvable:$true] %s4074
          %4080 = dma.vmem_to_hbm [thread:$0]  %s4075, 4096, %s4073, %s4060, 64, 64, 4
        $region110: #{tpu_custom_call.1} parent=55 // pred_fallthru
          _
      $region56: #{tpu_custom_call.1} parent=5 // pred_fallthru
        _
      %p4081 = scmp.le.s32.totalorder 2, %s25
      // Predicated region
      $region111: #{tpu_custom_call.1} parent=5 // pred_check
        %p4082 = pneg %p4081
      $region112: #{tpu_custom_call.1} parent=5 // pred_check_branch
        %4084 = sbr.rel (%p4082) target = $region114
      $region113: #{tpu_custom_call.1} parent=5 // pred_region
        %s4085 = ssub.s32 %s25, 2
        // Predicated region
        $region115: #{tpu_custom_call.1} parent=113 // pred_check
          %p4086 = pneg %p248
        $region116: #{tpu_custom_call.1} parent=113 // pred_check_branch
          %4088 = sbr.rel (%p4086) target = $region118
        $region117: #{tpu_custom_call.1} parent=113 // pred_region
          %s4089 = sand.u32 %s233, 1
          %s4090 = scalar_lea.sflag [#allocation5], %s4089
          %s4091 = sand.u32 %s233, 1
          %s4092 = smul.addr %s4091, 256
          %s4093 = scalar_lea.vmem [#allocation18], %s4092
          %4094 = dma.done %s4090, 4096
        $region118: #{tpu_custom_call.1} parent=113 // pred_fallthru
          _
      $region114: #{tpu_custom_call.1} parent=5 // pred_fallthru
        _
    $region6: #{tpu_custom_call.1} parent=1 // loop_footer
      %s29 = sadd.s32 1, %s25
    $region7: #{tpu_custom_call.1} parent=1 // loop_footer_branch
      %24 = sbr.rel target = $region3
    $region8: #{tpu_custom_call.1} parent=1 // loop_exit
      _
    %4095 = vsyncpa [#allocation4], 1
    %s4096 = scalar_lea.sflag [#allocation4], 1
    %4097 = vsyncpa %s4096, 1
    %4098 = vsyncpa [#allocation7], 1
    %4099 = vsyncpa [#allocation10], 1
    %4100 = vsyncpa [#allocation13], 1
    %4101 = vsyncpa [#allocation16], 1
    %4102 = vsyncpa [#allocation5], 1
    %s4103 = scalar_lea.sflag [#allocation5], 1
    %4104 = vsyncpa %s4103, 1

</llo_original>
